<compile_context>
chip_gen: v5e
topology: v5e:2x2
jax: 0.10.0
libtpu: 0.0.40
codegen_flags: <defaults>
</compile_context>

<pallas_src>
import jax
import jax.numpy as jnp
import numpy as np
from jax.experimental import pallas as pl
from jax.experimental.pallas import tpu as pltpu


# ----------------------------------------------------------------------------
# Fused TextRCNN kernel
# ----------------------------------------------------------------------------
def make_textrcnn_kernel(S, Bp, E, H, L):
    """Builds the fused kernel.  All activations stay resident in VMEM.

    Layout: time-major, batch padded to Bp (multiple of 8 sublanes) and
    flattened, so the per-timestep tile is a statically aligned (Bp, feat)
    slab; the gate width 4H is the lane dimension.
    """

    def run_direction(xg, whh_ref, out_ref, reverse):
        """Serial LSTM recurrence for one direction.

        xg:      (S*Bp, 4H) precomputed x @ W_ih + b (hoisted off serial path)
        out_ref: (S*Bp, H) VMEM scratch for per-step h, or None (last layer)
        returns  max_t relu(h_t): (Bp, H)
        """
        h = jnp.zeros((Bp, H), jnp.float32)
        c = jnp.zeros((Bp, H), jnp.float32)
        pooled = jnp.zeros((Bp, H), jnp.float32)       # running max of relu(h)
        steps = range(S - 1, -1, -1) if reverse else range(S)
        for t in steps:      # static unroll; only h @ W_hh is truly serial
            gates = xg[t * Bp:(t + 1) * Bp, :] + jnp.dot(
                h, whh_ref[...], preferred_element_type=jnp.float32)
            i = jax.nn.sigmoid(gates[:, 0 * H:1 * H])
            f = jax.nn.sigmoid(gates[:, 1 * H:2 * H])
            g = jnp.tanh(gates[:, 2 * H:3 * H])
            o = jax.nn.sigmoid(gates[:, 3 * H:4 * H])
            c = f * c + i * g
            h = o * jnp.tanh(c)
            if out_ref is not None:
                out_ref[t * Bp:(t + 1) * Bp, :] = h    # aligned (8,H) store
            pooled = jnp.maximum(pooled, h)            # == max_t relu(h_t)
        return pooled

    def kernel(*refs):
        x_ref = refs[0]                        # (S*Bp, E) time-major, padded
        layer_refs = refs[1:1 + 6 * L]         # per layer: wih_f,whh_f,b_f,wih_b,whh_b,b_b
        we_ref = refs[1 + 6 * L]               # (E, C)
        wo_ref = refs[2 + 6 * L]               # (2H, C)  rows: [fwd H ; bwd H]
        bfc_ref = refs[3 + 6 * L]              # (1, C)
        y_ref = refs[4 + 6 * L]                # (Bp, C)
        act = refs[5 + 6 * L:]                 # 4 x (S*Bp, H) VMEM scratch
        act_pairs = [(act[0], act[1]), (act[2], act[3])]

        x = x_ref[...]                         # (S*Bp, E)

        # relu + max-pool of the embedding over the sequence (head, embed half)
        pe = jnp.zeros((Bp, E), jnp.float32)
        for t in range(S):
            pe = jnp.maximum(pe, x[t * Bp:(t + 1) * Bp, :])   # == max_t relu(x_t)

        pooled_f = pooled_b = None
        for l in range(L):
            wif, whf, bf, wib, whb, bb = layer_refs[6 * l:6 * l + 6]
            last = (l == L - 1)
            out_f, out_b = (None, None) if last else act_pairs[l % 2]

            # Hoisted input projections: one big matmul per direction.
            if l == 0:
                xg_f = jnp.dot(x, wif[...], preferred_element_type=jnp.float32) + bf[...]
                xg_b = jnp.dot(x, wib[...], preferred_element_type=jnp.float32) + bb[...]
            else:
                pf_ref, pb_ref = act_pairs[(l - 1) % 2]
                prev_f = pf_ref[...]
                prev_b = pb_ref[...]
                xg_f = (jnp.dot(prev_f, wif[0:H, :], preferred_element_type=jnp.float32)
                        + jnp.dot(prev_b, wif[H:2 * H, :], preferred_element_type=jnp.float32)
                        + bf[...])
                xg_b = (jnp.dot(prev_f, wib[0:H, :], preferred_element_type=jnp.float32)
                        + jnp.dot(prev_b, wib[H:2 * H, :], preferred_element_type=jnp.float32)
                        + bb[...])

            # TODO(synk): nn.LSTM inter-layer dropout is train-only; no-op here.
            # TODO(synk): on v7x the two directions could be split over the 2
            #             TensorCores (core_parallel); not worth it at this size.
            pooled_f = run_direction(xg_f, whf, out_f, reverse=False)
            pooled_b = run_direction(xg_b, whb, out_b, reverse=True)

        # head: fc over [max relu(embed) ; max relu(h_fwd) ; max relu(h_bwd)]
        y = (jnp.dot(pe, we_ref[...], preferred_element_type=jnp.float32)
             + jnp.dot(pooled_f, wo_ref[0:H, :], preferred_element_type=jnp.float32)
             + jnp.dot(pooled_b, wo_ref[H:2 * H, :], preferred_element_type=jnp.float32)
             + bfc_ref[...])
        y_ref[...] = y

    return kernel


def textrcnn_pallas(x_flat, layer_params, w_e, w_o, fc_b, *, S, Bp, E, H, L, C):
    kernel = make_textrcnn_kernel(S, Bp, E, H, L)
    flat_w = []
    for p in layer_params:
        flat_w += [p["wih_f"], p["whh_f"], p["b_f"],
                   p["wih_b"], p["whh_b"], p["b_b"]]
    n_in = 1 + len(flat_w) + 3
    vmem_spec = lambda: pl.BlockSpec(memory_space=pltpu.MemorySpace.VMEM)
    return pl.pallas_call(
        kernel,
        out_shape=jax.ShapeDtypeStruct((Bp, C), jnp.float32),
        in_specs=[vmem_spec() for _ in range(n_in)],
        out_specs=vmem_spec(),
        scratch_shapes=[pltpu.VMEM((S * Bp, H), jnp.float32) for _ in range(4)],
        compiler_params=pltpu.CompilerParams(vmem_limit_bytes=32 * 1024 * 1024),
    )(x_flat, *flat_w, w_e, w_o, fc_b)


# ----------------------------------------------------------------------------
# Full model forward
# ----------------------------------------------------------------------------
@jax.jit
def textrcnn_forward(token_ids, emb_table, layer_params, w_e, w_o, fc_b):
    B, S = token_ids.shape
    E = emb_table.shape[1]
    H = layer_params[0]["whh_f"].shape[0]
    L = len(layer_params)
    C = w_e.shape[1]
    Bp = ((B + 7) // 8) * 8                      # pad batch to full sublanes

    x_sbe = jnp.take(emb_table, token_ids.T, axis=0)        # (S, B, E) gather
    x_sbe = jnp.pad(x_sbe, ((0, 0), (0, Bp - B), (0, 0)))   # (S, Bp, E)
    x_flat = x_sbe.reshape(S * Bp, E)                       # time-major flat

    y = textrcnn_pallas(x_flat, layer_params, w_e, w_o, fc_b,
                        S=S, Bp=Bp, E=E, H=H, L=L, C=C)
    return y[:B]


# ----------------------------------------------------------------------------
# Pure-JAX reference (for correctness check)
# ----------------------------------------------------------------------------
def _ref_lstm_dir(x, wih_t, whh_t, b):
    S, B, _ = x.shape
    H = whh_t.shape[0]

    def step(carry, xt):
        hh, cc = carry
        gates = xt @ wih_t + hh @ whh_t + b
        i = jax.nn.sigmoid(gates[:, 0 * H:1 * H])
        f = jax.nn.sigmoid(gates[:, 1 * H:2 * H])
        g = jnp.tanh(gates[:, 2 * H:3 * H])
        o = jax.nn.sigmoid(gates[:, 3 * H:4 * H])
        cc = f * cc + i * g
        hh = o * jnp.tanh(cc)
        return (hh, cc), hh

    init = (jnp.zeros((B, H), jnp.float32), jnp.zeros((B, H), jnp.float32))
    _, hs = jax.lax.scan(step, init, x)
    return hs


def ref_forward(token_ids, emb_table, layer_params, w_e, w_o, fc_b):
    embed = emb_table[token_ids]
    h = jnp.transpose(embed, (1, 0, 2))
    for p in layer_params:
        fwd = _ref_lstm_dir(h, p["wih_f"], p["whh_f"], p["b_f"])
        bwd = _ref_lstm_dir(h[::-1], p["wih_b"], p["whh_b"], p["b_b"])[::-1]
        h = jnp.concatenate([fwd, bwd], axis=-1)
    out = jnp.transpose(h, (1, 0, 2))
    feat = jnp.maximum(jnp.concatenate([embed, out], axis=-1), 0.0)
    pooled = jnp.max(feat, axis=1)
    return pooled @ jnp.concatenate([w_e, w_o], axis=0) + fc_b


# ----------------------------------------------------------------------------
if __name__ == "__main__":
    # Small config consistent with the module's forward.
    B, S = 2, 8            # batch, sequence length
    V, E = 50, 32          # n_vocab, embed
    H = 32                 # hidden_size
    L = 2                  # num_layers
    C = 4                  # num_classes

    key = jax.random.PRNGKey(0)
    ks = iter(jax.random.split(key, 64))

    # Embedding table, padding row (V-1) zeroed like nn.Embedding(padding_idx=...)
    emb_table = jax.random.normal(next(ks), (V, E), jnp.float32) * 0.1
    emb_table = emb_table.at[V - 1].set(0.0)

    bound = 1.0 / np.sqrt(H)

    def unif(k, shape):
        return jax.random.uniform(k, shape, jnp.float32, -bound, bound)

    layer_params = []
    for layer in range(L):
        d_in = E if layer == 0 else 2 * H
        layer_params.append({
            # stored transposed: (D_in, 4H), (H, 4H); bias = b_ih + b_hh
            "wih_f": unif(next(ks), (d_in, 4 * H)),
            "whh_f": unif(next(ks), (H, 4 * H)),
            "b_f":   unif(next(ks), (1, 4 * H)) + unif(next(ks), (1, 4 * H)),
            "wih_b": unif(next(ks), (d_in, 4 * H)),
            "whh_b": unif(next(ks), (H, 4 * H)),
            "b_b":   unif(next(ks), (1, 4 * H)) + unif(next(ks), (1, 4 * H)),
        })

    fc_bound = 1.0 / np.sqrt(2 * H + E)
    w_fc = jax.random.uniform(next(ks), (2 * H + E, C), jnp.float32,
                              -fc_bound, fc_bound)   # (in_features, C) == W^T
    b_fc = jax.random.uniform(next(ks), (1, C), jnp.float32, -fc_bound, fc_bound)
    w_e, w_o = w_fc[:E], w_fc[E:]                    # split: [embed ; lstm_out]

    token_ids = jax.random.randint(next(ks), (B, S), 0, V, jnp.int32)

    y = textrcnn_forward(token_ids, emb_table, layer_params, w_e, w_o, b_fc)
    y = jax.block_until_ready(y)

    y_ref = ref_forward(token_ids, emb_table, layer_params, w_e, w_o, b_fc)
    np.testing.assert_allclose(np.asarray(y), np.asarray(y_ref),
                               rtol=1e-4, atol=1e-4)

    assert y.shape == (B, C) and y.dtype == jnp.float32
    print("KERNEL_OK")
</pallas_src>

<mosaic_0001>
module attributes {stable_mosaic.version = 11 : i64} {
  func.func @kernel(%arg0: memref<64x32xf32, #tpu.memory_space<vmem>>, %arg1: memref<32x128xf32, #tpu.memory_space<vmem>>, %arg2: memref<32x128xf32, #tpu.memory_space<vmem>>, %arg3: memref<1x128xf32, #tpu.memory_space<vmem>>, %arg4: memref<32x128xf32, #tpu.memory_space<vmem>>, %arg5: memref<32x128xf32, #tpu.memory_space<vmem>>, %arg6: memref<1x128xf32, #tpu.memory_space<vmem>>, %arg7: memref<64x128xf32, #tpu.memory_space<vmem>>, %arg8: memref<32x128xf32, #tpu.memory_space<vmem>>, %arg9: memref<1x128xf32, #tpu.memory_space<vmem>>, %arg10: memref<64x128xf32, #tpu.memory_space<vmem>>, %arg11: memref<32x128xf32, #tpu.memory_space<vmem>>, %arg12: memref<1x128xf32, #tpu.memory_space<vmem>>, %arg13: memref<32x4xf32, #tpu.memory_space<vmem>>, %arg14: memref<64x4xf32, #tpu.memory_space<vmem>>, %arg15: memref<1x4xf32, #tpu.memory_space<vmem>>, %arg16: memref<8x4xf32, #tpu.memory_space<vmem>>, %arg17: memref<64x32xf32, #tpu.memory_space<vmem>>, %arg18: memref<64x32xf32, #tpu.memory_space<vmem>>, %arg19: memref<64x32xf32, #tpu.memory_space<vmem>>, %arg20: memref<64x32xf32, #tpu.memory_space<vmem>>) attributes {dimension_semantics = [], scalar_prefetch = 0 : i64, scratch_operands = 4 : i64, tpu.core_type = #tpu.core_type<tc>} {
    %c0 = arith.constant 0 : index
    %c0_0 = arith.constant 0 : index
    %0 = vector.load %arg0[%c0, %c0_0] : memref<64x32xf32, #tpu.memory_space<vmem>>, vector<64x32xf32>
    %cst = arith.constant 0.000000e+00 : f32
    %1 = vector.broadcast %cst : f32 to vector<8x32xf32>
    %2 = vector.extract_strided_slice %0 {offsets = [0, 0], sizes = [8, 32], strides = [1, 1]} : vector<64x32xf32> to vector<8x32xf32>
    %3 = arith.maximumf %1, %2 : vector<8x32xf32>
    %4 = vector.extract_strided_slice %0 {offsets = [8, 0], sizes = [8, 32], strides = [1, 1]} : vector<64x32xf32> to vector<8x32xf32>
    %5 = arith.maximumf %3, %4 : vector<8x32xf32>
    %6 = vector.extract_strided_slice %0 {offsets = [16, 0], sizes = [8, 32], strides = [1, 1]} : vector<64x32xf32> to vector<8x32xf32>
    %7 = arith.maximumf %5, %6 : vector<8x32xf32>
    %8 = vector.extract_strided_slice %0 {offsets = [24, 0], sizes = [8, 32], strides = [1, 1]} : vector<64x32xf32> to vector<8x32xf32>
    %9 = arith.maximumf %7, %8 : vector<8x32xf32>
    %10 = vector.extract_strided_slice %0 {offsets = [32, 0], sizes = [8, 32], strides = [1, 1]} : vector<64x32xf32> to vector<8x32xf32>
    %11 = arith.maximumf %9, %10 : vector<8x32xf32>
    %12 = vector.extract_strided_slice %0 {offsets = [40, 0], sizes = [8, 32], strides = [1, 1]} : vector<64x32xf32> to vector<8x32xf32>
    %13 = arith.maximumf %11, %12 : vector<8x32xf32>
    %14 = vector.extract_strided_slice %0 {offsets = [48, 0], sizes = [8, 32], strides = [1, 1]} : vector<64x32xf32> to vector<8x32xf32>
    %15 = arith.maximumf %13, %14 : vector<8x32xf32>
    %16 = vector.extract_strided_slice %0 {offsets = [56, 0], sizes = [8, 32], strides = [1, 1]} : vector<64x32xf32> to vector<8x32xf32>
    %17 = arith.maximumf %15, %16 : vector<8x32xf32>
    %c0_1 = arith.constant 0 : index
    %c0_2 = arith.constant 0 : index
    %18 = vector.load %arg1[%c0_1, %c0_2] : memref<32x128xf32, #tpu.memory_space<vmem>>, vector<32x128xf32>
    %cst_3 = arith.constant dense<0.000000e+00> : vector<64x128xf32>
    %19 = tpu.matmul %0, %18, %cst_3 {dimension_numbers = #tpu.dot_dimension_numbers<[1], [0], [0], [1], [0, 0, 1, 1], [], []>} : vector<64x32xf32>, vector<32x128xf32>, vector<64x128xf32> -> vector<64x128xf32>
    %c0_4 = arith.constant 0 : index
    %c0_5 = arith.constant 0 : index
    %20 = vector.load %arg3[%c0_4, %c0_5] : memref<1x128xf32, #tpu.memory_space<vmem>>, vector<1x128xf32>
    %21 = vector.broadcast %20 : vector<1x128xf32> to vector<64x128xf32>
    %22 = arith.addf %19, %21 : vector<64x128xf32>
    %c0_6 = arith.constant 0 : index
    %c0_7 = arith.constant 0 : index
    %23 = vector.load %arg4[%c0_6, %c0_7] : memref<32x128xf32, #tpu.memory_space<vmem>>, vector<32x128xf32>
    %cst_8 = arith.constant dense<0.000000e+00> : vector<64x128xf32>
    %24 = tpu.matmul %0, %23, %cst_8 {dimension_numbers = #tpu.dot_dimension_numbers<[1], [0], [0], [1], [0, 0, 1, 1], [], []>} : vector<64x32xf32>, vector<32x128xf32>, vector<64x128xf32> -> vector<64x128xf32>
    %c0_9 = arith.constant 0 : index
    %c0_10 = arith.constant 0 : index
    %25 = vector.load %arg6[%c0_9, %c0_10] : memref<1x128xf32, #tpu.memory_space<vmem>>, vector<1x128xf32>
    %26 = vector.broadcast %25 : vector<1x128xf32> to vector<64x128xf32>
    %27 = arith.addf %24, %26 : vector<64x128xf32>
    %cst_11 = arith.constant 0.000000e+00 : f32
    %28 = vector.broadcast %cst_11 : f32 to vector<8x32xf32>
    %cst_12 = arith.constant 0.000000e+00 : f32
    %29 = vector.broadcast %cst_12 : f32 to vector<8x32xf32>
    %30 = vector.extract_strided_slice %22 {offsets = [0, 0], sizes = [8, 128], strides = [1, 1]} : vector<64x128xf32> to vector<8x128xf32>
    %c0_13 = arith.constant 0 : index
    %c0_14 = arith.constant 0 : index
    %31 = vector.load %arg2[%c0_13, %c0_14] : memref<32x128xf32, #tpu.memory_space<vmem>>, vector<32x128xf32>
    %cst_15 = arith.constant dense<0.000000e+00> : vector<8x128xf32>
    %32 = tpu.matmul %28, %31, %cst_15 {dimension_numbers = #tpu.dot_dimension_numbers<[1], [0], [0], [1], [0, 0, 1, 1], [], []>} : vector<8x32xf32>, vector<32x128xf32>, vector<8x128xf32> -> vector<8x128xf32>
    %33 = arith.addf %30, %32 : vector<8x128xf32>
    %34 = vector.extract_strided_slice %33 {offsets = [0, 0], sizes = [8, 32], strides = [1, 1]} : vector<8x128xf32> to vector<8x32xf32>
    %35 = arith.negf %34 : vector<8x32xf32>
    %36 = math.exp %35 : vector<8x32xf32>
    %cst_16 = arith.constant 1.000000e+00 : f32
    %37 = vector.broadcast %cst_16 : f32 to vector<8x32xf32>
    %38 = arith.addf %37, %36 : vector<8x32xf32>
    %39 = arith.divf %37, %38 : vector<8x32xf32>
    %40 = vector.extract_strided_slice %33 {offsets = [0, 32], sizes = [8, 32], strides = [1, 1]} : vector<8x128xf32> to vector<8x32xf32>
    %41 = arith.negf %40 : vector<8x32xf32>
    %42 = math.exp %41 : vector<8x32xf32>
    %cst_17 = arith.constant 1.000000e+00 : f32
    %43 = vector.broadcast %cst_17 : f32 to vector<8x32xf32>
    %44 = arith.addf %43, %42 : vector<8x32xf32>
    %45 = arith.divf %43, %44 : vector<8x32xf32>
    %46 = vector.extract_strided_slice %33 {offsets = [0, 64], sizes = [8, 32], strides = [1, 1]} : vector<8x128xf32> to vector<8x32xf32>
    %47 = math.tanh %46 : vector<8x32xf32>
    %48 = vector.extract_strided_slice %33 {offsets = [0, 96], sizes = [8, 32], strides = [1, 1]} : vector<8x128xf32> to vector<8x32xf32>
    %49 = arith.negf %48 : vector<8x32xf32>
    %50 = math.exp %49 : vector<8x32xf32>
    %cst_18 = arith.constant 1.000000e+00 : f32
    %51 = vector.broadcast %cst_18 : f32 to vector<8x32xf32>
    %52 = arith.addf %51, %50 : vector<8x32xf32>
    %53 = arith.divf %51, %52 : vector<8x32xf32>
    %54 = arith.mulf %45, %29 : vector<8x32xf32>
    %55 = arith.mulf %39, %47 : vector<8x32xf32>
    %56 = arith.addf %54, %55 : vector<8x32xf32>
    %57 = math.tanh %56 : vector<8x32xf32>
    %58 = arith.mulf %53, %57 : vector<8x32xf32>
    %c0_19 = arith.constant 0 : index
    %c0_20 = arith.constant 0 : index
    %59 = vector.load %arg17[%c0_19, %c0_20] : memref<64x32xf32, #tpu.memory_space<vmem>>, vector<8x32xf32>
    tpu.vector_store %arg17[%c0_19, %c0_20], %58 {strides = array<i32>} : memref<64x32xf32, #tpu.memory_space<vmem>>, vector<8x32xf32>,
    %60 = vector.extract_strided_slice %22 {offsets = [8, 0], sizes = [8, 128], strides = [1, 1]} : vector<64x128xf32> to vector<8x128xf32>
    %c0_21 = arith.constant 0 : index
    %c0_22 = arith.constant 0 : index
    %61 = vector.load %arg2[%c0_21, %c0_22] : memref<32x128xf32, #tpu.memory_space<vmem>>, vector<32x128xf32>
    %cst_23 = arith.constant dense<0.000000e+00> : vector<8x128xf32>
    %62 = tpu.matmul %58, %61, %cst_23 {dimension_numbers = #tpu.dot_dimension_numbers<[1], [0], [0], [1], [0, 0, 1, 1], [], []>} : vector<8x32xf32>, vector<32x128xf32>, vector<8x128xf32> -> vector<8x128xf32>
    %63 = arith.addf %60, %62 : vector<8x128xf32>
    %64 = vector.extract_strided_slice %63 {offsets = [0, 0], sizes = [8, 32], strides = [1, 1]} : vector<8x128xf32> to vector<8x32xf32>
    %65 = arith.negf %64 : vector<8x32xf32>
    %66 = math.exp %65 : vector<8x32xf32>
    %cst_24 = arith.constant 1.000000e+00 : f32
    %67 = vector.broadcast %cst_24 : f32 to vector<8x32xf32>
    %68 = arith.addf %67, %66 : vector<8x32xf32>
    %69 = arith.divf %67, %68 : vector<8x32xf32>
    %70 = vector.extract_strided_slice %63 {offsets = [0, 32], sizes = [8, 32], strides = [1, 1]} : vector<8x128xf32> to vector<8x32xf32>
    %71 = arith.negf %70 : vector<8x32xf32>
    %72 = math.exp %71 : vector<8x32xf32>
    %cst_25 = arith.constant 1.000000e+00 : f32
    %73 = vector.broadcast %cst_25 : f32 to vector<8x32xf32>
    %74 = arith.addf %73, %72 : vector<8x32xf32>
    %75 = arith.divf %73, %74 : vector<8x32xf32>
    %76 = vector.extract_strided_slice %63 {offsets = [0, 64], sizes = [8, 32], strides = [1, 1]} : vector<8x128xf32> to vector<8x32xf32>
    %77 = math.tanh %76 : vector<8x32xf32>
    %78 = vector.extract_strided_slice %63 {offsets = [0, 96], sizes = [8, 32], strides = [1, 1]} : vector<8x128xf32> to vector<8x32xf32>
    %79 = arith.negf %78 : vector<8x32xf32>
    %80 = math.exp %79 : vector<8x32xf32>
    %cst_26 = arith.constant 1.000000e+00 : f32
    %81 = vector.broadcast %cst_26 : f32 to vector<8x32xf32>
    %82 = arith.addf %81, %80 : vector<8x32xf32>
    %83 = arith.divf %81, %82 : vector<8x32xf32>
    %84 = arith.mulf %75, %56 : vector<8x32xf32>
    %85 = arith.mulf %69, %77 : vector<8x32xf32>
    %86 = arith.addf %84, %85 : vector<8x32xf32>
    %87 = math.tanh %86 : vector<8x32xf32>
    %88 = arith.mulf %83, %87 : vector<8x32xf32>
    %c8 = arith.constant 8 : index
    %c0_27 = arith.constant 0 : index
    %89 = vector.load %arg17[%c8, %c0_27] : memref<64x32xf32, #tpu.memory_space<vmem>>, vector<8x32xf32>
    tpu.vector_store %arg17[%c8, %c0_27], %88 {strides = array<i32>} : memref<64x32xf32, #tpu.memory_space<vmem>>, vector<8x32xf32>,
    %90 = vector.extract_strided_slice %22 {offsets = [16, 0], sizes = [8, 128], strides = [1, 1]} : vector<64x128xf32> to vector<8x128xf32>
    %c0_28 = arith.constant 0 : index
    %c0_29 = arith.constant 0 : index
    %91 = vector.load %arg2[%c0_28, %c0_29] : memref<32x128xf32, #tpu.memory_space<vmem>>, vector<32x128xf32>
    %cst_30 = arith.constant dense<0.000000e+00> : vector<8x128xf32>
    %92 = tpu.matmul %88, %91, %cst_30 {dimension_numbers = #tpu.dot_dimension_numbers<[1], [0], [0], [1], [0, 0, 1, 1], [], []>} : vector<8x32xf32>, vector<32x128xf32>, vector<8x128xf32> -> vector<8x128xf32>
    %93 = arith.addf %90, %92 : vector<8x128xf32>
    %94 = vector.extract_strided_slice %93 {offsets = [0, 0], sizes = [8, 32], strides = [1, 1]} : vector<8x128xf32> to vector<8x32xf32>
    %95 = arith.negf %94 : vector<8x32xf32>
    %96 = math.exp %95 : vector<8x32xf32>
    %cst_31 = arith.constant 1.000000e+00 : f32
    %97 = vector.broadcast %cst_31 : f32 to vector<8x32xf32>
    %98 = arith.addf %97, %96 : vector<8x32xf32>
    %99 = arith.divf %97, %98 : vector<8x32xf32>
    %100 = vector.extract_strided_slice %93 {offsets = [0, 32], sizes = [8, 32], strides = [1, 1]} : vector<8x128xf32> to vector<8x32xf32>
    %101 = arith.negf %100 : vector<8x32xf32>
    %102 = math.exp %101 : vector<8x32xf32>
    %cst_32 = arith.constant 1.000000e+00 : f32
    %103 = vector.broadcast %cst_32 : f32 to vector<8x32xf32>
    %104 = arith.addf %103, %102 : vector<8x32xf32>
    %105 = arith.divf %103, %104 : vector<8x32xf32>
    %106 = vector.extract_strided_slice %93 {offsets = [0, 64], sizes = [8, 32], strides = [1, 1]} : vector<8x128xf32> to vector<8x32xf32>
    %107 = math.tanh %106 : vector<8x32xf32>
    %108 = vector.extract_strided_slice %93 {offsets = [0, 96], sizes = [8, 32], strides = [1, 1]} : vector<8x128xf32> to vector<8x32xf32>
    %109 = arith.negf %108 : vector<8x32xf32>
    %110 = math.exp %109 : vector<8x32xf32>
    %cst_33 = arith.constant 1.000000e+00 : f32
    %111 = vector.broadcast %cst_33 : f32 to vector<8x32xf32>
    %112 = arith.addf %111, %110 : vector<8x32xf32>
    %113 = arith.divf %111, %112 : vector<8x32xf32>
    %114 = arith.mulf %105, %86 : vector<8x32xf32>
    %115 = arith.mulf %99, %107 : vector<8x32xf32>
    %116 = arith.addf %114, %115 : vector<8x32xf32>
    %117 = math.tanh %116 : vector<8x32xf32>
    %118 = arith.mulf %113, %117 : vector<8x32xf32>
    %c16 = arith.constant 16 : index
    %c0_34 = arith.constant 0 : index
    %119 = vector.load %arg17[%c16, %c0_34] : memref<64x32xf32, #tpu.memory_space<vmem>>, vector<8x32xf32>
    tpu.vector_store %arg17[%c16, %c0_34], %118 {strides = array<i32>} : memref<64x32xf32, #tpu.memory_space<vmem>>, vector<8x32xf32>,
    %120 = vector.extract_strided_slice %22 {offsets = [24, 0], sizes = [8, 128], strides = [1, 1]} : vector<64x128xf32> to vector<8x128xf32>
    %c0_35 = arith.constant 0 : index
    %c0_36 = arith.constant 0 : index
    %121 = vector.load %arg2[%c0_35, %c0_36] : memref<32x128xf32, #tpu.memory_space<vmem>>, vector<32x128xf32>
    %cst_37 = arith.constant dense<0.000000e+00> : vector<8x128xf32>
    %122 = tpu.matmul %118, %121, %cst_37 {dimension_numbers = #tpu.dot_dimension_numbers<[1], [0], [0], [1], [0, 0, 1, 1], [], []>} : vector<8x32xf32>, vector<32x128xf32>, vector<8x128xf32> -> vector<8x128xf32>
    %123 = arith.addf %120, %122 : vector<8x128xf32>
    %124 = vector.extract_strided_slice %123 {offsets = [0, 0], sizes = [8, 32], strides = [1, 1]} : vector<8x128xf32> to vector<8x32xf32>
    %125 = arith.negf %124 : vector<8x32xf32>
    %126 = math.exp %125 : vector<8x32xf32>
    %cst_38 = arith.constant 1.000000e+00 : f32
    %127 = vector.broadcast %cst_38 : f32 to vector<8x32xf32>
    %128 = arith.addf %127, %126 : vector<8x32xf32>
    %129 = arith.divf %127, %128 : vector<8x32xf32>
    %130 = vector.extract_strided_slice %123 {offsets = [0, 32], sizes = [8, 32], strides = [1, 1]} : vector<8x128xf32> to vector<8x32xf32>
    %131 = arith.negf %130 : vector<8x32xf32>
    %132 = math.exp %131 : vector<8x32xf32>
    %cst_39 = arith.constant 1.000000e+00 : f32
    %133 = vector.broadcast %cst_39 : f32 to vector<8x32xf32>
    %134 = arith.addf %133, %132 : vector<8x32xf32>
    %135 = arith.divf %133, %134 : vector<8x32xf32>
    %136 = vector.extract_strided_slice %123 {offsets = [0, 64], sizes = [8, 32], strides = [1, 1]} : vector<8x128xf32> to vector<8x32xf32>
    %137 = math.tanh %136 : vector<8x32xf32>
    %138 = vector.extract_strided_slice %123 {offsets = [0, 96], sizes = [8, 32], strides = [1, 1]} : vector<8x128xf32> to vector<8x32xf32>
    %139 = arith.negf %138 : vector<8x32xf32>
    %140 = math.exp %139 : vector<8x32xf32>
    %cst_40 = arith.constant 1.000000e+00 : f32
    %141 = vector.broadcast %cst_40 : f32 to vector<8x32xf32>
    %142 = arith.addf %141, %140 : vector<8x32xf32>
    %143 = arith.divf %141, %142 : vector<8x32xf32>
    %144 = arith.mulf %135, %116 : vector<8x32xf32>
    %145 = arith.mulf %129, %137 : vector<8x32xf32>
    %146 = arith.addf %144, %145 : vector<8x32xf32>
    %147 = math.tanh %146 : vector<8x32xf32>
    %148 = arith.mulf %143, %147 : vector<8x32xf32>
    %c24 = arith.constant 24 : index
    %c0_41 = arith.constant 0 : index
    %149 = vector.load %arg17[%c24, %c0_41] : memref<64x32xf32, #tpu.memory_space<vmem>>, vector<8x32xf32>
    tpu.vector_store %arg17[%c24, %c0_41], %148 {strides = array<i32>} : memref<64x32xf32, #tpu.memory_space<vmem>>, vector<8x32xf32>,
    %150 = vector.extract_strided_slice %22 {offsets = [32, 0], sizes = [8, 128], strides = [1, 1]} : vector<64x128xf32> to vector<8x128xf32>
    %c0_42 = arith.constant 0 : index
    %c0_43 = arith.constant 0 : index
    %151 = vector.load %arg2[%c0_42, %c0_43] : memref<32x128xf32, #tpu.memory_space<vmem>>, vector<32x128xf32>
    %cst_44 = arith.constant dense<0.000000e+00> : vector<8x128xf32>
    %152 = tpu.matmul %148, %151, %cst_44 {dimension_numbers = #tpu.dot_dimension_numbers<[1], [0], [0], [1], [0, 0, 1, 1], [], []>} : vector<8x32xf32>, vector<32x128xf32>, vector<8x128xf32> -> vector<8x128xf32>
    %153 = arith.addf %150, %152 : vector<8x128xf32>
    %154 = vector.extract_strided_slice %153 {offsets = [0, 0], sizes = [8, 32], strides = [1, 1]} : vector<8x128xf32> to vector<8x32xf32>
    %155 = arith.negf %154 : vector<8x32xf32>
    %156 = math.exp %155 : vector<8x32xf32>
    %cst_45 = arith.constant 1.000000e+00 : f32
    %157 = vector.broadcast %cst_45 : f32 to vector<8x32xf32>
    %158 = arith.addf %157, %156 : vector<8x32xf32>
    %159 = arith.divf %157, %158 : vector<8x32xf32>
    %160 = vector.extract_strided_slice %153 {offsets = [0, 32], sizes = [8, 32], strides = [1, 1]} : vector<8x128xf32> to vector<8x32xf32>
    %161 = arith.negf %160 : vector<8x32xf32>
    %162 = math.exp %161 : vector<8x32xf32>
    %cst_46 = arith.constant 1.000000e+00 : f32
    %163 = vector.broadcast %cst_46 : f32 to vector<8x32xf32>
    %164 = arith.addf %163, %162 : vector<8x32xf32>
    %165 = arith.divf %163, %164 : vector<8x32xf32>
    %166 = vector.extract_strided_slice %153 {offsets = [0, 64], sizes = [8, 32], strides = [1, 1]} : vector<8x128xf32> to vector<8x32xf32>
    %167 = math.tanh %166 : vector<8x32xf32>
    %168 = vector.extract_strided_slice %153 {offsets = [0, 96], sizes = [8, 32], strides = [1, 1]} : vector<8x128xf32> to vector<8x32xf32>
    %169 = arith.negf %168 : vector<8x32xf32>
    %170 = math.exp %169 : vector<8x32xf32>
    %cst_47 = arith.constant 1.000000e+00 : f32
    %171 = vector.broadcast %cst_47 : f32 to vector<8x32xf32>
    %172 = arith.addf %171, %170 : vector<8x32xf32>
    %173 = arith.divf %171, %172 : vector<8x32xf32>
    %174 = arith.mulf %165, %146 : vector<8x32xf32>
    %175 = arith.mulf %159, %167 : vector<8x32xf32>
    %176 = arith.addf %174, %175 : vector<8x32xf32>
    %177 = math.tanh %176 : vector<8x32xf32>
    %178 = arith.mulf %173, %177 : vector<8x32xf32>
    %c32 = arith.constant 32 : index
    %c0_48 = arith.constant 0 : index
    %179 = vector.load %arg17[%c32, %c0_48] : memref<64x32xf32, #tpu.memory_space<vmem>>, vector<8x32xf32>
    tpu.vector_store %arg17[%c32, %c0_48], %178 {strides = array<i32>} : memref<64x32xf32, #tpu.memory_space<vmem>>, vector<8x32xf32>,
    %180 = vector.extract_strided_slice %22 {offsets = [40, 0], sizes = [8, 128], strides = [1, 1]} : vector<64x128xf32> to vector<8x128xf32>
    %c0_49 = arith.constant 0 : index
    %c0_50 = arith.constant 0 : index
    %181 = vector.load %arg2[%c0_49, %c0_50] : memref<32x128xf32, #tpu.memory_space<vmem>>, vector<32x128xf32>
    %cst_51 = arith.constant dense<0.000000e+00> : vector<8x128xf32>
    %182 = tpu.matmul %178, %181, %cst_51 {dimension_numbers = #tpu.dot_dimension_numbers<[1], [0], [0], [1], [0, 0, 1, 1], [], []>} : vector<8x32xf32>, vector<32x128xf32>, vector<8x128xf32> -> vector<8x128xf32>
    %183 = arith.addf %180, %182 : vector<8x128xf32>
    %184 = vector.extract_strided_slice %183 {offsets = [0, 0], sizes = [8, 32], strides = [1, 1]} : vector<8x128xf32> to vector<8x32xf32>
    %185 = arith.negf %184 : vector<8x32xf32>
    %186 = math.exp %185 : vector<8x32xf32>
    %cst_52 = arith.constant 1.000000e+00 : f32
    %187 = vector.broadcast %cst_52 : f32 to vector<8x32xf32>
    %188 = arith.addf %187, %186 : vector<8x32xf32>
    %189 = arith.divf %187, %188 : vector<8x32xf32>
    %190 = vector.extract_strided_slice %183 {offsets = [0, 32], sizes = [8, 32], strides = [1, 1]} : vector<8x128xf32> to vector<8x32xf32>
    %191 = arith.negf %190 : vector<8x32xf32>
    %192 = math.exp %191 : vector<8x32xf32>
    %cst_53 = arith.constant 1.000000e+00 : f32
    %193 = vector.broadcast %cst_53 : f32 to vector<8x32xf32>
    %194 = arith.addf %193, %192 : vector<8x32xf32>
    %195 = arith.divf %193, %194 : vector<8x32xf32>
    %196 = vector.extract_strided_slice %183 {offsets = [0, 64], sizes = [8, 32], strides = [1, 1]} : vector<8x128xf32> to vector<8x32xf32>
    %197 = math.tanh %196 : vector<8x32xf32>
    %198 = vector.extract_strided_slice %183 {offsets = [0, 96], sizes = [8, 32], strides = [1, 1]} : vector<8x128xf32> to vector<8x32xf32>
    %199 = arith.negf %198 : vector<8x32xf32>
    %200 = math.exp %199 : vector<8x32xf32>
    %cst_54 = arith.constant 1.000000e+00 : f32
    %201 = vector.broadcast %cst_54 : f32 to vector<8x32xf32>
    %202 = arith.addf %201, %200 : vector<8x32xf32>
    %203 = arith.divf %201, %202 : vector<8x32xf32>
    %204 = arith.mulf %195, %176 : vector<8x32xf32>
    %205 = arith.mulf %189, %197 : vector<8x32xf32>
    %206 = arith.addf %204, %205 : vector<8x32xf32>
    %207 = math.tanh %206 : vector<8x32xf32>
    %208 = arith.mulf %203, %207 : vector<8x32xf32>
    %c40 = arith.constant 40 : index
    %c0_55 = arith.constant 0 : index
    %209 = vector.load %arg17[%c40, %c0_55] : memref<64x32xf32, #tpu.memory_space<vmem>>, vector<8x32xf32>
    tpu.vector_store %arg17[%c40, %c0_55], %208 {strides = array<i32>} : memref<64x32xf32, #tpu.memory_space<vmem>>, vector<8x32xf32>,
    %210 = vector.extract_strided_slice %22 {offsets = [48, 0], sizes = [8, 128], strides = [1, 1]} : vector<64x128xf32> to vector<8x128xf32>
    %c0_56 = arith.constant 0 : index
    %c0_57 = arith.constant 0 : index
    %211 = vector.load %arg2[%c0_56, %c0_57] : memref<32x128xf32, #tpu.memory_space<vmem>>, vector<32x128xf32>
    %cst_58 = arith.constant dense<0.000000e+00> : vector<8x128xf32>
    %212 = tpu.matmul %208, %211, %cst_58 {dimension_numbers = #tpu.dot_dimension_numbers<[1], [0], [0], [1], [0, 0, 1, 1], [], []>} : vector<8x32xf32>, vector<32x128xf32>, vector<8x128xf32> -> vector<8x128xf32>
    %213 = arith.addf %210, %212 : vector<8x128xf32>
    %214 = vector.extract_strided_slice %213 {offsets = [0, 0], sizes = [8, 32], strides = [1, 1]} : vector<8x128xf32> to vector<8x32xf32>
    %215 = arith.negf %214 : vector<8x32xf32>
    %216 = math.exp %215 : vector<8x32xf32>
    %cst_59 = arith.constant 1.000000e+00 : f32
    %217 = vector.broadcast %cst_59 : f32 to vector<8x32xf32>
    %218 = arith.addf %217, %216 : vector<8x32xf32>
    %219 = arith.divf %217, %218 : vector<8x32xf32>
    %220 = vector.extract_strided_slice %213 {offsets = [0, 32], sizes = [8, 32], strides = [1, 1]} : vector<8x128xf32> to vector<8x32xf32>
    %221 = arith.negf %220 : vector<8x32xf32>
    %222 = math.exp %221 : vector<8x32xf32>
    %cst_60 = arith.constant 1.000000e+00 : f32
    %223 = vector.broadcast %cst_60 : f32 to vector<8x32xf32>
    %224 = arith.addf %223, %222 : vector<8x32xf32>
    %225 = arith.divf %223, %224 : vector<8x32xf32>
    %226 = vector.extract_strided_slice %213 {offsets = [0, 64], sizes = [8, 32], strides = [1, 1]} : vector<8x128xf32> to vector<8x32xf32>
    %227 = math.tanh %226 : vector<8x32xf32>
    %228 = vector.extract_strided_slice %213 {offsets = [0, 96], sizes = [8, 32], strides = [1, 1]} : vector<8x128xf32> to vector<8x32xf32>
    %229 = arith.negf %228 : vector<8x32xf32>
    %230 = math.exp %229 : vector<8x32xf32>
    %cst_61 = arith.constant 1.000000e+00 : f32
    %231 = vector.broadcast %cst_61 : f32 to vector<8x32xf32>
    %232 = arith.addf %231, %230 : vector<8x32xf32>
    %233 = arith.divf %231, %232 : vector<8x32xf32>
    %234 = arith.mulf %225, %206 : vector<8x32xf32>
    %235 = arith.mulf %219, %227 : vector<8x32xf32>
    %236 = arith.addf %234, %235 : vector<8x32xf32>
    %237 = math.tanh %236 : vector<8x32xf32>
    %238 = arith.mulf %233, %237 : vector<8x32xf32>
    %c48 = arith.constant 48 : index
    %c0_62 = arith.constant 0 : index
    %239 = vector.load %arg17[%c48, %c0_62] : memref<64x32xf32, #tpu.memory_space<vmem>>, vector<8x32xf32>
    tpu.vector_store %arg17[%c48, %c0_62], %238 {strides = array<i32>} : memref<64x32xf32, #tpu.memory_space<vmem>>, vector<8x32xf32>,
    %240 = vector.extract_strided_slice %22 {offsets = [56, 0], sizes = [8, 128], strides = [1, 1]} : vector<64x128xf32> to vector<8x128xf32>
    %c0_63 = arith.constant 0 : index
    %c0_64 = arith.constant 0 : index
    %241 = vector.load %arg2[%c0_63, %c0_64] : memref<32x128xf32, #tpu.memory_space<vmem>>, vector<32x128xf32>
    %cst_65 = arith.constant dense<0.000000e+00> : vector<8x128xf32>
    %242 = tpu.matmul %238, %241, %cst_65 {dimension_numbers = #tpu.dot_dimension_numbers<[1], [0], [0], [1], [0, 0, 1, 1], [], []>} : vector<8x32xf32>, vector<32x128xf32>, vector<8x128xf32> -> vector<8x128xf32>
    %243 = arith.addf %240, %242 : vector<8x128xf32>
    %244 = vector.extract_strided_slice %243 {offsets = [0, 0], sizes = [8, 32], strides = [1, 1]} : vector<8x128xf32> to vector<8x32xf32>
    %245 = arith.negf %244 : vector<8x32xf32>
    %246 = math.exp %245 : vector<8x32xf32>
    %cst_66 = arith.constant 1.000000e+00 : f32
    %247 = vector.broadcast %cst_66 : f32 to vector<8x32xf32>
    %248 = arith.addf %247, %246 : vector<8x32xf32>
    %249 = arith.divf %247, %248 : vector<8x32xf32>
    %250 = vector.extract_strided_slice %243 {offsets = [0, 32], sizes = [8, 32], strides = [1, 1]} : vector<8x128xf32> to vector<8x32xf32>
    %251 = arith.negf %250 : vector<8x32xf32>
    %252 = math.exp %251 : vector<8x32xf32>
    %cst_67 = arith.constant 1.000000e+00 : f32
    %253 = vector.broadcast %cst_67 : f32 to vector<8x32xf32>
    %254 = arith.addf %253, %252 : vector<8x32xf32>
    %255 = arith.divf %253, %254 : vector<8x32xf32>
    %256 = vector.extract_strided_slice %243 {offsets = [0, 64], sizes = [8, 32], strides = [1, 1]} : vector<8x128xf32> to vector<8x32xf32>
    %257 = math.tanh %256 : vector<8x32xf32>
    %258 = vector.extract_strided_slice %243 {offsets = [0, 96], sizes = [8, 32], strides = [1, 1]} : vector<8x128xf32> to vector<8x32xf32>
    %259 = arith.negf %258 : vector<8x32xf32>
    %260 = math.exp %259 : vector<8x32xf32>
    %cst_68 = arith.constant 1.000000e+00 : f32
    %261 = vector.broadcast %cst_68 : f32 to vector<8x32xf32>
    %262 = arith.addf %261, %260 : vector<8x32xf32>
    %263 = arith.divf %261, %262 : vector<8x32xf32>
    %264 = arith.mulf %255, %236 : vector<8x32xf32>
    %265 = arith.mulf %249, %257 : vector<8x32xf32>
    %266 = arith.addf %264, %265 : vector<8x32xf32>
    %267 = math.tanh %266 : vector<8x32xf32>
    %268 = arith.mulf %263, %267 : vector<8x32xf32>
    %c56 = arith.constant 56 : index
    %c0_69 = arith.constant 0 : index
    %269 = vector.load %arg17[%c56, %c0_69] : memref<64x32xf32, #tpu.memory_space<vmem>>, vector<8x32xf32>
    tpu.vector_store %arg17[%c56, %c0_69], %268 {strides = array<i32>} : memref<64x32xf32, #tpu.memory_space<vmem>>, vector<8x32xf32>,
    %cst_70 = arith.constant 0.000000e+00 : f32
    %270 = vector.broadcast %cst_70 : f32 to vector<8x32xf32>
    %cst_71 = arith.constant 0.000000e+00 : f32
    %271 = vector.broadcast %cst_71 : f32 to vector<8x32xf32>
    %272 = vector.extract_strided_slice %27 {offsets = [56, 0], sizes = [8, 128], strides = [1, 1]} : vector<64x128xf32> to vector<8x128xf32>
    %c0_72 = arith.constant 0 : index
    %c0_73 = arith.constant 0 : index
    %273 = vector.load %arg5[%c0_72, %c0_73] : memref<32x128xf32, #tpu.memory_space<vmem>>, vector<32x128xf32>
    %cst_74 = arith.constant dense<0.000000e+00> : vector<8x128xf32>
    %274 = tpu.matmul %270, %273, %cst_74 {dimension_numbers = #tpu.dot_dimension_numbers<[1], [0], [0], [1], [0, 0, 1, 1], [], []>} : vector<8x32xf32>, vector<32x128xf32>, vector<8x128xf32> -> vector<8x128xf32>
    %275 = arith.addf %272, %274 : vector<8x128xf32>
    %276 = vector.extract_strided_slice %275 {offsets = [0, 0], sizes = [8, 32], strides = [1, 1]} : vector<8x128xf32> to vector<8x32xf32>
    %277 = arith.negf %276 : vector<8x32xf32>
    %278 = math.exp %277 : vector<8x32xf32>
    %cst_75 = arith.constant 1.000000e+00 : f32
    %279 = vector.broadcast %cst_75 : f32 to vector<8x32xf32>
    %280 = arith.addf %279, %278 : vector<8x32xf32>
    %281 = arith.divf %279, %280 : vector<8x32xf32>
    %282 = vector.extract_strided_slice %275 {offsets = [0, 32], sizes = [8, 32], strides = [1, 1]} : vector<8x128xf32> to vector<8x32xf32>
    %283 = arith.negf %282 : vector<8x32xf32>
    %284 = math.exp %283 : vector<8x32xf32>
    %cst_76 = arith.constant 1.000000e+00 : f32
    %285 = vector.broadcast %cst_76 : f32 to vector<8x32xf32>
    %286 = arith.addf %285, %284 : vector<8x32xf32>
    %287 = arith.divf %285, %286 : vector<8x32xf32>
    %288 = vector.extract_strided_slice %275 {offsets = [0, 64], sizes = [8, 32], strides = [1, 1]} : vector<8x128xf32> to vector<8x32xf32>
    %289 = math.tanh %288 : vector<8x32xf32>
    %290 = vector.extract_strided_slice %275 {offsets = [0, 96], sizes = [8, 32], strides = [1, 1]} : vector<8x128xf32> to vector<8x32xf32>
    %291 = arith.negf %290 : vector<8x32xf32>
    %292 = math.exp %291 : vector<8x32xf32>
    %cst_77 = arith.constant 1.000000e+00 : f32
    %293 = vector.broadcast %cst_77 : f32 to vector<8x32xf32>
    %294 = arith.addf %293, %292 : vector<8x32xf32>
    %295 = arith.divf %293, %294 : vector<8x32xf32>
    %296 = arith.mulf %287, %271 : vector<8x32xf32>
    %297 = arith.mulf %281, %289 : vector<8x32xf32>
    %298 = arith.addf %296, %297 : vector<8x32xf32>
    %299 = math.tanh %298 : vector<8x32xf32>
    %300 = arith.mulf %295, %299 : vector<8x32xf32>
    %c56_78 = arith.constant 56 : index
    %c0_79 = arith.constant 0 : index
    %301 = vector.load %arg18[%c56_78, %c0_79] : memref<64x32xf32, #tpu.memory_space<vmem>>, vector<8x32xf32>
    tpu.vector_store %arg18[%c56_78, %c0_79], %300 {strides = array<i32>} : memref<64x32xf32, #tpu.memory_space<vmem>>, vector<8x32xf32>,
    %302 = vector.extract_strided_slice %27 {offsets = [48, 0], sizes = [8, 128], strides = [1, 1]} : vector<64x128xf32> to vector<8x128xf32>
    %c0_80 = arith.constant 0 : index
    %c0_81 = arith.constant 0 : index
    %303 = vector.load %arg5[%c0_80, %c0_81] : memref<32x128xf32, #tpu.memory_space<vmem>>, vector<32x128xf32>
    %cst_82 = arith.constant dense<0.000000e+00> : vector<8x128xf32>
    %304 = tpu.matmul %300, %303, %cst_82 {dimension_numbers = #tpu.dot_dimension_numbers<[1], [0], [0], [1], [0, 0, 1, 1], [], []>} : vector<8x32xf32>, vector<32x128xf32>, vector<8x128xf32> -> vector<8x128xf32>
    %305 = arith.addf %302, %304 : vector<8x128xf32>
    %306 = vector.extract_strided_slice %305 {offsets = [0, 0], sizes = [8, 32], strides = [1, 1]} : vector<8x128xf32> to vector<8x32xf32>
    %307 = arith.negf %306 : vector<8x32xf32>
    %308 = math.exp %307 : vector<8x32xf32>
    %cst_83 = arith.constant 1.000000e+00 : f32
    %309 = vector.broadcast %cst_83 : f32 to vector<8x32xf32>
    %310 = arith.addf %309, %308 : vector<8x32xf32>
    %311 = arith.divf %309, %310 : vector<8x32xf32>
    %312 = vector.extract_strided_slice %305 {offsets = [0, 32], sizes = [8, 32], strides = [1, 1]} : vector<8x128xf32> to vector<8x32xf32>
    %313 = arith.negf %312 : vector<8x32xf32>
    %314 = math.exp %313 : vector<8x32xf32>
    %cst_84 = arith.constant 1.000000e+00 : f32
    %315 = vector.broadcast %cst_84 : f32 to vector<8x32xf32>
    %316 = arith.addf %315, %314 : vector<8x32xf32>
    %317 = arith.divf %315, %316 : vector<8x32xf32>
    %318 = vector.extract_strided_slice %305 {offsets = [0, 64], sizes = [8, 32], strides = [1, 1]} : vector<8x128xf32> to vector<8x32xf32>
    %319 = math.tanh %318 : vector<8x32xf32>
    %320 = vector.extract_strided_slice %305 {offsets = [0, 96], sizes = [8, 32], strides = [1, 1]} : vector<8x128xf32> to vector<8x32xf32>
    %321 = arith.negf %320 : vector<8x32xf32>
    %322 = math.exp %321 : vector<8x32xf32>
    %cst_85 = arith.constant 1.000000e+00 : f32
    %323 = vector.broadcast %cst_85 : f32 to vector<8x32xf32>
    %324 = arith.addf %323, %322 : vector<8x32xf32>
    %325 = arith.divf %323, %324 : vector<8x32xf32>
    %326 = arith.mulf %317, %298 : vector<8x32xf32>
    %327 = arith.mulf %311, %319 : vector<8x32xf32>
    %328 = arith.addf %326, %327 : vector<8x32xf32>
    %329 = math.tanh %328 : vector<8x32xf32>
    %330 = arith.mulf %325, %329 : vector<8x32xf32>
    %c48_86 = arith.constant 48 : index
    %c0_87 = arith.constant 0 : index
    %331 = vector.load %arg18[%c48_86, %c0_87] : memref<64x32xf32, #tpu.memory_space<vmem>>, vector<8x32xf32>
    tpu.vector_store %arg18[%c48_86, %c0_87], %330 {strides = array<i32>} : memref<64x32xf32, #tpu.memory_space<vmem>>, vector<8x32xf32>,
    %332 = vector.extract_strided_slice %27 {offsets = [40, 0], sizes = [8, 128], strides = [1, 1]} : vector<64x128xf32> to vector<8x128xf32>
    %c0_88 = arith.constant 0 : index
    %c0_89 = arith.constant 0 : index
    %333 = vector.load %arg5[%c0_88, %c0_89] : memref<32x128xf32, #tpu.memory_space<vmem>>, vector<32x128xf32>
    %cst_90 = arith.constant dense<0.000000e+00> : vector<8x128xf32>
    %334 = tpu.matmul %330, %333, %cst_90 {dimension_numbers = #tpu.dot_dimension_numbers<[1], [0], [0], [1], [0, 0, 1, 1], [], []>} : vector<8x32xf32>, vector<32x128xf32>, vector<8x128xf32> -> vector<8x128xf32>
    %335 = arith.addf %332, %334 : vector<8x128xf32>
    %336 = vector.extract_strided_slice %335 {offsets = [0, 0], sizes = [8, 32], strides = [1, 1]} : vector<8x128xf32> to vector<8x32xf32>
    %337 = arith.negf %336 : vector<8x32xf32>
    %338 = math.exp %337 : vector<8x32xf32>
    %cst_91 = arith.constant 1.000000e+00 : f32
    %339 = vector.broadcast %cst_91 : f32 to vector<8x32xf32>
    %340 = arith.addf %339, %338 : vector<8x32xf32>
    %341 = arith.divf %339, %340 : vector<8x32xf32>
    %342 = vector.extract_strided_slice %335 {offsets = [0, 32], sizes = [8, 32], strides = [1, 1]} : vector<8x128xf32> to vector<8x32xf32>
    %343 = arith.negf %342 : vector<8x32xf32>
    %344 = math.exp %343 : vector<8x32xf32>
    %cst_92 = arith.constant 1.000000e+00 : f32
    %345 = vector.broadcast %cst_92 : f32 to vector<8x32xf32>
    %346 = arith.addf %345, %344 : vector<8x32xf32>
    %347 = arith.divf %345, %346 : vector<8x32xf32>
    %348 = vector.extract_strided_slice %335 {offsets = [0, 64], sizes = [8, 32], strides = [1, 1]} : vector<8x128xf32> to vector<8x32xf32>
    %349 = math.tanh %348 : vector<8x32xf32>
    %350 = vector.extract_strided_slice %335 {offsets = [0, 96], sizes = [8, 32], strides = [1, 1]} : vector<8x128xf32> to vector<8x32xf32>
    %351 = arith.negf %350 : vector<8x32xf32>
    %352 = math.exp %351 : vector<8x32xf32>
    %cst_93 = arith.constant 1.000000e+00 : f32
    %353 = vector.broadcast %cst_93 : f32 to vector<8x32xf32>
    %354 = arith.addf %353, %352 : vector<8x32xf32>
    %355 = arith.divf %353, %354 : vector<8x32xf32>
    %356 = arith.mulf %347, %328 : vector<8x32xf32>
    %357 = arith.mulf %341, %349 : vector<8x32xf32>
    %358 = arith.addf %356, %357 : vector<8x32xf32>
    %359 = math.tanh %358 : vector<8x32xf32>
    %360 = arith.mulf %355, %359 : vector<8x32xf32>
    %c40_94 = arith.constant 40 : index
    %c0_95 = arith.constant 0 : index
    %361 = vector.load %arg18[%c40_94, %c0_95] : memref<64x32xf32, #tpu.memory_space<vmem>>, vector<8x32xf32>
    tpu.vector_store %arg18[%c40_94, %c0_95], %360 {strides = array<i32>} : memref<64x32xf32, #tpu.memory_space<vmem>>, vector<8x32xf32>,
    %362 = vector.extract_strided_slice %27 {offsets = [32, 0], sizes = [8, 128], strides = [1, 1]} : vector<64x128xf32> to vector<8x128xf32>
    %c0_96 = arith.constant 0 : index
    %c0_97 = arith.constant 0 : index
    %363 = vector.load %arg5[%c0_96, %c0_97] : memref<32x128xf32, #tpu.memory_space<vmem>>, vector<32x128xf32>
    %cst_98 = arith.constant dense<0.000000e+00> : vector<8x128xf32>
    %364 = tpu.matmul %360, %363, %cst_98 {dimension_numbers = #tpu.dot_dimension_numbers<[1], [0], [0], [1], [0, 0, 1, 1], [], []>} : vector<8x32xf32>, vector<32x128xf32>, vector<8x128xf32> -> vector<8x128xf32>
    %365 = arith.addf %362, %364 : vector<8x128xf32>
    %366 = vector.extract_strided_slice %365 {offsets = [0, 0], sizes = [8, 32], strides = [1, 1]} : vector<8x128xf32> to vector<8x32xf32>
    %367 = arith.negf %366 : vector<8x32xf32>
    %368 = math.exp %367 : vector<8x32xf32>
    %cst_99 = arith.constant 1.000000e+00 : f32
    %369 = vector.broadcast %cst_99 : f32 to vector<8x32xf32>
    %370 = arith.addf %369, %368 : vector<8x32xf32>
    %371 = arith.divf %369, %370 : vector<8x32xf32>
    %372 = vector.extract_strided_slice %365 {offsets = [0, 32], sizes = [8, 32], strides = [1, 1]} : vector<8x128xf32> to vector<8x32xf32>
    %373 = arith.negf %372 : vector<8x32xf32>
    %374 = math.exp %373 : vector<8x32xf32>
    %cst_100 = arith.constant 1.000000e+00 : f32
    %375 = vector.broadcast %cst_100 : f32 to vector<8x32xf32>
    %376 = arith.addf %375, %374 : vector<8x32xf32>
    %377 = arith.divf %375, %376 : vector<8x32xf32>
    %378 = vector.extract_strided_slice %365 {offsets = [0, 64], sizes = [8, 32], strides = [1, 1]} : vector<8x128xf32> to vector<8x32xf32>
    %379 = math.tanh %378 : vector<8x32xf32>
    %380 = vector.extract_strided_slice %365 {offsets = [0, 96], sizes = [8, 32], strides = [1, 1]} : vector<8x128xf32> to vector<8x32xf32>
    %381 = arith.negf %380 : vector<8x32xf32>
    %382 = math.exp %381 : vector<8x32xf32>
    %cst_101 = arith.constant 1.000000e+00 : f32
    %383 = vector.broadcast %cst_101 : f32 to vector<8x32xf32>
    %384 = arith.addf %383, %382 : vector<8x32xf32>
    %385 = arith.divf %383, %384 : vector<8x32xf32>
    %386 = arith.mulf %377, %358 : vector<8x32xf32>
    %387 = arith.mulf %371, %379 : vector<8x32xf32>
    %388 = arith.addf %386, %387 : vector<8x32xf32>
    %389 = math.tanh %388 : vector<8x32xf32>
    %390 = arith.mulf %385, %389 : vector<8x32xf32>
    %c32_102 = arith.constant 32 : index
    %c0_103 = arith.constant 0 : index
    %391 = vector.load %arg18[%c32_102, %c0_103] : memref<64x32xf32, #tpu.memory_space<vmem>>, vector<8x32xf32>
    tpu.vector_store %arg18[%c32_102, %c0_103], %390 {strides = array<i32>} : memref<64x32xf32, #tpu.memory_space<vmem>>, vector<8x32xf32>,
    %392 = vector.extract_strided_slice %27 {offsets = [24, 0], sizes = [8, 128], strides = [1, 1]} : vector<64x128xf32> to vector<8x128xf32>
    %c0_104 = arith.constant 0 : index
    %c0_105 = arith.constant 0 : index
    %393 = vector.load %arg5[%c0_104, %c0_105] : memref<32x128xf32, #tpu.memory_space<vmem>>, vector<32x128xf32>
    %cst_106 = arith.constant dense<0.000000e+00> : vector<8x128xf32>
    %394 = tpu.matmul %390, %393, %cst_106 {dimension_numbers = #tpu.dot_dimension_numbers<[1], [0], [0], [1], [0, 0, 1, 1], [], []>} : vector<8x32xf32>, vector<32x128xf32>, vector<8x128xf32> -> vector<8x128xf32>
    %395 = arith.addf %392, %394 : vector<8x128xf32>
    %396 = vector.extract_strided_slice %395 {offsets = [0, 0], sizes = [8, 32], strides = [1, 1]} : vector<8x128xf32> to vector<8x32xf32>
    %397 = arith.negf %396 : vector<8x32xf32>
    %398 = math.exp %397 : vector<8x32xf32>
    %cst_107 = arith.constant 1.000000e+00 : f32
    %399 = vector.broadcast %cst_107 : f32 to vector<8x32xf32>
    %400 = arith.addf %399, %398 : vector<8x32xf32>
    %401 = arith.divf %399, %400 : vector<8x32xf32>
    %402 = vector.extract_strided_slice %395 {offsets = [0, 32], sizes = [8, 32], strides = [1, 1]} : vector<8x128xf32> to vector<8x32xf32>
    %403 = arith.negf %402 : vector<8x32xf32>
    %404 = math.exp %403 : vector<8x32xf32>
    %cst_108 = arith.constant 1.000000e+00 : f32
    %405 = vector.broadcast %cst_108 : f32 to vector<8x32xf32>
    %406 = arith.addf %405, %404 : vector<8x32xf32>
    %407 = arith.divf %405, %406 : vector<8x32xf32>
    %408 = vector.extract_strided_slice %395 {offsets = [0, 64], sizes = [8, 32], strides = [1, 1]} : vector<8x128xf32> to vector<8x32xf32>
    %409 = math.tanh %408 : vector<8x32xf32>
    %410 = vector.extract_strided_slice %395 {offsets = [0, 96], sizes = [8, 32], strides = [1, 1]} : vector<8x128xf32> to vector<8x32xf32>
    %411 = arith.negf %410 : vector<8x32xf32>
    %412 = math.exp %411 : vector<8x32xf32>
    %cst_109 = arith.constant 1.000000e+00 : f32
    %413 = vector.broadcast %cst_109 : f32 to vector<8x32xf32>
    %414 = arith.addf %413, %412 : vector<8x32xf32>
    %415 = arith.divf %413, %414 : vector<8x32xf32>
    %416 = arith.mulf %407, %388 : vector<8x32xf32>
    %417 = arith.mulf %401, %409 : vector<8x32xf32>
    %418 = arith.addf %416, %417 : vector<8x32xf32>
    %419 = math.tanh %418 : vector<8x32xf32>
    %420 = arith.mulf %415, %419 : vector<8x32xf32>
    %c24_110 = arith.constant 24 : index
    %c0_111 = arith.constant 0 : index
    %421 = vector.load %arg18[%c24_110, %c0_111] : memref<64x32xf32, #tpu.memory_space<vmem>>, vector<8x32xf32>
    tpu.vector_store %arg18[%c24_110, %c0_111], %420 {strides = array<i32>} : memref<64x32xf32, #tpu.memory_space<vmem>>, vector<8x32xf32>,
    %422 = vector.extract_strided_slice %27 {offsets = [16, 0], sizes = [8, 128], strides = [1, 1]} : vector<64x128xf32> to vector<8x128xf32>
    %c0_112 = arith.constant 0 : index
    %c0_113 = arith.constant 0 : index
    %423 = vector.load %arg5[%c0_112, %c0_113] : memref<32x128xf32, #tpu.memory_space<vmem>>, vector<32x128xf32>
    %cst_114 = arith.constant dense<0.000000e+00> : vector<8x128xf32>
    %424 = tpu.matmul %420, %423, %cst_114 {dimension_numbers = #tpu.dot_dimension_numbers<[1], [0], [0], [1], [0, 0, 1, 1], [], []>} : vector<8x32xf32>, vector<32x128xf32>, vector<8x128xf32> -> vector<8x128xf32>
    %425 = arith.addf %422, %424 : vector<8x128xf32>
    %426 = vector.extract_strided_slice %425 {offsets = [0, 0], sizes = [8, 32], strides = [1, 1]} : vector<8x128xf32> to vector<8x32xf32>
    %427 = arith.negf %426 : vector<8x32xf32>
    %428 = math.exp %427 : vector<8x32xf32>
    %cst_115 = arith.constant 1.000000e+00 : f32
    %429 = vector.broadcast %cst_115 : f32 to vector<8x32xf32>
    %430 = arith.addf %429, %428 : vector<8x32xf32>
    %431 = arith.divf %429, %430 : vector<8x32xf32>
    %432 = vector.extract_strided_slice %425 {offsets = [0, 32], sizes = [8, 32], strides = [1, 1]} : vector<8x128xf32> to vector<8x32xf32>
    %433 = arith.negf %432 : vector<8x32xf32>
    %434 = math.exp %433 : vector<8x32xf32>
    %cst_116 = arith.constant 1.000000e+00 : f32
    %435 = vector.broadcast %cst_116 : f32 to vector<8x32xf32>
    %436 = arith.addf %435, %434 : vector<8x32xf32>
    %437 = arith.divf %435, %436 : vector<8x32xf32>
    %438 = vector.extract_strided_slice %425 {offsets = [0, 64], sizes = [8, 32], strides = [1, 1]} : vector<8x128xf32> to vector<8x32xf32>
    %439 = math.tanh %438 : vector<8x32xf32>
    %440 = vector.extract_strided_slice %425 {offsets = [0, 96], sizes = [8, 32], strides = [1, 1]} : vector<8x128xf32> to vector<8x32xf32>
    %441 = arith.negf %440 : vector<8x32xf32>
    %442 = math.exp %441 : vector<8x32xf32>
    %cst_117 = arith.constant 1.000000e+00 : f32
    %443 = vector.broadcast %cst_117 : f32 to vector<8x32xf32>
    %444 = arith.addf %443, %442 : vector<8x32xf32>
    %445 = arith.divf %443, %444 : vector<8x32xf32>
    %446 = arith.mulf %437, %418 : vector<8x32xf32>
    %447 = arith.mulf %431, %439 : vector<8x32xf32>
    %448 = arith.addf %446, %447 : vector<8x32xf32>
    %449 = math.tanh %448 : vector<8x32xf32>
    %450 = arith.mulf %445, %449 : vector<8x32xf32>
    %c16_118 = arith.constant 16 : index
    %c0_119 = arith.constant 0 : index
    %451 = vector.load %arg18[%c16_118, %c0_119] : memref<64x32xf32, #tpu.memory_space<vmem>>, vector<8x32xf32>
    tpu.vector_store %arg18[%c16_118, %c0_119], %450 {strides = array<i32>} : memref<64x32xf32, #tpu.memory_space<vmem>>, vector<8x32xf32>,
    %452 = vector.extract_strided_slice %27 {offsets = [8, 0], sizes = [8, 128], strides = [1, 1]} : vector<64x128xf32> to vector<8x128xf32>
    %c0_120 = arith.constant 0 : index
    %c0_121 = arith.constant 0 : index
    %453 = vector.load %arg5[%c0_120, %c0_121] : memref<32x128xf32, #tpu.memory_space<vmem>>, vector<32x128xf32>
    %cst_122 = arith.constant dense<0.000000e+00> : vector<8x128xf32>
    %454 = tpu.matmul %450, %453, %cst_122 {dimension_numbers = #tpu.dot_dimension_numbers<[1], [0], [0], [1], [0, 0, 1, 1], [], []>} : vector<8x32xf32>, vector<32x128xf32>, vector<8x128xf32> -> vector<8x128xf32>
    %455 = arith.addf %452, %454 : vector<8x128xf32>
    %456 = vector.extract_strided_slice %455 {offsets = [0, 0], sizes = [8, 32], strides = [1, 1]} : vector<8x128xf32> to vector<8x32xf32>
    %457 = arith.negf %456 : vector<8x32xf32>
    %458 = math.exp %457 : vector<8x32xf32>
    %cst_123 = arith.constant 1.000000e+00 : f32
    %459 = vector.broadcast %cst_123 : f32 to vector<8x32xf32>
    %460 = arith.addf %459, %458 : vector<8x32xf32>
    %461 = arith.divf %459, %460 : vector<8x32xf32>
    %462 = vector.extract_strided_slice %455 {offsets = [0, 32], sizes = [8, 32], strides = [1, 1]} : vector<8x128xf32> to vector<8x32xf32>
    %463 = arith.negf %462 : vector<8x32xf32>
    %464 = math.exp %463 : vector<8x32xf32>
    %cst_124 = arith.constant 1.000000e+00 : f32
    %465 = vector.broadcast %cst_124 : f32 to vector<8x32xf32>
    %466 = arith.addf %465, %464 : vector<8x32xf32>
    %467 = arith.divf %465, %466 : vector<8x32xf32>
    %468 = vector.extract_strided_slice %455 {offsets = [0, 64], sizes = [8, 32], strides = [1, 1]} : vector<8x128xf32> to vector<8x32xf32>
    %469 = math.tanh %468 : vector<8x32xf32>
    %470 = vector.extract_strided_slice %455 {offsets = [0, 96], sizes = [8, 32], strides = [1, 1]} : vector<8x128xf32> to vector<8x32xf32>
    %471 = arith.negf %470 : vector<8x32xf32>
    %472 = math.exp %471 : vector<8x32xf32>
    %cst_125 = arith.constant 1.000000e+00 : f32
    %473 = vector.broadcast %cst_125 : f32 to vector<8x32xf32>
    %474 = arith.addf %473, %472 : vector<8x32xf32>
    %475 = arith.divf %473, %474 : vector<8x32xf32>
    %476 = arith.mulf %467, %448 : vector<8x32xf32>
    %477 = arith.mulf %461, %469 : vector<8x32xf32>
    %478 = arith.addf %476, %477 : vector<8x32xf32>
    %479 = math.tanh %478 : vector<8x32xf32>
    %480 = arith.mulf %475, %479 : vector<8x32xf32>
    %c8_126 = arith.constant 8 : index
    %c0_127 = arith.constant 0 : index
    %481 = vector.load %arg18[%c8_126, %c0_127] : memref<64x32xf32, #tpu.memory_space<vmem>>, vector<8x32xf32>
    tpu.vector_store %arg18[%c8_126, %c0_127], %480 {strides = array<i32>} : memref<64x32xf32, #tpu.memory_space<vmem>>, vector<8x32xf32>,
    %482 = vector.extract_strided_slice %27 {offsets = [0, 0], sizes = [8, 128], strides = [1, 1]} : vector<64x128xf32> to vector<8x128xf32>
    %c0_128 = arith.constant 0 : index
    %c0_129 = arith.constant 0 : index
    %483 = vector.load %arg5[%c0_128, %c0_129] : memref<32x128xf32, #tpu.memory_space<vmem>>, vector<32x128xf32>
    %cst_130 = arith.constant dense<0.000000e+00> : vector<8x128xf32>
    %484 = tpu.matmul %480, %483, %cst_130 {dimension_numbers = #tpu.dot_dimension_numbers<[1], [0], [0], [1], [0, 0, 1, 1], [], []>} : vector<8x32xf32>, vector<32x128xf32>, vector<8x128xf32> -> vector<8x128xf32>
    %485 = arith.addf %482, %484 : vector<8x128xf32>
    %486 = vector.extract_strided_slice %485 {offsets = [0, 0], sizes = [8, 32], strides = [1, 1]} : vector<8x128xf32> to vector<8x32xf32>
    %487 = arith.negf %486 : vector<8x32xf32>
    %488 = math.exp %487 : vector<8x32xf32>
    %cst_131 = arith.constant 1.000000e+00 : f32
    %489 = vector.broadcast %cst_131 : f32 to vector<8x32xf32>
    %490 = arith.addf %489, %488 : vector<8x32xf32>
    %491 = arith.divf %489, %490 : vector<8x32xf32>
    %492 = vector.extract_strided_slice %485 {offsets = [0, 32], sizes = [8, 32], strides = [1, 1]} : vector<8x128xf32> to vector<8x32xf32>
    %493 = arith.negf %492 : vector<8x32xf32>
    %494 = math.exp %493 : vector<8x32xf32>
    %cst_132 = arith.constant 1.000000e+00 : f32
    %495 = vector.broadcast %cst_132 : f32 to vector<8x32xf32>
    %496 = arith.addf %495, %494 : vector<8x32xf32>
    %497 = arith.divf %495, %496 : vector<8x32xf32>
    %498 = vector.extract_strided_slice %485 {offsets = [0, 64], sizes = [8, 32], strides = [1, 1]} : vector<8x128xf32> to vector<8x32xf32>
    %499 = math.tanh %498 : vector<8x32xf32>
    %500 = vector.extract_strided_slice %485 {offsets = [0, 96], sizes = [8, 32], strides = [1, 1]} : vector<8x128xf32> to vector<8x32xf32>
    %501 = arith.negf %500 : vector<8x32xf32>
    %502 = math.exp %501 : vector<8x32xf32>
    %cst_133 = arith.constant 1.000000e+00 : f32
    %503 = vector.broadcast %cst_133 : f32 to vector<8x32xf32>
    %504 = arith.addf %503, %502 : vector<8x32xf32>
    %505 = arith.divf %503, %504 : vector<8x32xf32>
    %506 = arith.mulf %497, %478 : vector<8x32xf32>
    %507 = arith.mulf %491, %499 : vector<8x32xf32>
    %508 = arith.addf %506, %507 : vector<8x32xf32>
    %509 = math.tanh %508 : vector<8x32xf32>
    %510 = arith.mulf %505, %509 : vector<8x32xf32>
    %c0_134 = arith.constant 0 : index
    %c0_135 = arith.constant 0 : index
    %511 = vector.load %arg18[%c0_134, %c0_135] : memref<64x32xf32, #tpu.memory_space<vmem>>, vector<8x32xf32>
    tpu.vector_store %arg18[%c0_134, %c0_135], %510 {strides = array<i32>} : memref<64x32xf32, #tpu.memory_space<vmem>>, vector<8x32xf32>,
    %c0_136 = arith.constant 0 : index
    %c0_137 = arith.constant 0 : index
    %512 = vector.load %arg17[%c0_136, %c0_137] : memref<64x32xf32, #tpu.memory_space<vmem>>, vector<64x32xf32>
    %c0_138 = arith.constant 0 : index
    %c0_139 = arith.constant 0 : index
    %513 = vector.load %arg18[%c0_138, %c0_139] : memref<64x32xf32, #tpu.memory_space<vmem>>, vector<64x32xf32>
    %c0_140 = arith.constant 0 : index
    %c0_141 = arith.constant 0 : index
    %514 = vector.load %arg7[%c0_140, %c0_141] : memref<64x128xf32, #tpu.memory_space<vmem>>, vector<32x128xf32>
    %cst_142 = arith.constant dense<0.000000e+00> : vector<64x128xf32>
    %515 = tpu.matmul %512, %514, %cst_142 {dimension_numbers = #tpu.dot_dimension_numbers<[1], [0], [0], [1], [0, 0, 1, 1], [], []>} : vector<64x32xf32>, vector<32x128xf32>, vector<64x128xf32> -> vector<64x128xf32>
    %c32_143 = arith.constant 32 : index
    %c0_144 = arith.constant 0 : index
    %516 = vector.load %arg7[%c32_143, %c0_144] : memref<64x128xf32, #tpu.memory_space<vmem>>, vector<32x128xf32>
    %cst_145 = arith.constant dense<0.000000e+00> : vector<64x128xf32>
    %517 = tpu.matmul %513, %516, %cst_145 {dimension_numbers = #tpu.dot_dimension_numbers<[1], [0], [0], [1], [0, 0, 1, 1], [], []>} : vector<64x32xf32>, vector<32x128xf32>, vector<64x128xf32> -> vector<64x128xf32>
    %518 = arith.addf %515, %517 : vector<64x128xf32>
    %c0_146 = arith.constant 0 : index
    %c0_147 = arith.constant 0 : index
    %519 = vector.load %arg9[%c0_146, %c0_147] : memref<1x128xf32, #tpu.memory_space<vmem>>, vector<1x128xf32>
    %520 = vector.broadcast %519 : vector<1x128xf32> to vector<64x128xf32>
    %521 = arith.addf %518, %520 : vector<64x128xf32>
    %c0_148 = arith.constant 0 : index
    %c0_149 = arith.constant 0 : index
    %522 = vector.load %arg10[%c0_148, %c0_149] : memref<64x128xf32, #tpu.memory_space<vmem>>, vector<32x128xf32>
    %cst_150 = arith.constant dense<0.000000e+00> : vector<64x128xf32>
    %523 = tpu.matmul %512, %522, %cst_150 {dimension_numbers = #tpu.dot_dimension_numbers<[1], [0], [0], [1], [0, 0, 1, 1], [], []>} : vector<64x32xf32>, vector<32x128xf32>, vector<64x128xf32> -> vector<64x128xf32>
    %c32_151 = arith.constant 32 : index
    %c0_152 = arith.constant 0 : index
    %524 = vector.load %arg10[%c32_151, %c0_152] : memref<64x128xf32, #tpu.memory_space<vmem>>, vector<32x128xf32>
    %cst_153 = arith.constant dense<0.000000e+00> : vector<64x128xf32>
    %525 = tpu.matmul %513, %524, %cst_153 {dimension_numbers = #tpu.dot_dimension_numbers<[1], [0], [0], [1], [0, 0, 1, 1], [], []>} : vector<64x32xf32>, vector<32x128xf32>, vector<64x128xf32> -> vector<64x128xf32>
    %526 = arith.addf %523, %525 : vector<64x128xf32>
    %c0_154 = arith.constant 0 : index
    %c0_155 = arith.constant 0 : index
    %527 = vector.load %arg12[%c0_154, %c0_155] : memref<1x128xf32, #tpu.memory_space<vmem>>, vector<1x128xf32>
    %528 = vector.broadcast %527 : vector<1x128xf32> to vector<64x128xf32>
    %529 = arith.addf %526, %528 : vector<64x128xf32>
    %cst_156 = arith.constant 0.000000e+00 : f32
    %530 = vector.broadcast %cst_156 : f32 to vector<8x32xf32>
    %cst_157 = arith.constant 0.000000e+00 : f32
    %531 = vector.broadcast %cst_157 : f32 to vector<8x32xf32>
    %cst_158 = arith.constant 0.000000e+00 : f32
    %532 = vector.broadcast %cst_158 : f32 to vector<8x32xf32>
    %533 = vector.extract_strided_slice %521 {offsets = [0, 0], sizes = [8, 128], strides = [1, 1]} : vector<64x128xf32> to vector<8x128xf32>
    %c0_159 = arith.constant 0 : index
    %c0_160 = arith.constant 0 : index
    %534 = vector.load %arg8[%c0_159, %c0_160] : memref<32x128xf32, #tpu.memory_space<vmem>>, vector<32x128xf32>
    %cst_161 = arith.constant dense<0.000000e+00> : vector<8x128xf32>
    %535 = tpu.matmul %530, %534, %cst_161 {dimension_numbers = #tpu.dot_dimension_numbers<[1], [0], [0], [1], [0, 0, 1, 1], [], []>} : vector<8x32xf32>, vector<32x128xf32>, vector<8x128xf32> -> vector<8x128xf32>
    %536 = arith.addf %533, %535 : vector<8x128xf32>
    %537 = vector.extract_strided_slice %536 {offsets = [0, 0], sizes = [8, 32], strides = [1, 1]} : vector<8x128xf32> to vector<8x32xf32>
    %538 = arith.negf %537 : vector<8x32xf32>
    %539 = math.exp %538 : vector<8x32xf32>
    %cst_162 = arith.constant 1.000000e+00 : f32
    %540 = vector.broadcast %cst_162 : f32 to vector<8x32xf32>
    %541 = arith.addf %540, %539 : vector<8x32xf32>
    %542 = arith.divf %540, %541 : vector<8x32xf32>
    %543 = vector.extract_strided_slice %536 {offsets = [0, 32], sizes = [8, 32], strides = [1, 1]} : vector<8x128xf32> to vector<8x32xf32>
    %544 = arith.negf %543 : vector<8x32xf32>
    %545 = math.exp %544 : vector<8x32xf32>
    %cst_163 = arith.constant 1.000000e+00 : f32
    %546 = vector.broadcast %cst_163 : f32 to vector<8x32xf32>
    %547 = arith.addf %546, %545 : vector<8x32xf32>
    %548 = arith.divf %546, %547 : vector<8x32xf32>
    %549 = vector.extract_strided_slice %536 {offsets = [0, 64], sizes = [8, 32], strides = [1, 1]} : vector<8x128xf32> to vector<8x32xf32>
    %550 = math.tanh %549 : vector<8x32xf32>
    %551 = vector.extract_strided_slice %536 {offsets = [0, 96], sizes = [8, 32], strides = [1, 1]} : vector<8x128xf32> to vector<8x32xf32>
    %552 = arith.negf %551 : vector<8x32xf32>
    %553 = math.exp %552 : vector<8x32xf32>
    %cst_164 = arith.constant 1.000000e+00 : f32
    %554 = vector.broadcast %cst_164 : f32 to vector<8x32xf32>
    %555 = arith.addf %554, %553 : vector<8x32xf32>
    %556 = arith.divf %554, %555 : vector<8x32xf32>
    %557 = arith.mulf %548, %531 : vector<8x32xf32>
    %558 = arith.mulf %542, %550 : vector<8x32xf32>
    %559 = arith.addf %557, %558 : vector<8x32xf32>
    %560 = math.tanh %559 : vector<8x32xf32>
    %561 = arith.mulf %556, %560 : vector<8x32xf32>
    %562 = arith.maximumf %532, %561 : vector<8x32xf32>
    %563 = vector.extract_strided_slice %521 {offsets = [8, 0], sizes = [8, 128], strides = [1, 1]} : vector<64x128xf32> to vector<8x128xf32>
    %c0_165 = arith.constant 0 : index
    %c0_166 = arith.constant 0 : index
    %564 = vector.load %arg8[%c0_165, %c0_166] : memref<32x128xf32, #tpu.memory_space<vmem>>, vector<32x128xf32>
    %cst_167 = arith.constant dense<0.000000e+00> : vector<8x128xf32>
    %565 = tpu.matmul %561, %564, %cst_167 {dimension_numbers = #tpu.dot_dimension_numbers<[1], [0], [0], [1], [0, 0, 1, 1], [], []>} : vector<8x32xf32>, vector<32x128xf32>, vector<8x128xf32> -> vector<8x128xf32>
    %566 = arith.addf %563, %565 : vector<8x128xf32>
    %567 = vector.extract_strided_slice %566 {offsets = [0, 0], sizes = [8, 32], strides = [1, 1]} : vector<8x128xf32> to vector<8x32xf32>
    %568 = arith.negf %567 : vector<8x32xf32>
    %569 = math.exp %568 : vector<8x32xf32>
    %cst_168 = arith.constant 1.000000e+00 : f32
    %570 = vector.broadcast %cst_168 : f32 to vector<8x32xf32>
    %571 = arith.addf %570, %569 : vector<8x32xf32>
    %572 = arith.divf %570, %571 : vector<8x32xf32>
    %573 = vector.extract_strided_slice %566 {offsets = [0, 32], sizes = [8, 32], strides = [1, 1]} : vector<8x128xf32> to vector<8x32xf32>
    %574 = arith.negf %573 : vector<8x32xf32>
    %575 = math.exp %574 : vector<8x32xf32>
    %cst_169 = arith.constant 1.000000e+00 : f32
    %576 = vector.broadcast %cst_169 : f32 to vector<8x32xf32>
    %577 = arith.addf %576, %575 : vector<8x32xf32>
    %578 = arith.divf %576, %577 : vector<8x32xf32>
    %579 = vector.extract_strided_slice %566 {offsets = [0, 64], sizes = [8, 32], strides = [1, 1]} : vector<8x128xf32> to vector<8x32xf32>
    %580 = math.tanh %579 : vector<8x32xf32>
    %581 = vector.extract_strided_slice %566 {offsets = [0, 96], sizes = [8, 32], strides = [1, 1]} : vector<8x128xf32> to vector<8x32xf32>
    %582 = arith.negf %581 : vector<8x32xf32>
    %583 = math.exp %582 : vector<8x32xf32>
    %cst_170 = arith.constant 1.000000e+00 : f32
    %584 = vector.broadcast %cst_170 : f32 to vector<8x32xf32>
    %585 = arith.addf %584, %583 : vector<8x32xf32>
    %586 = arith.divf %584, %585 : vector<8x32xf32>
    %587 = arith.mulf %578, %559 : vector<8x32xf32>
    %588 = arith.mulf %572, %580 : vector<8x32xf32>
    %589 = arith.addf %587, %588 : vector<8x32xf32>
    %590 = math.tanh %589 : vector<8x32xf32>
    %591 = arith.mulf %586, %590 : vector<8x32xf32>
    %592 = arith.maximumf %562, %591 : vector<8x32xf32>
    %593 = vector.extract_strided_slice %521 {offsets = [16, 0], sizes = [8, 128], strides = [1, 1]} : vector<64x128xf32> to vector<8x128xf32>
    %c0_171 = arith.constant 0 : index
    %c0_172 = arith.constant 0 : index
    %594 = vector.load %arg8[%c0_171, %c0_172] : memref<32x128xf32, #tpu.memory_space<vmem>>, vector<32x128xf32>
    %cst_173 = arith.constant dense<0.000000e+00> : vector<8x128xf32>
    %595 = tpu.matmul %591, %594, %cst_173 {dimension_numbers = #tpu.dot_dimension_numbers<[1], [0], [0], [1], [0, 0, 1, 1], [], []>} : vector<8x32xf32>, vector<32x128xf32>, vector<8x128xf32> -> vector<8x128xf32>
    %596 = arith.addf %593, %595 : vector<8x128xf32>
    %597 = vector.extract_strided_slice %596 {offsets = [0, 0], sizes = [8, 32], strides = [1, 1]} : vector<8x128xf32> to vector<8x32xf32>
    %598 = arith.negf %597 : vector<8x32xf32>
    %599 = math.exp %598 : vector<8x32xf32>
    %cst_174 = arith.constant 1.000000e+00 : f32
    %600 = vector.broadcast %cst_174 : f32 to vector<8x32xf32>
    %601 = arith.addf %600, %599 : vector<8x32xf32>
    %602 = arith.divf %600, %601 : vector<8x32xf32>
    %603 = vector.extract_strided_slice %596 {offsets = [0, 32], sizes = [8, 32], strides = [1, 1]} : vector<8x128xf32> to vector<8x32xf32>
    %604 = arith.negf %603 : vector<8x32xf32>
    %605 = math.exp %604 : vector<8x32xf32>
    %cst_175 = arith.constant 1.000000e+00 : f32
    %606 = vector.broadcast %cst_175 : f32 to vector<8x32xf32>
    %607 = arith.addf %606, %605 : vector<8x32xf32>
    %608 = arith.divf %606, %607 : vector<8x32xf32>
    %609 = vector.extract_strided_slice %596 {offsets = [0, 64], sizes = [8, 32], strides = [1, 1]} : vector<8x128xf32> to vector<8x32xf32>
    %610 = math.tanh %609 : vector<8x32xf32>
    %611 = vector.extract_strided_slice %596 {offsets = [0, 96], sizes = [8, 32], strides = [1, 1]} : vector<8x128xf32> to vector<8x32xf32>
    %612 = arith.negf %611 : vector<8x32xf32>
    %613 = math.exp %612 : vector<8x32xf32>
    %cst_176 = arith.constant 1.000000e+00 : f32
    %614 = vector.broadcast %cst_176 : f32 to vector<8x32xf32>
    %615 = arith.addf %614, %613 : vector<8x32xf32>
    %616 = arith.divf %614, %615 : vector<8x32xf32>
    %617 = arith.mulf %608, %589 : vector<8x32xf32>
    %618 = arith.mulf %602, %610 : vector<8x32xf32>
    %619 = arith.addf %617, %618 : vector<8x32xf32>
    %620 = math.tanh %619 : vector<8x32xf32>
    %621 = arith.mulf %616, %620 : vector<8x32xf32>
    %622 = arith.maximumf %592, %621 : vector<8x32xf32>
    %623 = vector.extract_strided_slice %521 {offsets = [24, 0], sizes = [8, 128], strides = [1, 1]} : vector<64x128xf32> to vector<8x128xf32>
    %c0_177 = arith.constant 0 : index
    %c0_178 = arith.constant 0 : index
    %624 = vector.load %arg8[%c0_177, %c0_178] : memref<32x128xf32, #tpu.memory_space<vmem>>, vector<32x128xf32>
    %cst_179 = arith.constant dense<0.000000e+00> : vector<8x128xf32>
    %625 = tpu.matmul %621, %624, %cst_179 {dimension_numbers = #tpu.dot_dimension_numbers<[1], [0], [0], [1], [0, 0, 1, 1], [], []>} : vector<8x32xf32>, vector<32x128xf32>, vector<8x128xf32> -> vector<8x128xf32>
    %626 = arith.addf %623, %625 : vector<8x128xf32>
    %627 = vector.extract_strided_slice %626 {offsets = [0, 0], sizes = [8, 32], strides = [1, 1]} : vector<8x128xf32> to vector<8x32xf32>
    %628 = arith.negf %627 : vector<8x32xf32>
    %629 = math.exp %628 : vector<8x32xf32>
    %cst_180 = arith.constant 1.000000e+00 : f32
    %630 = vector.broadcast %cst_180 : f32 to vector<8x32xf32>
    %631 = arith.addf %630, %629 : vector<8x32xf32>
    %632 = arith.divf %630, %631 : vector<8x32xf32>
    %633 = vector.extract_strided_slice %626 {offsets = [0, 32], sizes = [8, 32], strides = [1, 1]} : vector<8x128xf32> to vector<8x32xf32>
    %634 = arith.negf %633 : vector<8x32xf32>
    %635 = math.exp %634 : vector<8x32xf32>
    %cst_181 = arith.constant 1.000000e+00 : f32
    %636 = vector.broadcast %cst_181 : f32 to vector<8x32xf32>
    %637 = arith.addf %636, %635 : vector<8x32xf32>
    %638 = arith.divf %636, %637 : vector<8x32xf32>
    %639 = vector.extract_strided_slice %626 {offsets = [0, 64], sizes = [8, 32], strides = [1, 1]} : vector<8x128xf32> to vector<8x32xf32>
    %640 = math.tanh %639 : vector<8x32xf32>
    %641 = vector.extract_strided_slice %626 {offsets = [0, 96], sizes = [8, 32], strides = [1, 1]} : vector<8x128xf32> to vector<8x32xf32>
    %642 = arith.negf %641 : vector<8x32xf32>
    %643 = math.exp %642 : vector<8x32xf32>
    %cst_182 = arith.constant 1.000000e+00 : f32
    %644 = vector.broadcast %cst_182 : f32 to vector<8x32xf32>
    %645 = arith.addf %644, %643 : vector<8x32xf32>
    %646 = arith.divf %644, %645 : vector<8x32xf32>
    %647 = arith.mulf %638, %619 : vector<8x32xf32>
    %648 = arith.mulf %632, %640 : vector<8x32xf32>
    %649 = arith.addf %647, %648 : vector<8x32xf32>
    %650 = math.tanh %649 : vector<8x32xf32>
    %651 = arith.mulf %646, %650 : vector<8x32xf32>
    %652 = arith.maximumf %622, %651 : vector<8x32xf32>
    %653 = vector.extract_strided_slice %521 {offsets = [32, 0], sizes = [8, 128], strides = [1, 1]} : vector<64x128xf32> to vector<8x128xf32>
    %c0_183 = arith.constant 0 : index
    %c0_184 = arith.constant 0 : index
    %654 = vector.load %arg8[%c0_183, %c0_184] : memref<32x128xf32, #tpu.memory_space<vmem>>, vector<32x128xf32>
    %cst_185 = arith.constant dense<0.000000e+00> : vector<8x128xf32>
    %655 = tpu.matmul %651, %654, %cst_185 {dimension_numbers = #tpu.dot_dimension_numbers<[1], [0], [0], [1], [0, 0, 1, 1], [], []>} : vector<8x32xf32>, vector<32x128xf32>, vector<8x128xf32> -> vector<8x128xf32>
    %656 = arith.addf %653, %655 : vector<8x128xf32>
    %657 = vector.extract_strided_slice %656 {offsets = [0, 0], sizes = [8, 32], strides = [1, 1]} : vector<8x128xf32> to vector<8x32xf32>
    %658 = arith.negf %657 : vector<8x32xf32>
    %659 = math.exp %658 : vector<8x32xf32>
    %cst_186 = arith.constant 1.000000e+00 : f32
    %660 = vector.broadcast %cst_186 : f32 to vector<8x32xf32>
    %661 = arith.addf %660, %659 : vector<8x32xf32>
    %662 = arith.divf %660, %661 : vector<8x32xf32>
    %663 = vector.extract_strided_slice %656 {offsets = [0, 32], sizes = [8, 32], strides = [1, 1]} : vector<8x128xf32> to vector<8x32xf32>
    %664 = arith.negf %663 : vector<8x32xf32>
    %665 = math.exp %664 : vector<8x32xf32>
    %cst_187 = arith.constant 1.000000e+00 : f32
    %666 = vector.broadcast %cst_187 : f32 to vector<8x32xf32>
    %667 = arith.addf %666, %665 : vector<8x32xf32>
    %668 = arith.divf %666, %667 : vector<8x32xf32>
    %669 = vector.extract_strided_slice %656 {offsets = [0, 64], sizes = [8, 32], strides = [1, 1]} : vector<8x128xf32> to vector<8x32xf32>
    %670 = math.tanh %669 : vector<8x32xf32>
    %671 = vector.extract_strided_slice %656 {offsets = [0, 96], sizes = [8, 32], strides = [1, 1]} : vector<8x128xf32> to vector<8x32xf32>
    %672 = arith.negf %671 : vector<8x32xf32>
    %673 = math.exp %672 : vector<8x32xf32>
    %cst_188 = arith.constant 1.000000e+00 : f32
    %674 = vector.broadcast %cst_188 : f32 to vector<8x32xf32>
    %675 = arith.addf %674, %673 : vector<8x32xf32>
    %676 = arith.divf %674, %675 : vector<8x32xf32>
    %677 = arith.mulf %668, %649 : vector<8x32xf32>
    %678 = arith.mulf %662, %670 : vector<8x32xf32>
    %679 = arith.addf %677, %678 : vector<8x32xf32>
    %680 = math.tanh %679 : vector<8x32xf32>
    %681 = arith.mulf %676, %680 : vector<8x32xf32>
    %682 = arith.maximumf %652, %681 : vector<8x32xf32>
    %683 = vector.extract_strided_slice %521 {offsets = [40, 0], sizes = [8, 128], strides = [1, 1]} : vector<64x128xf32> to vector<8x128xf32>
    %c0_189 = arith.constant 0 : index
    %c0_190 = arith.constant 0 : index
    %684 = vector.load %arg8[%c0_189, %c0_190] : memref<32x128xf32, #tpu.memory_space<vmem>>, vector<32x128xf32>
    %cst_191 = arith.constant dense<0.000000e+00> : vector<8x128xf32>
    %685 = tpu.matmul %681, %684, %cst_191 {dimension_numbers = #tpu.dot_dimension_numbers<[1], [0], [0], [1], [0, 0, 1, 1], [], []>} : vector<8x32xf32>, vector<32x128xf32>, vector<8x128xf32> -> vector<8x128xf32>
    %686 = arith.addf %683, %685 : vector<8x128xf32>
    %687 = vector.extract_strided_slice %686 {offsets = [0, 0], sizes = [8, 32], strides = [1, 1]} : vector<8x128xf32> to vector<8x32xf32>
    %688 = arith.negf %687 : vector<8x32xf32>
    %689 = math.exp %688 : vector<8x32xf32>
    %cst_192 = arith.constant 1.000000e+00 : f32
    %690 = vector.broadcast %cst_192 : f32 to vector<8x32xf32>
    %691 = arith.addf %690, %689 : vector<8x32xf32>
    %692 = arith.divf %690, %691 : vector<8x32xf32>
    %693 = vector.extract_strided_slice %686 {offsets = [0, 32], sizes = [8, 32], strides = [1, 1]} : vector<8x128xf32> to vector<8x32xf32>
    %694 = arith.negf %693 : vector<8x32xf32>
    %695 = math.exp %694 : vector<8x32xf32>
    %cst_193 = arith.constant 1.000000e+00 : f32
    %696 = vector.broadcast %cst_193 : f32 to vector<8x32xf32>
    %697 = arith.addf %696, %695 : vector<8x32xf32>
    %698 = arith.divf %696, %697 : vector<8x32xf32>
    %699 = vector.extract_strided_slice %686 {offsets = [0, 64], sizes = [8, 32], strides = [1, 1]} : vector<8x128xf32> to vector<8x32xf32>
    %700 = math.tanh %699 : vector<8x32xf32>
    %701 = vector.extract_strided_slice %686 {offsets = [0, 96], sizes = [8, 32], strides = [1, 1]} : vector<8x128xf32> to vector<8x32xf32>
    %702 = arith.negf %701 : vector<8x32xf32>
    %703 = math.exp %702 : vector<8x32xf32>
    %cst_194 = arith.constant 1.000000e+00 : f32
    %704 = vector.broadcast %cst_194 : f32 to vector<8x32xf32>
    %705 = arith.addf %704, %703 : vector<8x32xf32>
    %706 = arith.divf %704, %705 : vector<8x32xf32>
    %707 = arith.mulf %698, %679 : vector<8x32xf32>
    %708 = arith.mulf %692, %700 : vector<8x32xf32>
    %709 = arith.addf %707, %708 : vector<8x32xf32>
    %710 = math.tanh %709 : vector<8x32xf32>
    %711 = arith.mulf %706, %710 : vector<8x32xf32>
    %712 = arith.maximumf %682, %711 : vector<8x32xf32>
    %713 = vector.extract_strided_slice %521 {offsets = [48, 0], sizes = [8, 128], strides = [1, 1]} : vector<64x128xf32> to vector<8x128xf32>
    %c0_195 = arith.constant 0 : index
    %c0_196 = arith.constant 0 : index
    %714 = vector.load %arg8[%c0_195, %c0_196] : memref<32x128xf32, #tpu.memory_space<vmem>>, vector<32x128xf32>
    %cst_197 = arith.constant dense<0.000000e+00> : vector<8x128xf32>
    %715 = tpu.matmul %711, %714, %cst_197 {dimension_numbers = #tpu.dot_dimension_numbers<[1], [0], [0], [1], [0, 0, 1, 1], [], []>} : vector<8x32xf32>, vector<32x128xf32>, vector<8x128xf32> -> vector<8x128xf32>
    %716 = arith.addf %713, %715 : vector<8x128xf32>
    %717 = vector.extract_strided_slice %716 {offsets = [0, 0], sizes = [8, 32], strides = [1, 1]} : vector<8x128xf32> to vector<8x32xf32>
    %718 = arith.negf %717 : vector<8x32xf32>
    %719 = math.exp %718 : vector<8x32xf32>
    %cst_198 = arith.constant 1.000000e+00 : f32
    %720 = vector.broadcast %cst_198 : f32 to vector<8x32xf32>
    %721 = arith.addf %720, %719 : vector<8x32xf32>
    %722 = arith.divf %720, %721 : vector<8x32xf32>
    %723 = vector.extract_strided_slice %716 {offsets = [0, 32], sizes = [8, 32], strides = [1, 1]} : vector<8x128xf32> to vector<8x32xf32>
    %724 = arith.negf %723 : vector<8x32xf32>
    %725 = math.exp %724 : vector<8x32xf32>
    %cst_199 = arith.constant 1.000000e+00 : f32
    %726 = vector.broadcast %cst_199 : f32 to vector<8x32xf32>
    %727 = arith.addf %726, %725 : vector<8x32xf32>
    %728 = arith.divf %726, %727 : vector<8x32xf32>
    %729 = vector.extract_strided_slice %716 {offsets = [0, 64], sizes = [8, 32], strides = [1, 1]} : vector<8x128xf32> to vector<8x32xf32>
    %730 = math.tanh %729 : vector<8x32xf32>
    %731 = vector.extract_strided_slice %716 {offsets = [0, 96], sizes = [8, 32], strides = [1, 1]} : vector<8x128xf32> to vector<8x32xf32>
    %732 = arith.negf %731 : vector<8x32xf32>
    %733 = math.exp %732 : vector<8x32xf32>
    %cst_200 = arith.constant 1.000000e+00 : f32
    %734 = vector.broadcast %cst_200 : f32 to vector<8x32xf32>
    %735 = arith.addf %734, %733 : vector<8x32xf32>
    %736 = arith.divf %734, %735 : vector<8x32xf32>
    %737 = arith.mulf %728, %709 : vector<8x32xf32>
    %738 = arith.mulf %722, %730 : vector<8x32xf32>
    %739 = arith.addf %737, %738 : vector<8x32xf32>
    %740 = math.tanh %739 : vector<8x32xf32>
    %741 = arith.mulf %736, %740 : vector<8x32xf32>
    %742 = arith.maximumf %712, %741 : vector<8x32xf32>
    %743 = vector.extract_strided_slice %521 {offsets = [56, 0], sizes = [8, 128], strides = [1, 1]} : vector<64x128xf32> to vector<8x128xf32>
    %c0_201 = arith.constant 0 : index
    %c0_202 = arith.constant 0 : index
    %744 = vector.load %arg8[%c0_201, %c0_202] : memref<32x128xf32, #tpu.memory_space<vmem>>, vector<32x128xf32>
    %cst_203 = arith.constant dense<0.000000e+00> : vector<8x128xf32>
    %745 = tpu.matmul %741, %744, %cst_203 {dimension_numbers = #tpu.dot_dimension_numbers<[1], [0], [0], [1], [0, 0, 1, 1], [], []>} : vector<8x32xf32>, vector<32x128xf32>, vector<8x128xf32> -> vector<8x128xf32>
    %746 = arith.addf %743, %745 : vector<8x128xf32>
    %747 = vector.extract_strided_slice %746 {offsets = [0, 0], sizes = [8, 32], strides = [1, 1]} : vector<8x128xf32> to vector<8x32xf32>
    %748 = arith.negf %747 : vector<8x32xf32>
    %749 = math.exp %748 : vector<8x32xf32>
    %cst_204 = arith.constant 1.000000e+00 : f32
    %750 = vector.broadcast %cst_204 : f32 to vector<8x32xf32>
    %751 = arith.addf %750, %749 : vector<8x32xf32>
    %752 = arith.divf %750, %751 : vector<8x32xf32>
    %753 = vector.extract_strided_slice %746 {offsets = [0, 32], sizes = [8, 32], strides = [1, 1]} : vector<8x128xf32> to vector<8x32xf32>
    %754 = arith.negf %753 : vector<8x32xf32>
    %755 = math.exp %754 : vector<8x32xf32>
    %cst_205 = arith.constant 1.000000e+00 : f32
    %756 = vector.broadcast %cst_205 : f32 to vector<8x32xf32>
    %757 = arith.addf %756, %755 : vector<8x32xf32>
    %758 = arith.divf %756, %757 : vector<8x32xf32>
    %759 = vector.extract_strided_slice %746 {offsets = [0, 64], sizes = [8, 32], strides = [1, 1]} : vector<8x128xf32> to vector<8x32xf32>
    %760 = math.tanh %759 : vector<8x32xf32>
    %761 = vector.extract_strided_slice %746 {offsets = [0, 96], sizes = [8, 32], strides = [1, 1]} : vector<8x128xf32> to vector<8x32xf32>
    %762 = arith.negf %761 : vector<8x32xf32>
    %763 = math.exp %762 : vector<8x32xf32>
    %cst_206 = arith.constant 1.000000e+00 : f32
    %764 = vector.broadcast %cst_206 : f32 to vector<8x32xf32>
    %765 = arith.addf %764, %763 : vector<8x32xf32>
    %766 = arith.divf %764, %765 : vector<8x32xf32>
    %767 = arith.mulf %758, %739 : vector<8x32xf32>
    %768 = arith.mulf %752, %760 : vector<8x32xf32>
    %769 = arith.addf %767, %768 : vector<8x32xf32>
    %770 = math.tanh %769 : vector<8x32xf32>
    %771 = arith.mulf %766, %770 : vector<8x32xf32>
    %772 = arith.maximumf %742, %771 : vector<8x32xf32>
    %cst_207 = arith.constant 0.000000e+00 : f32
    %773 = vector.broadcast %cst_207 : f32 to vector<8x32xf32>
    %cst_208 = arith.constant 0.000000e+00 : f32
    %774 = vector.broadcast %cst_208 : f32 to vector<8x32xf32>
    %cst_209 = arith.constant 0.000000e+00 : f32
    %775 = vector.broadcast %cst_209 : f32 to vector<8x32xf32>
    %776 = vector.extract_strided_slice %529 {offsets = [56, 0], sizes = [8, 128], strides = [1, 1]} : vector<64x128xf32> to vector<8x128xf32>
    %c0_210 = arith.constant 0 : index
    %c0_211 = arith.constant 0 : index
    %777 = vector.load %arg11[%c0_210, %c0_211] : memref<32x128xf32, #tpu.memory_space<vmem>>, vector<32x128xf32>
    %cst_212 = arith.constant dense<0.000000e+00> : vector<8x128xf32>
    %778 = tpu.matmul %773, %777, %cst_212 {dimension_numbers = #tpu.dot_dimension_numbers<[1], [0], [0], [1], [0, 0, 1, 1], [], []>} : vector<8x32xf32>, vector<32x128xf32>, vector<8x128xf32> -> vector<8x128xf32>
    %779 = arith.addf %776, %778 : vector<8x128xf32>
    %780 = vector.extract_strided_slice %779 {offsets = [0, 0], sizes = [8, 32], strides = [1, 1]} : vector<8x128xf32> to vector<8x32xf32>
    %781 = arith.negf %780 : vector<8x32xf32>
    %782 = math.exp %781 : vector<8x32xf32>
    %cst_213 = arith.constant 1.000000e+00 : f32
    %783 = vector.broadcast %cst_213 : f32 to vector<8x32xf32>
    %784 = arith.addf %783, %782 : vector<8x32xf32>
    %785 = arith.divf %783, %784 : vector<8x32xf32>
    %786 = vector.extract_strided_slice %779 {offsets = [0, 32], sizes = [8, 32], strides = [1, 1]} : vector<8x128xf32> to vector<8x32xf32>
    %787 = arith.negf %786 : vector<8x32xf32>
    %788 = math.exp %787 : vector<8x32xf32>
    %cst_214 = arith.constant 1.000000e+00 : f32
    %789 = vector.broadcast %cst_214 : f32 to vector<8x32xf32>
    %790 = arith.addf %789, %788 : vector<8x32xf32>
    %791 = arith.divf %789, %790 : vector<8x32xf32>
    %792 = vector.extract_strided_slice %779 {offsets = [0, 64], sizes = [8, 32], strides = [1, 1]} : vector<8x128xf32> to vector<8x32xf32>
    %793 = math.tanh %792 : vector<8x32xf32>
    %794 = vector.extract_strided_slice %779 {offsets = [0, 96], sizes = [8, 32], strides = [1, 1]} : vector<8x128xf32> to vector<8x32xf32>
    %795 = arith.negf %794 : vector<8x32xf32>
    %796 = math.exp %795 : vector<8x32xf32>
    %cst_215 = arith.constant 1.000000e+00 : f32
    %797 = vector.broadcast %cst_215 : f32 to vector<8x32xf32>
    %798 = arith.addf %797, %796 : vector<8x32xf32>
    %799 = arith.divf %797, %798 : vector<8x32xf32>
    %800 = arith.mulf %791, %774 : vector<8x32xf32>
    %801 = arith.mulf %785, %793 : vector<8x32xf32>
    %802 = arith.addf %800, %801 : vector<8x32xf32>
    %803 = math.tanh %802 : vector<8x32xf32>
    %804 = arith.mulf %799, %803 : vector<8x32xf32>
    %805 = arith.maximumf %775, %804 : vector<8x32xf32>
    %806 = vector.extract_strided_slice %529 {offsets = [48, 0], sizes = [8, 128], strides = [1, 1]} : vector<64x128xf32> to vector<8x128xf32>
    %c0_216 = arith.constant 0 : index
    %c0_217 = arith.constant 0 : index
    %807 = vector.load %arg11[%c0_216, %c0_217] : memref<32x128xf32, #tpu.memory_space<vmem>>, vector<32x128xf32>
    %cst_218 = arith.constant dense<0.000000e+00> : vector<8x128xf32>
    %808 = tpu.matmul %804, %807, %cst_218 {dimension_numbers = #tpu.dot_dimension_numbers<[1], [0], [0], [1], [0, 0, 1, 1], [], []>} : vector<8x32xf32>, vector<32x128xf32>, vector<8x128xf32> -> vector<8x128xf32>
    %809 = arith.addf %806, %808 : vector<8x128xf32>
    %810 = vector.extract_strided_slice %809 {offsets = [0, 0], sizes = [8, 32], strides = [1, 1]} : vector<8x128xf32> to vector<8x32xf32>
    %811 = arith.negf %810 : vector<8x32xf32>
    %812 = math.exp %811 : vector<8x32xf32>
    %cst_219 = arith.constant 1.000000e+00 : f32
    %813 = vector.broadcast %cst_219 : f32 to vector<8x32xf32>
    %814 = arith.addf %813, %812 : vector<8x32xf32>
    %815 = arith.divf %813, %814 : vector<8x32xf32>
    %816 = vector.extract_strided_slice %809 {offsets = [0, 32], sizes = [8, 32], strides = [1, 1]} : vector<8x128xf32> to vector<8x32xf32>
    %817 = arith.negf %816 : vector<8x32xf32>
    %818 = math.exp %817 : vector<8x32xf32>
    %cst_220 = arith.constant 1.000000e+00 : f32
    %819 = vector.broadcast %cst_220 : f32 to vector<8x32xf32>
    %820 = arith.addf %819, %818 : vector<8x32xf32>
    %821 = arith.divf %819, %820 : vector<8x32xf32>
    %822 = vector.extract_strided_slice %809 {offsets = [0, 64], sizes = [8, 32], strides = [1, 1]} : vector<8x128xf32> to vector<8x32xf32>
    %823 = math.tanh %822 : vector<8x32xf32>
    %824 = vector.extract_strided_slice %809 {offsets = [0, 96], sizes = [8, 32], strides = [1, 1]} : vector<8x128xf32> to vector<8x32xf32>
    %825 = arith.negf %824 : vector<8x32xf32>
    %826 = math.exp %825 : vector<8x32xf32>
    %cst_221 = arith.constant 1.000000e+00 : f32
    %827 = vector.broadcast %cst_221 : f32 to vector<8x32xf32>
    %828 = arith.addf %827, %826 : vector<8x32xf32>
    %829 = arith.divf %827, %828 : vector<8x32xf32>
    %830 = arith.mulf %821, %802 : vector<8x32xf32>
    %831 = arith.mulf %815, %823 : vector<8x32xf32>
    %832 = arith.addf %830, %831 : vector<8x32xf32>
    %833 = math.tanh %832 : vector<8x32xf32>
    %834 = arith.mulf %829, %833 : vector<8x32xf32>
    %835 = arith.maximumf %805, %834 : vector<8x32xf32>
    %836 = vector.extract_strided_slice %529 {offsets = [40, 0], sizes = [8, 128], strides = [1, 1]} : vector<64x128xf32> to vector<8x128xf32>
    %c0_222 = arith.constant 0 : index
    %c0_223 = arith.constant 0 : index
    %837 = vector.load %arg11[%c0_222, %c0_223] : memref<32x128xf32, #tpu.memory_space<vmem>>, vector<32x128xf32>
    %cst_224 = arith.constant dense<0.000000e+00> : vector<8x128xf32>
    %838 = tpu.matmul %834, %837, %cst_224 {dimension_numbers = #tpu.dot_dimension_numbers<[1], [0], [0], [1], [0, 0, 1, 1], [], []>} : vector<8x32xf32>, vector<32x128xf32>, vector<8x128xf32> -> vector<8x128xf32>
    %839 = arith.addf %836, %838 : vector<8x128xf32>
    %840 = vector.extract_strided_slice %839 {offsets = [0, 0], sizes = [8, 32], strides = [1, 1]} : vector<8x128xf32> to vector<8x32xf32>
    %841 = arith.negf %840 : vector<8x32xf32>
    %842 = math.exp %841 : vector<8x32xf32>
    %cst_225 = arith.constant 1.000000e+00 : f32
    %843 = vector.broadcast %cst_225 : f32 to vector<8x32xf32>
    %844 = arith.addf %843, %842 : vector<8x32xf32>
    %845 = arith.divf %843, %844 : vector<8x32xf32>
    %846 = vector.extract_strided_slice %839 {offsets = [0, 32], sizes = [8, 32], strides = [1, 1]} : vector<8x128xf32> to vector<8x32xf32>
    %847 = arith.negf %846 : vector<8x32xf32>
    %848 = math.exp %847 : vector<8x32xf32>
    %cst_226 = arith.constant 1.000000e+00 : f32
    %849 = vector.broadcast %cst_226 : f32 to vector<8x32xf32>
    %850 = arith.addf %849, %848 : vector<8x32xf32>
    %851 = arith.divf %849, %850 : vector<8x32xf32>
    %852 = vector.extract_strided_slice %839 {offsets = [0, 64], sizes = [8, 32], strides = [1, 1]} : vector<8x128xf32> to vector<8x32xf32>
    %853 = math.tanh %852 : vector<8x32xf32>
    %854 = vector.extract_strided_slice %839 {offsets = [0, 96], sizes = [8, 32], strides = [1, 1]} : vector<8x128xf32> to vector<8x32xf32>
    %855 = arith.negf %854 : vector<8x32xf32>
    %856 = math.exp %855 : vector<8x32xf32>
    %cst_227 = arith.constant 1.000000e+00 : f32
    %857 = vector.broadcast %cst_227 : f32 to vector<8x32xf32>
    %858 = arith.addf %857, %856 : vector<8x32xf32>
    %859 = arith.divf %857, %858 : vector<8x32xf32>
    %860 = arith.mulf %851, %832 : vector<8x32xf32>
    %861 = arith.mulf %845, %853 : vector<8x32xf32>
    %862 = arith.addf %860, %861 : vector<8x32xf32>
    %863 = math.tanh %862 : vector<8x32xf32>
    %864 = arith.mulf %859, %863 : vector<8x32xf32>
    %865 = arith.maximumf %835, %864 : vector<8x32xf32>
    %866 = vector.extract_strided_slice %529 {offsets = [32, 0], sizes = [8, 128], strides = [1, 1]} : vector<64x128xf32> to vector<8x128xf32>
    %c0_228 = arith.constant 0 : index
    %c0_229 = arith.constant 0 : index
    %867 = vector.load %arg11[%c0_228, %c0_229] : memref<32x128xf32, #tpu.memory_space<vmem>>, vector<32x128xf32>
    %cst_230 = arith.constant dense<0.000000e+00> : vector<8x128xf32>
    %868 = tpu.matmul %864, %867, %cst_230 {dimension_numbers = #tpu.dot_dimension_numbers<[1], [0], [0], [1], [0, 0, 1, 1], [], []>} : vector<8x32xf32>, vector<32x128xf32>, vector<8x128xf32> -> vector<8x128xf32>
    %869 = arith.addf %866, %868 : vector<8x128xf32>
    %870 = vector.extract_strided_slice %869 {offsets = [0, 0], sizes = [8, 32], strides = [1, 1]} : vector<8x128xf32> to vector<8x32xf32>
    %871 = arith.negf %870 : vector<8x32xf32>
    %872 = math.exp %871 : vector<8x32xf32>
    %cst_231 = arith.constant 1.000000e+00 : f32
    %873 = vector.broadcast %cst_231 : f32 to vector<8x32xf32>
    %874 = arith.addf %873, %872 : vector<8x32xf32>
    %875 = arith.divf %873, %874 : vector<8x32xf32>
    %876 = vector.extract_strided_slice %869 {offsets = [0, 32], sizes = [8, 32], strides = [1, 1]} : vector<8x128xf32> to vector<8x32xf32>
    %877 = arith.negf %876 : vector<8x32xf32>
    %878 = math.exp %877 : vector<8x32xf32>
    %cst_232 = arith.constant 1.000000e+00 : f32
    %879 = vector.broadcast %cst_232 : f32 to vector<8x32xf32>
    %880 = arith.addf %879, %878 : vector<8x32xf32>
    %881 = arith.divf %879, %880 : vector<8x32xf32>
    %882 = vector.extract_strided_slice %869 {offsets = [0, 64], sizes = [8, 32], strides = [1, 1]} : vector<8x128xf32> to vector<8x32xf32>
    %883 = math.tanh %882 : vector<8x32xf32>
    %884 = vector.extract_strided_slice %869 {offsets = [0, 96], sizes = [8, 32], strides = [1, 1]} : vector<8x128xf32> to vector<8x32xf32>
    %885 = arith.negf %884 : vector<8x32xf32>
    %886 = math.exp %885 : vector<8x32xf32>
    %cst_233 = arith.constant 1.000000e+00 : f32
    %887 = vector.broadcast %cst_233 : f32 to vector<8x32xf32>
    %888 = arith.addf %887, %886 : vector<8x32xf32>
    %889 = arith.divf %887, %888 : vector<8x32xf32>
    %890 = arith.mulf %881, %862 : vector<8x32xf32>
    %891 = arith.mulf %875, %883 : vector<8x32xf32>
    %892 = arith.addf %890, %891 : vector<8x32xf32>
    %893 = math.tanh %892 : vector<8x32xf32>
    %894 = arith.mulf %889, %893 : vector<8x32xf32>
    %895 = arith.maximumf %865, %894 : vector<8x32xf32>
    %896 = vector.extract_strided_slice %529 {offsets = [24, 0], sizes = [8, 128], strides = [1, 1]} : vector<64x128xf32> to vector<8x128xf32>
    %c0_234 = arith.constant 0 : index
    %c0_235 = arith.constant 0 : index
    %897 = vector.load %arg11[%c0_234, %c0_235] : memref<32x128xf32, #tpu.memory_space<vmem>>, vector<32x128xf32>
    %cst_236 = arith.constant dense<0.000000e+00> : vector<8x128xf32>
    %898 = tpu.matmul %894, %897, %cst_236 {dimension_numbers = #tpu.dot_dimension_numbers<[1], [0], [0], [1], [0, 0, 1, 1], [], []>} : vector<8x32xf32>, vector<32x128xf32>, vector<8x128xf32> -> vector<8x128xf32>
    %899 = arith.addf %896, %898 : vector<8x128xf32>
    %900 = vector.extract_strided_slice %899 {offsets = [0, 0], sizes = [8, 32], strides = [1, 1]} : vector<8x128xf32> to vector<8x32xf32>
    %901 = arith.negf %900 : vector<8x32xf32>
    %902 = math.exp %901 : vector<8x32xf32>
    %cst_237 = arith.constant 1.000000e+00 : f32
    %903 = vector.broadcast %cst_237 : f32 to vector<8x32xf32>
    %904 = arith.addf %903, %902 : vector<8x32xf32>
    %905 = arith.divf %903, %904 : vector<8x32xf32>
    %906 = vector.extract_strided_slice %899 {offsets = [0, 32], sizes = [8, 32], strides = [1, 1]} : vector<8x128xf32> to vector<8x32xf32>
    %907 = arith.negf %906 : vector<8x32xf32>
    %908 = math.exp %907 : vector<8x32xf32>
    %cst_238 = arith.constant 1.000000e+00 : f32
    %909 = vector.broadcast %cst_238 : f32 to vector<8x32xf32>
    %910 = arith.addf %909, %908 : vector<8x32xf32>
    %911 = arith.divf %909, %910 : vector<8x32xf32>
    %912 = vector.extract_strided_slice %899 {offsets = [0, 64], sizes = [8, 32], strides = [1, 1]} : vector<8x128xf32> to vector<8x32xf32>
    %913 = math.tanh %912 : vector<8x32xf32>
    %914 = vector.extract_strided_slice %899 {offsets = [0, 96], sizes = [8, 32], strides = [1, 1]} : vector<8x128xf32> to vector<8x32xf32>
    %915 = arith.negf %914 : vector<8x32xf32>
    %916 = math.exp %915 : vector<8x32xf32>
    %cst_239 = arith.constant 1.000000e+00 : f32
    %917 = vector.broadcast %cst_239 : f32 to vector<8x32xf32>
    %918 = arith.addf %917, %916 : vector<8x32xf32>
    %919 = arith.divf %917, %918 : vector<8x32xf32>
    %920 = arith.mulf %911, %892 : vector<8x32xf32>
    %921 = arith.mulf %905, %913 : vector<8x32xf32>
    %922 = arith.addf %920, %921 : vector<8x32xf32>
    %923 = math.tanh %922 : vector<8x32xf32>
    %924 = arith.mulf %919, %923 : vector<8x32xf32>
    %925 = arith.maximumf %895, %924 : vector<8x32xf32>
    %926 = vector.extract_strided_slice %529 {offsets = [16, 0], sizes = [8, 128], strides = [1, 1]} : vector<64x128xf32> to vector<8x128xf32>
    %c0_240 = arith.constant 0 : index
    %c0_241 = arith.constant 0 : index
    %927 = vector.load %arg11[%c0_240, %c0_241] : memref<32x128xf32, #tpu.memory_space<vmem>>, vector<32x128xf32>
    %cst_242 = arith.constant dense<0.000000e+00> : vector<8x128xf32>
    %928 = tpu.matmul %924, %927, %cst_242 {dimension_numbers = #tpu.dot_dimension_numbers<[1], [0], [0], [1], [0, 0, 1, 1], [], []>} : vector<8x32xf32>, vector<32x128xf32>, vector<8x128xf32> -> vector<8x128xf32>
    %929 = arith.addf %926, %928 : vector<8x128xf32>
    %930 = vector.extract_strided_slice %929 {offsets = [0, 0], sizes = [8, 32], strides = [1, 1]} : vector<8x128xf32> to vector<8x32xf32>
    %931 = arith.negf %930 : vector<8x32xf32>
    %932 = math.exp %931 : vector<8x32xf32>
    %cst_243 = arith.constant 1.000000e+00 : f32
    %933 = vector.broadcast %cst_243 : f32 to vector<8x32xf32>
    %934 = arith.addf %933, %932 : vector<8x32xf32>
    %935 = arith.divf %933, %934 : vector<8x32xf32>
    %936 = vector.extract_strided_slice %929 {offsets = [0, 32], sizes = [8, 32], strides = [1, 1]} : vector<8x128xf32> to vector<8x32xf32>
    %937 = arith.negf %936 : vector<8x32xf32>
    %938 = math.exp %937 : vector<8x32xf32>
    %cst_244 = arith.constant 1.000000e+00 : f32
    %939 = vector.broadcast %cst_244 : f32 to vector<8x32xf32>
    %940 = arith.addf %939, %938 : vector<8x32xf32>
    %941 = arith.divf %939, %940 : vector<8x32xf32>
    %942 = vector.extract_strided_slice %929 {offsets = [0, 64], sizes = [8, 32], strides = [1, 1]} : vector<8x128xf32> to vector<8x32xf32>
    %943 = math.tanh %942 : vector<8x32xf32>
    %944 = vector.extract_strided_slice %929 {offsets = [0, 96], sizes = [8, 32], strides = [1, 1]} : vector<8x128xf32> to vector<8x32xf32>
    %945 = arith.negf %944 : vector<8x32xf32>
    %946 = math.exp %945 : vector<8x32xf32>
    %cst_245 = arith.constant 1.000000e+00 : f32
    %947 = vector.broadcast %cst_245 : f32 to vector<8x32xf32>
    %948 = arith.addf %947, %946 : vector<8x32xf32>
    %949 = arith.divf %947, %948 : vector<8x32xf32>
    %950 = arith.mulf %941, %922 : vector<8x32xf32>
    %951 = arith.mulf %935, %943 : vector<8x32xf32>
    %952 = arith.addf %950, %951 : vector<8x32xf32>
    %953 = math.tanh %952 : vector<8x32xf32>
    %954 = arith.mulf %949, %953 : vector<8x32xf32>
    %955 = arith.maximumf %925, %954 : vector<8x32xf32>
    %956 = vector.extract_strided_slice %529 {offsets = [8, 0], sizes = [8, 128], strides = [1, 1]} : vector<64x128xf32> to vector<8x128xf32>
    %c0_246 = arith.constant 0 : index
    %c0_247 = arith.constant 0 : index
    %957 = vector.load %arg11[%c0_246, %c0_247] : memref<32x128xf32, #tpu.memory_space<vmem>>, vector<32x128xf32>
    %cst_248 = arith.constant dense<0.000000e+00> : vector<8x128xf32>
    %958 = tpu.matmul %954, %957, %cst_248 {dimension_numbers = #tpu.dot_dimension_numbers<[1], [0], [0], [1], [0, 0, 1, 1], [], []>} : vector<8x32xf32>, vector<32x128xf32>, vector<8x128xf32> -> vector<8x128xf32>
    %959 = arith.addf %956, %958 : vector<8x128xf32>
    %960 = vector.extract_strided_slice %959 {offsets = [0, 0], sizes = [8, 32], strides = [1, 1]} : vector<8x128xf32> to vector<8x32xf32>
    %961 = arith.negf %960 : vector<8x32xf32>
    %962 = math.exp %961 : vector<8x32xf32>
    %cst_249 = arith.constant 1.000000e+00 : f32
    %963 = vector.broadcast %cst_249 : f32 to vector<8x32xf32>
    %964 = arith.addf %963, %962 : vector<8x32xf32>
    %965 = arith.divf %963, %964 : vector<8x32xf32>
    %966 = vector.extract_strided_slice %959 {offsets = [0, 32], sizes = [8, 32], strides = [1, 1]} : vector<8x128xf32> to vector<8x32xf32>
    %967 = arith.negf %966 : vector<8x32xf32>
    %968 = math.exp %967 : vector<8x32xf32>
    %cst_250 = arith.constant 1.000000e+00 : f32
    %969 = vector.broadcast %cst_250 : f32 to vector<8x32xf32>
    %970 = arith.addf %969, %968 : vector<8x32xf32>
    %971 = arith.divf %969, %970 : vector<8x32xf32>
    %972 = vector.extract_strided_slice %959 {offsets = [0, 64], sizes = [8, 32], strides = [1, 1]} : vector<8x128xf32> to vector<8x32xf32>
    %973 = math.tanh %972 : vector<8x32xf32>
    %974 = vector.extract_strided_slice %959 {offsets = [0, 96], sizes = [8, 32], strides = [1, 1]} : vector<8x128xf32> to vector<8x32xf32>
    %975 = arith.negf %974 : vector<8x32xf32>
    %976 = math.exp %975 : vector<8x32xf32>
    %cst_251 = arith.constant 1.000000e+00 : f32
    %977 = vector.broadcast %cst_251 : f32 to vector<8x32xf32>
    %978 = arith.addf %977, %976 : vector<8x32xf32>
    %979 = arith.divf %977, %978 : vector<8x32xf32>
    %980 = arith.mulf %971, %952 : vector<8x32xf32>
    %981 = arith.mulf %965, %973 : vector<8x32xf32>
    %982 = arith.addf %980, %981 : vector<8x32xf32>
    %983 = math.tanh %982 : vector<8x32xf32>
    %984 = arith.mulf %979, %983 : vector<8x32xf32>
    %985 = arith.maximumf %955, %984 : vector<8x32xf32>
    %986 = vector.extract_strided_slice %529 {offsets = [0, 0], sizes = [8, 128], strides = [1, 1]} : vector<64x128xf32> to vector<8x128xf32>
    %c0_252 = arith.constant 0 : index
    %c0_253 = arith.constant 0 : index
    %987 = vector.load %arg11[%c0_252, %c0_253] : memref<32x128xf32, #tpu.memory_space<vmem>>, vector<32x128xf32>
    %cst_254 = arith.constant dense<0.000000e+00> : vector<8x128xf32>
    %988 = tpu.matmul %984, %987, %cst_254 {dimension_numbers = #tpu.dot_dimension_numbers<[1], [0], [0], [1], [0, 0, 1, 1], [], []>} : vector<8x32xf32>, vector<32x128xf32>, vector<8x128xf32> -> vector<8x128xf32>
    %989 = arith.addf %986, %988 : vector<8x128xf32>
    %990 = vector.extract_strided_slice %989 {offsets = [0, 0], sizes = [8, 32], strides = [1, 1]} : vector<8x128xf32> to vector<8x32xf32>
    %991 = arith.negf %990 : vector<8x32xf32>
    %992 = math.exp %991 : vector<8x32xf32>
    %cst_255 = arith.constant 1.000000e+00 : f32
    %993 = vector.broadcast %cst_255 : f32 to vector<8x32xf32>
    %994 = arith.addf %993, %992 : vector<8x32xf32>
    %995 = arith.divf %993, %994 : vector<8x32xf32>
    %996 = vector.extract_strided_slice %989 {offsets = [0, 32], sizes = [8, 32], strides = [1, 1]} : vector<8x128xf32> to vector<8x32xf32>
    %997 = arith.negf %996 : vector<8x32xf32>
    %998 = math.exp %997 : vector<8x32xf32>
    %cst_256 = arith.constant 1.000000e+00 : f32
    %999 = vector.broadcast %cst_256 : f32 to vector<8x32xf32>
    %1000 = arith.addf %999, %998 : vector<8x32xf32>
    %1001 = arith.divf %999, %1000 : vector<8x32xf32>
    %1002 = vector.extract_strided_slice %989 {offsets = [0, 64], sizes = [8, 32], strides = [1, 1]} : vector<8x128xf32> to vector<8x32xf32>
    %1003 = math.tanh %1002 : vector<8x32xf32>
    %1004 = vector.extract_strided_slice %989 {offsets = [0, 96], sizes = [8, 32], strides = [1, 1]} : vector<8x128xf32> to vector<8x32xf32>
    %1005 = arith.negf %1004 : vector<8x32xf32>
    %1006 = math.exp %1005 : vector<8x32xf32>
    %cst_257 = arith.constant 1.000000e+00 : f32
    %1007 = vector.broadcast %cst_257 : f32 to vector<8x32xf32>
    %1008 = arith.addf %1007, %1006 : vector<8x32xf32>
    %1009 = arith.divf %1007, %1008 : vector<8x32xf32>
    %1010 = arith.mulf %1001, %982 : vector<8x32xf32>
    %1011 = arith.mulf %995, %1003 : vector<8x32xf32>
    %1012 = arith.addf %1010, %1011 : vector<8x32xf32>
    %1013 = math.tanh %1012 : vector<8x32xf32>
    %1014 = arith.mulf %1009, %1013 : vector<8x32xf32>
    %1015 = arith.maximumf %985, %1014 : vector<8x32xf32>
    %c0_258 = arith.constant 0 : index
    %c0_259 = arith.constant 0 : index
    %1016 = vector.load %arg13[%c0_258, %c0_259] : memref<32x4xf32, #tpu.memory_space<vmem>>, vector<32x4xf32>
    %cst_260 = arith.constant dense<0.000000e+00> : vector<8x4xf32>
    %1017 = tpu.matmul %17, %1016, %cst_260 {dimension_numbers = #tpu.dot_dimension_numbers<[1], [0], [0], [1], [0, 0, 1, 1], [], []>} : vector<8x32xf32>, vector<32x4xf32>, vector<8x4xf32> -> vector<8x4xf32>
    %c0_261 = arith.constant 0 : index
    %c0_262 = arith.constant 0 : index
    %1018 = vector.load %arg14[%c0_261, %c0_262] : memref<64x4xf32, #tpu.memory_space<vmem>>, vector<32x4xf32>
    %cst_263 = arith.constant dense<0.000000e+00> : vector<8x4xf32>
    %1019 = tpu.matmul %772, %1018, %cst_263 {dimension_numbers = #tpu.dot_dimension_numbers<[1], [0], [0], [1], [0, 0, 1, 1], [], []>} : vector<8x32xf32>, vector<32x4xf32>, vector<8x4xf32> -> vector<8x4xf32>
    %1020 = arith.addf %1017, %1019 : vector<8x4xf32>
    %c32_264 = arith.constant 32 : index
    %c0_265 = arith.constant 0 : index
    %1021 = vector.load %arg14[%c32_264, %c0_265] : memref<64x4xf32, #tpu.memory_space<vmem>>, vector<32x4xf32>
    %cst_266 = arith.constant dense<0.000000e+00> : vector<8x4xf32>
    %1022 = tpu.matmul %1015, %1021, %cst_266 {dimension_numbers = #tpu.dot_dimension_numbers<[1], [0], [0], [1], [0, 0, 1, 1], [], []>} : vector<8x32xf32>, vector<32x4xf32>, vector<8x4xf32> -> vector<8x4xf32>
    %1023 = arith.addf %1020, %1022 : vector<8x4xf32>
    %c0_267 = arith.constant 0 : index
    %c0_268 = arith.constant 0 : index
    %1024 = vector.load %arg15[%c0_267, %c0_268] : memref<1x4xf32, #tpu.memory_space<vmem>>, vector<1x4xf32>
    %1025 = vector.broadcast %1024 : vector<1x4xf32> to vector<8x4xf32>
    %1026 = arith.addf %1023, %1025 : vector<8x4xf32>
    %c0_269 = arith.constant 0 : index
    %c0_270 = arith.constant 0 : index
    %1027 = vector.load %arg16[%c0_269, %c0_270] : memref<8x4xf32, #tpu.memory_space<vmem>>, vector<8x4xf32>
    tpu.vector_store %arg16[%c0_269, %c0_270], %1026 {strides = array<i32>} : memref<8x4xf32, #tpu.memory_space<vmem>>, vector<8x4xf32>,
    return
  }
}

</mosaic_0001>

<llo_original>
// kernel: textrcnn_forward.1
$region0: #{textrcnn_forward.1}
  #allocation0 [shape = 'u32[]', space=smem, size = 0x4, offset = 0x4, fixed_abs, tag = 'smem constant byte address 0x4 - core index']
  #allocation1 [shape = 'u32[72,128]{1,0:T(1,128)}', space=vmem, size = 0x9000, scoped, tag = 'internal scratch']
  #allocation2 [shape = 'f32[64,32]{1,0:T(8,128)}', space=vmem, size = 0x8000, scoped, tag = 'scratch operand']
  #allocation3 [shape = 'f32[64,32]{1,0:T(8,128)}', space=vmem, size = 0x8000, scoped, tag = 'scratch operand']
  #allocation4 [shape = 'f32[64,32]{1,0:T(8,128)}', space=vmem, size = 0x8000, scoped, tag = 'scratch operand']
  #allocation5 [shape = 'f32[64,32]{1,0:T(8,128)}', space=vmem, size = 0x8000, scoped, tag = 'scratch operand']
  %s0 = inlined_call_operand.vmem [shape: f32[64,32], index: 0, kind: input, shape index: {}]
  %s1 = inlined_call_operand.vmem [shape: f32[32,128], index: 1, kind: input, shape index: {}]
  %s2 = inlined_call_operand.vmem [shape: f32[32,128], index: 2, kind: input, shape index: {}]
  %s3 = inlined_call_operand.vmem [shape: f32[1,128], index: 3, kind: input, shape index: {}]
  %s4 = inlined_call_operand.vmem [shape: f32[32,128], index: 4, kind: input, shape index: {}]
  %s5 = inlined_call_operand.vmem [shape: f32[32,128], index: 5, kind: input, shape index: {}]
  %s6 = inlined_call_operand.vmem [shape: f32[1,128], index: 6, kind: input, shape index: {}]
  %s7 = inlined_call_operand.vmem [shape: f32[64,128], index: 7, kind: input, shape index: {}]
  %s8 = inlined_call_operand.vmem [shape: f32[32,128], index: 8, kind: input, shape index: {}]
  %s9 = inlined_call_operand.vmem [shape: f32[1,128], index: 9, kind: input, shape index: {}]
  %s10 = inlined_call_operand.vmem [shape: f32[64,128], index: 10, kind: input, shape index: {}]
  %s11 = inlined_call_operand.vmem [shape: f32[32,128], index: 11, kind: input, shape index: {}]
  %s12 = inlined_call_operand.vmem [shape: f32[1,128], index: 12, kind: input, shape index: {}]
  %s13 = inlined_call_operand.vmem [shape: f32[32,4], index: 13, kind: input, shape index: {}]
  %s14 = inlined_call_operand.vmem [shape: f32[64,4], index: 14, kind: input, shape index: {}]
  %s15 = inlined_call_operand.vmem [shape: f32[1,4], index: 15, kind: input, shape index: {}]
  %s16 = inlined_call_operand.vmem [shape: f32[8,4], index: 16, kind: output, shape index: {}]
  %s17 = sld [smem:[#allocation0]]
  $region74: #{textrcnn_forward.1} parent=0
    _
  %s19 = ssub.s32 1, %s17
  %s20 = scalar_select 0, %s19, %s17
  // Predicated region
  $region2: #{textrcnn_forward.1} parent=0 // pred_check
    _
  $region3: #{textrcnn_forward.1} parent=0 // pred_check_branch
    %22 = sbr.rel (0) target = $region5
  $region4: #{textrcnn_forward.1} parent=0 // pred_region
    _
  $region5: #{textrcnn_forward.1} parent=0 // pred_fallthru
    _
  // Predicated region
  $region6: #{textrcnn_forward.1} parent=0 // pred_check
    _
  $region7: #{textrcnn_forward.1} parent=0 // pred_check_branch
    %24 = sbr.rel (0) target = $region9
  $region8: #{textrcnn_forward.1} parent=0 // pred_region
    _
  $region9: #{textrcnn_forward.1} parent=0 // pred_fallthru
    _
  // Predicated region
  $region10: #{textrcnn_forward.1} parent=0 // pred_check
    _
  $region11: #{textrcnn_forward.1} parent=0 // pred_check_branch
    %26 = sbr.rel (0) target = $region13
  $region12: #{textrcnn_forward.1} parent=0 // pred_region
    _
  $region13: #{textrcnn_forward.1} parent=0 // pred_fallthru
    _
  // Predicated region
  $region14: #{textrcnn_forward.1} parent=0 // pred_check
    _
  $region15: #{textrcnn_forward.1} parent=0 // pred_check_branch
    %28 = sbr.rel (0) target = $region17
  $region16: #{textrcnn_forward.1} parent=0 // pred_region
    _
  $region17: #{textrcnn_forward.1} parent=0 // pred_fallthru
    _
  // Predicated region
  $region18: #{textrcnn_forward.1} parent=0 // pred_check
    _
  $region19: #{textrcnn_forward.1} parent=0 // pred_check_branch
    %30 = sbr.rel (0) target = $region21
  $region20: #{textrcnn_forward.1} parent=0 // pred_region
    _
  $region21: #{textrcnn_forward.1} parent=0 // pred_fallthru
    _
  // Predicated region
  $region22: #{textrcnn_forward.1} parent=0 // pred_check
    _
  $region23: #{textrcnn_forward.1} parent=0 // pred_check_branch
    %32 = sbr.rel (0) target = $region25
  $region24: #{textrcnn_forward.1} parent=0 // pred_region
    _
  $region25: #{textrcnn_forward.1} parent=0 // pred_fallthru
    _
  // Predicated region
  $region26: #{textrcnn_forward.1} parent=0 // pred_check
    _
  $region27: #{textrcnn_forward.1} parent=0 // pred_check_branch
    %34 = sbr.rel (0) target = $region29
  $region28: #{textrcnn_forward.1} parent=0 // pred_region
    _
  $region29: #{textrcnn_forward.1} parent=0 // pred_fallthru
    _
  // Predicated region
  $region30: #{textrcnn_forward.1} parent=0 // pred_check
    _
  $region31: #{textrcnn_forward.1} parent=0 // pred_check_branch
    %36 = sbr.rel (0) target = $region33
  $region32: #{textrcnn_forward.1} parent=0 // pred_region
    _
  $region33: #{textrcnn_forward.1} parent=0 // pred_fallthru
    _
  // Predicated region
  $region34: #{textrcnn_forward.1} parent=0 // pred_check
    _
  $region35: #{textrcnn_forward.1} parent=0 // pred_check_branch
    %38 = sbr.rel (0) target = $region37
  $region36: #{textrcnn_forward.1} parent=0 // pred_region
    _
  $region37: #{textrcnn_forward.1} parent=0 // pred_fallthru
    _
  // Predicated region
  $region38: #{textrcnn_forward.1} parent=0 // pred_check
    _
  $region39: #{textrcnn_forward.1} parent=0 // pred_check_branch
    %40 = sbr.rel (0) target = $region41
  $region40: #{textrcnn_forward.1} parent=0 // pred_region
    _
  $region41: #{textrcnn_forward.1} parent=0 // pred_fallthru
    _
  // Predicated region
  $region42: #{textrcnn_forward.1} parent=0 // pred_check
    _
  $region43: #{textrcnn_forward.1} parent=0 // pred_check_branch
    %42 = sbr.rel (0) target = $region45
  $region44: #{textrcnn_forward.1} parent=0 // pred_region
    _
  $region45: #{textrcnn_forward.1} parent=0 // pred_fallthru
    _
  // Predicated region
  $region46: #{textrcnn_forward.1} parent=0 // pred_check
    _
  $region47: #{textrcnn_forward.1} parent=0 // pred_check_branch
    %44 = sbr.rel (0) target = $region49
  $region48: #{textrcnn_forward.1} parent=0 // pred_region
    _
  $region49: #{textrcnn_forward.1} parent=0 // pred_fallthru
    _
  // Predicated region
  $region50: #{textrcnn_forward.1} parent=0 // pred_check
    _
  $region51: #{textrcnn_forward.1} parent=0 // pred_check_branch
    %46 = sbr.rel (0) target = $region53
  $region52: #{textrcnn_forward.1} parent=0 // pred_region
    _
  $region53: #{textrcnn_forward.1} parent=0 // pred_fallthru
    _
  // Predicated region
  $region54: #{textrcnn_forward.1} parent=0 // pred_check
    _
  $region55: #{textrcnn_forward.1} parent=0 // pred_check_branch
    %48 = sbr.rel (0) target = $region57
  $region56: #{textrcnn_forward.1} parent=0 // pred_region
    _
  $region57: #{textrcnn_forward.1} parent=0 // pred_fallthru
    _
  // Predicated region
  $region58: #{textrcnn_forward.1} parent=0 // pred_check
    _
  $region59: #{textrcnn_forward.1} parent=0 // pred_check_branch
    %50 = sbr.rel (0) target = $region61
  $region60: #{textrcnn_forward.1} parent=0 // pred_region
    _
  $region61: #{textrcnn_forward.1} parent=0 // pred_fallthru
    _
  // Predicated region
  $region62: #{textrcnn_forward.1} parent=0 // pred_check
    _
  $region63: #{textrcnn_forward.1} parent=0 // pred_check_branch
    %52 = sbr.rel (0) target = $region65
  $region64: #{textrcnn_forward.1} parent=0 // pred_region
    _
  $region65: #{textrcnn_forward.1} parent=0 // pred_fallthru
    _
  %v53 = vld [vmem:[%s0] sm:$0xff]
  %v54 = vld [vmem:[%s0 + $0x8] sm:$0xff]
  %v55 = vld [vmem:[%s0 + $0x10] sm:$0xff]
  %v56 = vld [vmem:[%s0 + $0x18] sm:$0xff]
  %v57 = vld [vmem:[%s0 + $0x20] sm:$0xff]
  %v58 = vld [vmem:[%s0 + $0x28] sm:$0xff]
  %v59 = vld [vmem:[%s0 + $0x30] sm:$0xff]
  %v60 = vld [vmem:[%s0 + $0x38] sm:$0xff]
  %v61 = vmax.f32 %v53, 0.0
  %v62 = vmax.f32 %v61, %v54
  %v63 = vmax.f32 %v62, %v55
  %v64 = vmax.f32 %v63, %v56
  %v65 = vmax.f32 %v64, %v57
  %v66 = vmax.f32 %v65, %v58
  %v67 = vmax.f32 %v66, %v59
  %v68 = vmax.f32 %v67, %v60
  %v69 = vld [vmem:[%s1] sm:$0xff]
  %v70 = vld [vmem:[%s1 + $0x8] sm:$0xff]
  %v71 = vld [vmem:[%s1 + $0x10] sm:$0xff]
  %v72 = vld [vmem:[%s1 + $0x18] sm:$0xff]
  %v73 = vld [vmem:[%s3] sm:$0x1]
  %v75 = vperm.slane %v73, 0
  %vm77 = vcmask 261120
  %v79 = vsel %vm77, %v53, 0
  %v82 = vsel %vm77, %v54, 0
  %v85 = vsel %vm77, %v55, 0
  %v88 = vsel %vm77, %v56, 0
  %v91 = vsel %vm77, %v57, 0
  %v94 = vsel %vm77, %v58, 0
  %v97 = vsel %vm77, %v59, 0
  %v100 = vsel %vm77, %v60, 0
  %102 = vmatpush.msra.mxu0 0.0
  %103 = vmatpush.msra.mxu0 0.0
  %104 = vmatpush.msra.mxu0 0.0
  %105 = vmatpush.msra.mxu0 0.0
  %106 = vmatpush.msra.mxu0 0.0
  %107 = vmatpush.msra.mxu0 0.0
  %108 = vmatpush.msra.mxu0 0.0
  %109 = vmatpush.msra.mxu0 0.0
  %110 = vmatpush.msra.mxu0 0.0
  %111 = vmatpush.msra.mxu0 0.0
  %112 = vmatpush.msra.mxu0 0.0
  %113 = vmatpush.msra.mxu0 0.0
  %114 = vmatpush.msra.mxu0 %v72
  %115 = vmatpush.msra.mxu0 %v71
  %116 = vmatpush.msra.mxu0 %v70
  %117 = vmatpush.msra.mxu0 %v69
  %118 = vmatmul.f32.gmra.mxu0 %v79
  %v119 = vpop.f32.mrf.mxu0
  %v120 = vadd.f32 %v75, %v119
  %121 = vmatmul.f32.gmra.mxu0 %v82
  %v122 = vpop.f32.mrf.mxu0
  %v123 = vadd.f32 %v75, %v122
  %124 = vmatmul.f32.gmra.mxu0 %v85
  %v125 = vpop.f32.mrf.mxu0
  %v126 = vadd.f32 %v75, %v125
  %127 = vmatmul.f32.gmra.mxu0 %v88
  %v128 = vpop.f32.mrf.mxu0
  %v129 = vadd.f32 %v75, %v128
  %130 = vmatmul.f32.gmra.mxu0 %v91
  %v131 = vpop.f32.mrf.mxu0
  %v132 = vadd.f32 %v75, %v131
  %133 = vmatmul.f32.gmra.mxu0 %v94
  %v134 = vpop.f32.mrf.mxu0
  %v135 = vadd.f32 %v75, %v134
  %136 = vmatmul.f32.gmra.mxu0 %v97
  %v137 = vpop.f32.mrf.mxu0
  %v138 = vadd.f32 %v75, %v137
  %139 = vmatmul.f32.gmra.mxu0 %v100
  %v140 = vpop.f32.mrf.mxu0
  %v141 = vadd.f32 %v75, %v140
  %142 = vdwg.mxu0
  %v143 = vld [vmem:[%s4] sm:$0xff]
  %v144 = vld [vmem:[%s4 + $0x8] sm:$0xff]
  %v145 = vld [vmem:[%s4 + $0x10] sm:$0xff]
  %v146 = vld [vmem:[%s4 + $0x18] sm:$0xff]
  %v147 = vld [vmem:[%s6] sm:$0x1]
  %v149 = vperm.slane %v147, 0
  %151 = vmatpush.msra.mxu0 0.0
  %152 = vmatpush.msra.mxu0 0.0
  %153 = vmatpush.msra.mxu0 0.0
  %154 = vmatpush.msra.mxu0 0.0
  %155 = vmatpush.msra.mxu0 0.0
  %156 = vmatpush.msra.mxu0 0.0
  %157 = vmatpush.msra.mxu0 0.0
  %158 = vmatpush.msra.mxu0 0.0
  %159 = vmatpush.msra.mxu0 0.0
  %160 = vmatpush.msra.mxu0 0.0
  %161 = vmatpush.msra.mxu0 0.0
  %162 = vmatpush.msra.mxu0 0.0
  %163 = vmatpush.msra.mxu0 %v146
  %164 = vmatpush.msra.mxu0 %v145
  %165 = vmatpush.msra.mxu0 %v144
  %166 = vmatpush.msra.mxu0 %v143
  %167 = vmatmul.f32.gmra.mxu0 %v79
  %v168 = vpop.f32.mrf.mxu0
  %v169 = vadd.f32 %v149, %v168
  %170 = vmatmul.f32.gmra.mxu0 %v82
  %v171 = vpop.f32.mrf.mxu0
  %v172 = vadd.f32 %v149, %v171
  %173 = vmatmul.f32.gmra.mxu0 %v85
  %v174 = vpop.f32.mrf.mxu0
  %v175 = vadd.f32 %v149, %v174
  %176 = vmatmul.f32.gmra.mxu0 %v88
  %v177 = vpop.f32.mrf.mxu0
  %v178 = vadd.f32 %v149, %v177
  %179 = vmatmul.f32.gmra.mxu0 %v91
  %v180 = vpop.f32.mrf.mxu0
  %v181 = vadd.f32 %v149, %v180
  %182 = vmatmul.f32.gmra.mxu0 %v94
  %v183 = vpop.f32.mrf.mxu0
  %v184 = vadd.f32 %v149, %v183
  %185 = vmatmul.f32.gmra.mxu0 %v97
  %v186 = vpop.f32.mrf.mxu0
  %v187 = vadd.f32 %v149, %v186
  %188 = vmatmul.f32.gmra.mxu0 %v100
  %v189 = vpop.f32.mrf.mxu0
  %v190 = vadd.f32 %v149, %v189
  %191 = vdwg.mxu0
  %v192 = vld [vmem:[%s2] sm:$0xff]
  %v193 = vld [vmem:[%s2 + $0x8] sm:$0xff]
  %v194 = vld [vmem:[%s2 + $0x10] sm:$0xff]
  %v195 = vld [vmem:[%s2 + $0x18] sm:$0xff]
  %v197 = vsel %vm77, 0.0, 0
  %199 = vmatpush.msra.mxu0 0.0
  %200 = vmatpush.msra.mxu0 0.0
  %201 = vmatpush.msra.mxu0 0.0
  %202 = vmatpush.msra.mxu0 0.0
  %203 = vmatpush.msra.mxu0 0.0
  %204 = vmatpush.msra.mxu0 0.0
  %205 = vmatpush.msra.mxu0 0.0
  %206 = vmatpush.msra.mxu0 0.0
  %207 = vmatpush.msra.mxu0 0.0
  %208 = vmatpush.msra.mxu0 0.0
  %209 = vmatpush.msra.mxu0 0.0
  %210 = vmatpush.msra.mxu0 0.0
  %211 = vmatpush.msra.mxu0 %v195
  %212 = vmatpush.msra.mxu0 %v194
  %213 = vmatpush.msra.mxu0 %v193
  %214 = vmatpush.msra.mxu0 %v192
  %215 = vmatmul.f32.gmra.mxu0 %v197
  %v216 = vpop.f32.mrf.mxu0
  %v217 = vadd.f32 0.0, %v216
  %218 = vdwg.mxu0
  %v219 = vadd.f32 %v120, %v217
  %v220 = vxor.u32 %v219, 2147483648
  %v221 = vmul.f32 %v220, 1.442695
  %v222 = vpow.pop %v221
  %v223 = vadd.f32 %v222, 1.0
  %v224 = vrcp.pop %v223
  %v225 = vmul.f32 %v223, %v224
  %v226 = vsub.f32 1.0, %v225
  %v227 = vmul.f32 %v224, %v226
  %v228 = vadd.f32 %v224, %v227
  %vm229 = vweird.f32 %v223
  %vm230 = vweird.f32 %v224
  %vm231 = vmor %vm229, %vm230
  %v232 = vsel %vm231, %v224, %v228
  %v233 = vand.u32 2147483647, %v223
  %vm234 = vcmp.eq.f32.partialorder %v233, 8.507059e+37
  %v235 = vand.u32 %v223, 2147483648
  %v236 = vor.u32 1.1754944e-38, %v235
  %v237 = vsel %vm234, %v236, %v232
  %v238 = vmul.f32 1.0, %v237
  %v239 = vtanh.pop %v219
  %v240 = vmul.f32 %v238, 0.0
  %242 = vrot.lane.b32.xlu0 %v239, 64
  %v243 = vpop.permute.xlu0 %242
  %v245 = vmul.f32 %v238, %v243
  %247 = vrot.lane.b32.xlu0 %v245, 32
  %v248 = vpop.permute.xlu0 %247
  %v250 = vadd.f32 %v240, %v248
  %v251 = vtanh.pop %v250
  %253 = vrot.lane.b32.xlu0 %v251, 64
  %v254 = vpop.permute.xlu0 %253
  %v256 = vmul.f32 %v238, %v254
  %258 = vrot.lane.b32.xlu0 %v256, 32
  %v259 = vpop.permute.xlu0 %258
  %261 = vst.msk [vmem:[#allocation2] sm:$0xff] %vm77, %v259
  %v262 = vld [vmem:[%s2] sm:$0xff]
  %v263 = vld [vmem:[%s2 + $0x8] sm:$0xff]
  %v264 = vld [vmem:[%s2 + $0x10] sm:$0xff]
  %v265 = vld [vmem:[%s2 + $0x18] sm:$0xff]
  %v266 = vsel %vm77, %v259, 0
  %268 = vmatpush.msra.mxu0 0.0
  %269 = vmatpush.msra.mxu0 0.0
  %270 = vmatpush.msra.mxu0 0.0
  %271 = vmatpush.msra.mxu0 0.0
  %272 = vmatpush.msra.mxu0 0.0
  %273 = vmatpush.msra.mxu0 0.0
  %274 = vmatpush.msra.mxu0 0.0
  %275 = vmatpush.msra.mxu0 0.0
  %276 = vmatpush.msra.mxu0 0.0
  %277 = vmatpush.msra.mxu0 0.0
  %278 = vmatpush.msra.mxu0 0.0
  %279 = vmatpush.msra.mxu0 0.0
  %280 = vmatpush.msra.mxu0 %v265
  %281 = vmatpush.msra.mxu0 %v264
  %282 = vmatpush.msra.mxu0 %v263
  %283 = vmatpush.msra.mxu0 %v262
  %284 = vmatmul.f32.gmra.mxu0 %v266
  %v285 = vpop.f32.mrf.mxu0
  %v286 = vadd.f32 0.0, %v285
  %287 = vdwg.mxu0
  %v288 = vadd.f32 %v123, %v286
  %v289 = vxor.u32 %v288, 2147483648
  %v290 = vmul.f32 %v289, 1.442695
  %v291 = vpow.pop %v290
  %v292 = vadd.f32 %v291, 1.0
  %v293 = vrcp.pop %v292
  %v294 = vmul.f32 %v292, %v293
  %v295 = vsub.f32 1.0, %v294
  %v296 = vmul.f32 %v293, %v295
  %v297 = vadd.f32 %v293, %v296
  %vm298 = vweird.f32 %v292
  %vm299 = vweird.f32 %v293
  %vm300 = vmor %vm298, %vm299
  %v301 = vsel %vm300, %v293, %v297
  %v302 = vand.u32 2147483647, %v292
  %vm303 = vcmp.eq.f32.partialorder %v302, 8.507059e+37
  %v304 = vand.u32 %v292, 2147483648
  %v305 = vor.u32 1.1754944e-38, %v304
  %v306 = vsel %vm303, %v305, %v301
  %v307 = vmul.f32 1.0, %v306
  %v308 = vtanh.pop %v288
  %v309 = vmul.f32 %v307, %v250
  %311 = vrot.lane.b32.xlu0 %v308, 64
  %v312 = vpop.permute.xlu0 %311
  %v314 = vmul.f32 %v307, %v312
  %316 = vrot.lane.b32.xlu0 %v314, 32
  %v317 = vpop.permute.xlu0 %316
  %v319 = vadd.f32 %v309, %v317
  %v320 = vtanh.pop %v319
  %322 = vrot.lane.b32.xlu0 %v320, 64
  %v323 = vpop.permute.xlu0 %322
  %v325 = vmul.f32 %v307, %v323
  %327 = vrot.lane.b32.xlu0 %v325, 32
  %v328 = vpop.permute.xlu0 %327
  %330 = vst.msk [vmem:[#allocation2 + $0x8] sm:$0xff] %vm77, %v328
  %v331 = vld [vmem:[%s2] sm:$0xff]
  %v332 = vld [vmem:[%s2 + $0x8] sm:$0xff]
  %v333 = vld [vmem:[%s2 + $0x10] sm:$0xff]
  %v334 = vld [vmem:[%s2 + $0x18] sm:$0xff]
  %v335 = vsel %vm77, %v328, 0
  %337 = vmatpush.msra.mxu0 0.0
  %338 = vmatpush.msra.mxu0 0.0
  %339 = vmatpush.msra.mxu0 0.0
  %340 = vmatpush.msra.mxu0 0.0
  %341 = vmatpush.msra.mxu0 0.0
  %342 = vmatpush.msra.mxu0 0.0
  %343 = vmatpush.msra.mxu0 0.0
  %344 = vmatpush.msra.mxu0 0.0
  %345 = vmatpush.msra.mxu0 0.0
  %346 = vmatpush.msra.mxu0 0.0
  %347 = vmatpush.msra.mxu0 0.0
  %348 = vmatpush.msra.mxu0 0.0
  %349 = vmatpush.msra.mxu0 %v334
  %350 = vmatpush.msra.mxu0 %v333
  %351 = vmatpush.msra.mxu0 %v332
  %352 = vmatpush.msra.mxu0 %v331
  %353 = vmatmul.f32.gmra.mxu0 %v335
  %v354 = vpop.f32.mrf.mxu0
  %v355 = vadd.f32 0.0, %v354
  %356 = vdwg.mxu0
  %v357 = vadd.f32 %v126, %v355
  %v358 = vxor.u32 %v357, 2147483648
  %v359 = vmul.f32 %v358, 1.442695
  %v360 = vpow.pop %v359
  %v361 = vadd.f32 %v360, 1.0
  %v362 = vrcp.pop %v361
  %v363 = vmul.f32 %v361, %v362
  %v364 = vsub.f32 1.0, %v363
  %v365 = vmul.f32 %v362, %v364
  %v366 = vadd.f32 %v362, %v365
  %vm367 = vweird.f32 %v361
  %vm368 = vweird.f32 %v362
  %vm369 = vmor %vm367, %vm368
  %v370 = vsel %vm369, %v362, %v366
  %v371 = vand.u32 2147483647, %v361
  %vm372 = vcmp.eq.f32.partialorder %v371, 8.507059e+37
  %v373 = vand.u32 %v361, 2147483648
  %v374 = vor.u32 1.1754944e-38, %v373
  %v375 = vsel %vm372, %v374, %v370
  %v376 = vmul.f32 1.0, %v375
  %v377 = vtanh.pop %v357
  %v378 = vmul.f32 %v376, %v319
  %380 = vrot.lane.b32.xlu0 %v377, 64
  %v381 = vpop.permute.xlu0 %380
  %v383 = vmul.f32 %v376, %v381
  %385 = vrot.lane.b32.xlu0 %v383, 32
  %v386 = vpop.permute.xlu0 %385
  %v388 = vadd.f32 %v378, %v386
  %v389 = vtanh.pop %v388
  %391 = vrot.lane.b32.xlu0 %v389, 64
  %v392 = vpop.permute.xlu0 %391
  %v394 = vmul.f32 %v376, %v392
  %396 = vrot.lane.b32.xlu0 %v394, 32
  %v397 = vpop.permute.xlu0 %396
  %399 = vst.msk [vmem:[#allocation2 + $0x10] sm:$0xff] %vm77, %v397
  %v400 = vld [vmem:[%s2] sm:$0xff]
  %v401 = vld [vmem:[%s2 + $0x8] sm:$0xff]
  %v402 = vld [vmem:[%s2 + $0x10] sm:$0xff]
  %v403 = vld [vmem:[%s2 + $0x18] sm:$0xff]
  %v404 = vsel %vm77, %v397, 0
  %406 = vmatpush.msra.mxu0 0.0
  %407 = vmatpush.msra.mxu0 0.0
  %408 = vmatpush.msra.mxu0 0.0
  %409 = vmatpush.msra.mxu0 0.0
  %410 = vmatpush.msra.mxu0 0.0
  %411 = vmatpush.msra.mxu0 0.0
  %412 = vmatpush.msra.mxu0 0.0
  %413 = vmatpush.msra.mxu0 0.0
  %414 = vmatpush.msra.mxu0 0.0
  %415 = vmatpush.msra.mxu0 0.0
  %416 = vmatpush.msra.mxu0 0.0
  %417 = vmatpush.msra.mxu0 0.0
  %418 = vmatpush.msra.mxu0 %v403
  %419 = vmatpush.msra.mxu0 %v402
  %420 = vmatpush.msra.mxu0 %v401
  %421 = vmatpush.msra.mxu0 %v400
  %422 = vmatmul.f32.gmra.mxu0 %v404
  %v423 = vpop.f32.mrf.mxu0
  %v424 = vadd.f32 0.0, %v423
  %425 = vdwg.mxu0
  %v426 = vadd.f32 %v129, %v424
  %v427 = vxor.u32 %v426, 2147483648
  %v428 = vmul.f32 %v427, 1.442695
  %v429 = vpow.pop %v428
  %v430 = vadd.f32 %v429, 1.0
  %v431 = vrcp.pop %v430
  %v432 = vmul.f32 %v430, %v431
  %v433 = vsub.f32 1.0, %v432
  %v434 = vmul.f32 %v431, %v433
  %v435 = vadd.f32 %v431, %v434
  %vm436 = vweird.f32 %v430
  %vm437 = vweird.f32 %v431
  %vm438 = vmor %vm436, %vm437
  %v439 = vsel %vm438, %v431, %v435
  %v440 = vand.u32 2147483647, %v430
  %vm441 = vcmp.eq.f32.partialorder %v440, 8.507059e+37
  %v442 = vand.u32 %v430, 2147483648
  %v443 = vor.u32 1.1754944e-38, %v442
  %v444 = vsel %vm441, %v443, %v439
  %v445 = vmul.f32 1.0, %v444
  %v446 = vtanh.pop %v426
  %v447 = vmul.f32 %v445, %v388
  %449 = vrot.lane.b32.xlu0 %v446, 64
  %v450 = vpop.permute.xlu0 %449
  %v452 = vmul.f32 %v445, %v450
  %454 = vrot.lane.b32.xlu0 %v452, 32
  %v455 = vpop.permute.xlu0 %454
  %v457 = vadd.f32 %v447, %v455
  %v458 = vtanh.pop %v457
  %460 = vrot.lane.b32.xlu0 %v458, 64
  %v461 = vpop.permute.xlu0 %460
  %v463 = vmul.f32 %v445, %v461
  %465 = vrot.lane.b32.xlu0 %v463, 32
  %v466 = vpop.permute.xlu0 %465
  %468 = vst.msk [vmem:[#allocation2 + $0x18] sm:$0xff] %vm77, %v466
  %v469 = vld [vmem:[%s2] sm:$0xff]
  %v470 = vld [vmem:[%s2 + $0x8] sm:$0xff]
  %v471 = vld [vmem:[%s2 + $0x10] sm:$0xff]
  %v472 = vld [vmem:[%s2 + $0x18] sm:$0xff]
  %v473 = vsel %vm77, %v466, 0
  %475 = vmatpush.msra.mxu0 0.0
  %476 = vmatpush.msra.mxu0 0.0
  %477 = vmatpush.msra.mxu0 0.0
  %478 = vmatpush.msra.mxu0 0.0
  %479 = vmatpush.msra.mxu0 0.0
  %480 = vmatpush.msra.mxu0 0.0
  %481 = vmatpush.msra.mxu0 0.0
  %482 = vmatpush.msra.mxu0 0.0
  %483 = vmatpush.msra.mxu0 0.0
  %484 = vmatpush.msra.mxu0 0.0
  %485 = vmatpush.msra.mxu0 0.0
  %486 = vmatpush.msra.mxu0 0.0
  %487 = vmatpush.msra.mxu0 %v472
  %488 = vmatpush.msra.mxu0 %v471
  %489 = vmatpush.msra.mxu0 %v470
  %490 = vmatpush.msra.mxu0 %v469
  %491 = vmatmul.f32.gmra.mxu0 %v473
  %v492 = vpop.f32.mrf.mxu0
  %v493 = vadd.f32 0.0, %v492
  %494 = vdwg.mxu0
  %v495 = vadd.f32 %v132, %v493
  %v496 = vxor.u32 %v495, 2147483648
  %v497 = vmul.f32 %v496, 1.442695
  %v498 = vpow.pop %v497
  %v499 = vadd.f32 %v498, 1.0
  %v500 = vrcp.pop %v499
  %v501 = vmul.f32 %v499, %v500
  %v502 = vsub.f32 1.0, %v501
  %v503 = vmul.f32 %v500, %v502
  %v504 = vadd.f32 %v500, %v503
  %vm505 = vweird.f32 %v499
  %vm506 = vweird.f32 %v500
  %vm507 = vmor %vm505, %vm506
  %v508 = vsel %vm507, %v500, %v504
  %v509 = vand.u32 2147483647, %v499
  %vm510 = vcmp.eq.f32.partialorder %v509, 8.507059e+37
  %v511 = vand.u32 %v499, 2147483648
  %v512 = vor.u32 1.1754944e-38, %v511
  %v513 = vsel %vm510, %v512, %v508
  %v514 = vmul.f32 1.0, %v513
  %v515 = vtanh.pop %v495
  %v516 = vmul.f32 %v514, %v457
  %518 = vrot.lane.b32.xlu0 %v515, 64
  %v519 = vpop.permute.xlu0 %518
  %v521 = vmul.f32 %v514, %v519
  %523 = vrot.lane.b32.xlu0 %v521, 32
  %v524 = vpop.permute.xlu0 %523
  %v526 = vadd.f32 %v516, %v524
  %v527 = vtanh.pop %v526
  %529 = vrot.lane.b32.xlu0 %v527, 64
  %v530 = vpop.permute.xlu0 %529
  %v532 = vmul.f32 %v514, %v530
  %534 = vrot.lane.b32.xlu0 %v532, 32
  %v535 = vpop.permute.xlu0 %534
  %537 = vst.msk [vmem:[#allocation2 + $0x20] sm:$0xff] %vm77, %v535
  %v538 = vld [vmem:[%s2] sm:$0xff]
  %v539 = vld [vmem:[%s2 + $0x8] sm:$0xff]
  %v540 = vld [vmem:[%s2 + $0x10] sm:$0xff]
  %v541 = vld [vmem:[%s2 + $0x18] sm:$0xff]
  %v542 = vsel %vm77, %v535, 0
  %544 = vmatpush.msra.mxu0 0.0
  %545 = vmatpush.msra.mxu0 0.0
  %546 = vmatpush.msra.mxu0 0.0
  %547 = vmatpush.msra.mxu0 0.0
  %548 = vmatpush.msra.mxu0 0.0
  %549 = vmatpush.msra.mxu0 0.0
  %550 = vmatpush.msra.mxu0 0.0
  %551 = vmatpush.msra.mxu0 0.0
  %552 = vmatpush.msra.mxu0 0.0
  %553 = vmatpush.msra.mxu0 0.0
  %554 = vmatpush.msra.mxu0 0.0
  %555 = vmatpush.msra.mxu0 0.0
  %556 = vmatpush.msra.mxu0 %v541
  %557 = vmatpush.msra.mxu0 %v540
  %558 = vmatpush.msra.mxu0 %v539
  %559 = vmatpush.msra.mxu0 %v538
  %560 = vmatmul.f32.gmra.mxu0 %v542
  %v561 = vpop.f32.mrf.mxu0
  %v562 = vadd.f32 0.0, %v561
  %563 = vdwg.mxu0
  %v564 = vadd.f32 %v135, %v562
  %v565 = vxor.u32 %v564, 2147483648
  %v566 = vmul.f32 %v565, 1.442695
  %v567 = vpow.pop %v566
  %v568 = vadd.f32 %v567, 1.0
  %v569 = vrcp.pop %v568
  %v570 = vmul.f32 %v568, %v569
  %v571 = vsub.f32 1.0, %v570
  %v572 = vmul.f32 %v569, %v571
  %v573 = vadd.f32 %v569, %v572
  %vm574 = vweird.f32 %v568
  %vm575 = vweird.f32 %v569
  %vm576 = vmor %vm574, %vm575
  %v577 = vsel %vm576, %v569, %v573
  %v578 = vand.u32 2147483647, %v568
  %vm579 = vcmp.eq.f32.partialorder %v578, 8.507059e+37
  %v580 = vand.u32 %v568, 2147483648
  %v581 = vor.u32 1.1754944e-38, %v580
  %v582 = vsel %vm579, %v581, %v577
  %v583 = vmul.f32 1.0, %v582
  %v584 = vtanh.pop %v564
  %v585 = vmul.f32 %v583, %v526
  %587 = vrot.lane.b32.xlu0 %v584, 64
  %v588 = vpop.permute.xlu0 %587
  %v590 = vmul.f32 %v583, %v588
  %592 = vrot.lane.b32.xlu0 %v590, 32
  %v593 = vpop.permute.xlu0 %592
  %v595 = vadd.f32 %v585, %v593
  %v596 = vtanh.pop %v595
  %598 = vrot.lane.b32.xlu0 %v596, 64
  %v599 = vpop.permute.xlu0 %598
  %v601 = vmul.f32 %v583, %v599
  %603 = vrot.lane.b32.xlu0 %v601, 32
  %v604 = vpop.permute.xlu0 %603
  %606 = vst.msk [vmem:[#allocation2 + $0x28] sm:$0xff] %vm77, %v604
  %v607 = vld [vmem:[%s2] sm:$0xff]
  %v608 = vld [vmem:[%s2 + $0x8] sm:$0xff]
  %v609 = vld [vmem:[%s2 + $0x10] sm:$0xff]
  %v610 = vld [vmem:[%s2 + $0x18] sm:$0xff]
  %v611 = vsel %vm77, %v604, 0
  %613 = vmatpush.msra.mxu0 0.0
  %614 = vmatpush.msra.mxu0 0.0
  %615 = vmatpush.msra.mxu0 0.0
  %616 = vmatpush.msra.mxu0 0.0
  %617 = vmatpush.msra.mxu0 0.0
  %618 = vmatpush.msra.mxu0 0.0
  %619 = vmatpush.msra.mxu0 0.0
  %620 = vmatpush.msra.mxu0 0.0
  %621 = vmatpush.msra.mxu0 0.0
  %622 = vmatpush.msra.mxu0 0.0
  %623 = vmatpush.msra.mxu0 0.0
  %624 = vmatpush.msra.mxu0 0.0
  %625 = vmatpush.msra.mxu0 %v610
  %626 = vmatpush.msra.mxu0 %v609
  %627 = vmatpush.msra.mxu0 %v608
  %628 = vmatpush.msra.mxu0 %v607
  %629 = vmatmul.f32.gmra.mxu0 %v611
  %v630 = vpop.f32.mrf.mxu0
  %v631 = vadd.f32 0.0, %v630
  %632 = vdwg.mxu0
  %v633 = vadd.f32 %v138, %v631
  %v634 = vxor.u32 %v633, 2147483648
  %v635 = vmul.f32 %v634, 1.442695
  %v636 = vpow.pop %v635
  %v637 = vadd.f32 %v636, 1.0
  %v638 = vrcp.pop %v637
  %v639 = vmul.f32 %v637, %v638
  %v640 = vsub.f32 1.0, %v639
  %v641 = vmul.f32 %v638, %v640
  %v642 = vadd.f32 %v638, %v641
  %vm643 = vweird.f32 %v637
  %vm644 = vweird.f32 %v638
  %vm645 = vmor %vm643, %vm644
  %v646 = vsel %vm645, %v638, %v642
  %v647 = vand.u32 2147483647, %v637
  %vm648 = vcmp.eq.f32.partialorder %v647, 8.507059e+37
  %v649 = vand.u32 %v637, 2147483648
  %v650 = vor.u32 1.1754944e-38, %v649
  %v651 = vsel %vm648, %v650, %v646
  %v652 = vmul.f32 1.0, %v651
  %v653 = vtanh.pop %v633
  %v654 = vmul.f32 %v652, %v595
  %656 = vrot.lane.b32.xlu0 %v653, 64
  %v657 = vpop.permute.xlu0 %656
  %v659 = vmul.f32 %v652, %v657
  %661 = vrot.lane.b32.xlu0 %v659, 32
  %v662 = vpop.permute.xlu0 %661
  %v664 = vadd.f32 %v654, %v662
  %v665 = vtanh.pop %v664
  %667 = vrot.lane.b32.xlu0 %v665, 64
  %v668 = vpop.permute.xlu0 %667
  %v670 = vmul.f32 %v652, %v668
  %672 = vrot.lane.b32.xlu0 %v670, 32
  %v673 = vpop.permute.xlu0 %672
  %675 = vst.msk [vmem:[#allocation2 + $0x30] sm:$0xff] %vm77, %v673
  %v676 = vld [vmem:[%s2] sm:$0xff]
  %v677 = vld [vmem:[%s2 + $0x8] sm:$0xff]
  %v678 = vld [vmem:[%s2 + $0x10] sm:$0xff]
  %v679 = vld [vmem:[%s2 + $0x18] sm:$0xff]
  %v680 = vsel %vm77, %v673, 0
  %682 = vmatpush.msra.mxu0 0.0
  %683 = vmatpush.msra.mxu0 0.0
  %684 = vmatpush.msra.mxu0 0.0
  %685 = vmatpush.msra.mxu0 0.0
  %686 = vmatpush.msra.mxu0 0.0
  %687 = vmatpush.msra.mxu0 0.0
  %688 = vmatpush.msra.mxu0 0.0
  %689 = vmatpush.msra.mxu0 0.0
  %690 = vmatpush.msra.mxu0 0.0
  %691 = vmatpush.msra.mxu0 0.0
  %692 = vmatpush.msra.mxu0 0.0
  %693 = vmatpush.msra.mxu0 0.0
  %694 = vmatpush.msra.mxu0 %v679
  %695 = vmatpush.msra.mxu0 %v678
  %696 = vmatpush.msra.mxu0 %v677
  %697 = vmatpush.msra.mxu0 %v676
  %698 = vmatmul.f32.gmra.mxu0 %v680
  %v699 = vpop.f32.mrf.mxu0
  %v700 = vadd.f32 0.0, %v699
  %701 = vdwg.mxu0
  %v702 = vadd.f32 %v141, %v700
  %v703 = vxor.u32 %v702, 2147483648
  %v704 = vmul.f32 %v703, 1.442695
  %v705 = vpow.pop %v704
  %v706 = vadd.f32 %v705, 1.0
  %v707 = vrcp.pop %v706
  %v708 = vmul.f32 %v706, %v707
  %v709 = vsub.f32 1.0, %v708
  %v710 = vmul.f32 %v707, %v709
  %v711 = vadd.f32 %v707, %v710
  %vm712 = vweird.f32 %v706
  %vm713 = vweird.f32 %v707
  %vm714 = vmor %vm712, %vm713
  %v715 = vsel %vm714, %v707, %v711
  %v716 = vand.u32 2147483647, %v706
  %vm717 = vcmp.eq.f32.partialorder %v716, 8.507059e+37
  %v718 = vand.u32 %v706, 2147483648
  %v719 = vor.u32 1.1754944e-38, %v718
  %v720 = vsel %vm717, %v719, %v715
  %v721 = vmul.f32 1.0, %v720
  %v722 = vtanh.pop %v702
  %v723 = vmul.f32 %v721, %v664
  %725 = vrot.lane.b32.xlu0 %v722, 64
  %v726 = vpop.permute.xlu0 %725
  %v728 = vmul.f32 %v721, %v726
  %730 = vrot.lane.b32.xlu0 %v728, 32
  %v731 = vpop.permute.xlu0 %730
  %v733 = vadd.f32 %v723, %v731
  %v734 = vtanh.pop %v733
  %736 = vrot.lane.b32.xlu0 %v734, 64
  %v737 = vpop.permute.xlu0 %736
  %v739 = vmul.f32 %v721, %v737
  %741 = vrot.lane.b32.xlu0 %v739, 32
  %v742 = vpop.permute.xlu0 %741
  %744 = vst.msk [vmem:[#allocation2 + $0x38] sm:$0xff] %vm77, %v742
  %v745 = vld [vmem:[%s5] sm:$0xff]
  %v746 = vld [vmem:[%s5 + $0x8] sm:$0xff]
  %v747 = vld [vmem:[%s5 + $0x10] sm:$0xff]
  %v748 = vld [vmem:[%s5 + $0x18] sm:$0xff]
  %749 = vmatpush.msra.mxu0 0.0
  %750 = vmatpush.msra.mxu0 0.0
  %751 = vmatpush.msra.mxu0 0.0
  %752 = vmatpush.msra.mxu0 0.0
  %753 = vmatpush.msra.mxu0 0.0
  %754 = vmatpush.msra.mxu0 0.0
  %755 = vmatpush.msra.mxu0 0.0
  %756 = vmatpush.msra.mxu0 0.0
  %757 = vmatpush.msra.mxu0 0.0
  %758 = vmatpush.msra.mxu0 0.0
  %759 = vmatpush.msra.mxu0 0.0
  %760 = vmatpush.msra.mxu0 0.0
  %761 = vmatpush.msra.mxu0 %v748
  %762 = vmatpush.msra.mxu0 %v747
  %763 = vmatpush.msra.mxu0 %v746
  %764 = vmatpush.msra.mxu0 %v745
  %765 = vmatmul.f32.gmra.mxu0 %v197
  %v766 = vpop.f32.mrf.mxu0
  %v767 = vadd.f32 0.0, %v766
  %768 = vdwg.mxu0
  %v769 = vadd.f32 %v190, %v767
  %v770 = vxor.u32 %v769, 2147483648
  %v771 = vmul.f32 %v770, 1.442695
  %v772 = vpow.pop %v771
  %v773 = vadd.f32 %v772, 1.0
  %v774 = vrcp.pop %v773
  %v775 = vmul.f32 %v773, %v774
  %v776 = vsub.f32 1.0, %v775
  %v777 = vmul.f32 %v774, %v776
  %v778 = vadd.f32 %v774, %v777
  %vm779 = vweird.f32 %v773
  %vm780 = vweird.f32 %v774
  %vm781 = vmor %vm779, %vm780
  %v782 = vsel %vm781, %v774, %v778
  %v783 = vand.u32 2147483647, %v773
  %vm784 = vcmp.eq.f32.partialorder %v783, 8.507059e+37
  %v785 = vand.u32 %v773, 2147483648
  %v786 = vor.u32 1.1754944e-38, %v785
  %v787 = vsel %vm784, %v786, %v782
  %v788 = vmul.f32 1.0, %v787
  %v789 = vtanh.pop %v769
  %v790 = vmul.f32 %v788, 0.0
  %792 = vrot.lane.b32.xlu0 %v789, 64
  %v793 = vpop.permute.xlu0 %792
  %v795 = vmul.f32 %v788, %v793
  %797 = vrot.lane.b32.xlu0 %v795, 32
  %v798 = vpop.permute.xlu0 %797
  %v800 = vadd.f32 %v790, %v798
  %v801 = vtanh.pop %v800
  %803 = vrot.lane.b32.xlu0 %v801, 64
  %v804 = vpop.permute.xlu0 %803
  %v806 = vmul.f32 %v788, %v804
  %808 = vrot.lane.b32.xlu0 %v806, 32
  %v809 = vpop.permute.xlu0 %808
  %811 = vst.msk [vmem:[#allocation3 + $0x38] sm:$0xff] %vm77, %v809
  %v812 = vld [vmem:[%s5] sm:$0xff]
  %v813 = vld [vmem:[%s5 + $0x8] sm:$0xff]
  %v814 = vld [vmem:[%s5 + $0x10] sm:$0xff]
  %v815 = vld [vmem:[%s5 + $0x18] sm:$0xff]
  %v816 = vsel %vm77, %v809, 0
  %818 = vmatpush.msra.mxu0 0.0
  %819 = vmatpush.msra.mxu0 0.0
  %820 = vmatpush.msra.mxu0 0.0
  %821 = vmatpush.msra.mxu0 0.0
  %822 = vmatpush.msra.mxu0 0.0
  %823 = vmatpush.msra.mxu0 0.0
  %824 = vmatpush.msra.mxu0 0.0
  %825 = vmatpush.msra.mxu0 0.0
  %826 = vmatpush.msra.mxu0 0.0
  %827 = vmatpush.msra.mxu0 0.0
  %828 = vmatpush.msra.mxu0 0.0
  %829 = vmatpush.msra.mxu0 0.0
  %830 = vmatpush.msra.mxu0 %v815
  %831 = vmatpush.msra.mxu0 %v814
  %832 = vmatpush.msra.mxu0 %v813
  %833 = vmatpush.msra.mxu0 %v812
  %834 = vmatmul.f32.gmra.mxu0 %v816
  %v835 = vpop.f32.mrf.mxu0
  %v836 = vadd.f32 0.0, %v835
  %837 = vdwg.mxu0
  %v838 = vadd.f32 %v187, %v836
  %v839 = vxor.u32 %v838, 2147483648
  %v840 = vmul.f32 %v839, 1.442695
  %v841 = vpow.pop %v840
  %v842 = vadd.f32 %v841, 1.0
  %v843 = vrcp.pop %v842
  %v844 = vmul.f32 %v842, %v843
  %v845 = vsub.f32 1.0, %v844
  %v846 = vmul.f32 %v843, %v845
  %v847 = vadd.f32 %v843, %v846
  %vm848 = vweird.f32 %v842
  %vm849 = vweird.f32 %v843
  %vm850 = vmor %vm848, %vm849
  %v851 = vsel %vm850, %v843, %v847
  %v852 = vand.u32 2147483647, %v842
  %vm853 = vcmp.eq.f32.partialorder %v852, 8.507059e+37
  %v854 = vand.u32 %v842, 2147483648
  %v855 = vor.u32 1.1754944e-38, %v854
  %v856 = vsel %vm853, %v855, %v851
  %v857 = vmul.f32 1.0, %v856
  %v858 = vtanh.pop %v838
  %v859 = vmul.f32 %v857, %v800
  %861 = vrot.lane.b32.xlu0 %v858, 64
  %v862 = vpop.permute.xlu0 %861
  %v864 = vmul.f32 %v857, %v862
  %866 = vrot.lane.b32.xlu0 %v864, 32
  %v867 = vpop.permute.xlu0 %866
  %v869 = vadd.f32 %v859, %v867
  %v870 = vtanh.pop %v869
  %872 = vrot.lane.b32.xlu0 %v870, 64
  %v873 = vpop.permute.xlu0 %872
  %v875 = vmul.f32 %v857, %v873
  %877 = vrot.lane.b32.xlu0 %v875, 32
  %v878 = vpop.permute.xlu0 %877
  %880 = vst.msk [vmem:[#allocation3 + $0x30] sm:$0xff] %vm77, %v878
  %v881 = vld [vmem:[%s5] sm:$0xff]
  %v882 = vld [vmem:[%s5 + $0x8] sm:$0xff]
  %v883 = vld [vmem:[%s5 + $0x10] sm:$0xff]
  %v884 = vld [vmem:[%s5 + $0x18] sm:$0xff]
  %v885 = vsel %vm77, %v878, 0
  %887 = vmatpush.msra.mxu0 0.0
  %888 = vmatpush.msra.mxu0 0.0
  %889 = vmatpush.msra.mxu0 0.0
  %890 = vmatpush.msra.mxu0 0.0
  %891 = vmatpush.msra.mxu0 0.0
  %892 = vmatpush.msra.mxu0 0.0
  %893 = vmatpush.msra.mxu0 0.0
  %894 = vmatpush.msra.mxu0 0.0
  %895 = vmatpush.msra.mxu0 0.0
  %896 = vmatpush.msra.mxu0 0.0
  %897 = vmatpush.msra.mxu0 0.0
  %898 = vmatpush.msra.mxu0 0.0
  %899 = vmatpush.msra.mxu0 %v884
  %900 = vmatpush.msra.mxu0 %v883
  %901 = vmatpush.msra.mxu0 %v882
  %902 = vmatpush.msra.mxu0 %v881
  %903 = vmatmul.f32.gmra.mxu0 %v885
  %v904 = vpop.f32.mrf.mxu0
  %v905 = vadd.f32 0.0, %v904
  %906 = vdwg.mxu0
  %v907 = vadd.f32 %v184, %v905
  %v908 = vxor.u32 %v907, 2147483648
  %v909 = vmul.f32 %v908, 1.442695
  %v910 = vpow.pop %v909
  %v911 = vadd.f32 %v910, 1.0
  %v912 = vrcp.pop %v911
  %v913 = vmul.f32 %v911, %v912
  %v914 = vsub.f32 1.0, %v913
  %v915 = vmul.f32 %v912, %v914
  %v916 = vadd.f32 %v912, %v915
  %vm917 = vweird.f32 %v911
  %vm918 = vweird.f32 %v912
  %vm919 = vmor %vm917, %vm918
  %v920 = vsel %vm919, %v912, %v916
  %v921 = vand.u32 2147483647, %v911
  %vm922 = vcmp.eq.f32.partialorder %v921, 8.507059e+37
  %v923 = vand.u32 %v911, 2147483648
  %v924 = vor.u32 1.1754944e-38, %v923
  %v925 = vsel %vm922, %v924, %v920
  %v926 = vmul.f32 1.0, %v925
  %v927 = vtanh.pop %v907
  %v928 = vmul.f32 %v926, %v869
  %930 = vrot.lane.b32.xlu0 %v927, 64
  %v931 = vpop.permute.xlu0 %930
  %v933 = vmul.f32 %v926, %v931
  %935 = vrot.lane.b32.xlu0 %v933, 32
  %v936 = vpop.permute.xlu0 %935
  %v938 = vadd.f32 %v928, %v936
  %v939 = vtanh.pop %v938
  %941 = vrot.lane.b32.xlu0 %v939, 64
  %v942 = vpop.permute.xlu0 %941
  %v944 = vmul.f32 %v926, %v942
  %946 = vrot.lane.b32.xlu0 %v944, 32
  %v947 = vpop.permute.xlu0 %946
  %949 = vst.msk [vmem:[#allocation3 + $0x28] sm:$0xff] %vm77, %v947
  %v950 = vld [vmem:[%s5] sm:$0xff]
  %v951 = vld [vmem:[%s5 + $0x8] sm:$0xff]
  %v952 = vld [vmem:[%s5 + $0x10] sm:$0xff]
  %v953 = vld [vmem:[%s5 + $0x18] sm:$0xff]
  %v954 = vsel %vm77, %v947, 0
  %956 = vmatpush.msra.mxu0 0.0
  %957 = vmatpush.msra.mxu0 0.0
  %958 = vmatpush.msra.mxu0 0.0
  %959 = vmatpush.msra.mxu0 0.0
  %960 = vmatpush.msra.mxu0 0.0
  %961 = vmatpush.msra.mxu0 0.0
  %962 = vmatpush.msra.mxu0 0.0
  %963 = vmatpush.msra.mxu0 0.0
  %964 = vmatpush.msra.mxu0 0.0
  %965 = vmatpush.msra.mxu0 0.0
  %966 = vmatpush.msra.mxu0 0.0
  %967 = vmatpush.msra.mxu0 0.0
  %968 = vmatpush.msra.mxu0 %v953
  %969 = vmatpush.msra.mxu0 %v952
  %970 = vmatpush.msra.mxu0 %v951
  %971 = vmatpush.msra.mxu0 %v950
  %972 = vmatmul.f32.gmra.mxu0 %v954
  %v973 = vpop.f32.mrf.mxu0
  %v974 = vadd.f32 0.0, %v973
  %975 = vdwg.mxu0
  %v976 = vadd.f32 %v181, %v974
  %v977 = vxor.u32 %v976, 2147483648
  %v978 = vmul.f32 %v977, 1.442695
  %v979 = vpow.pop %v978
  %v980 = vadd.f32 %v979, 1.0
  %v981 = vrcp.pop %v980
  %v982 = vmul.f32 %v980, %v981
  %v983 = vsub.f32 1.0, %v982
  %v984 = vmul.f32 %v981, %v983
  %v985 = vadd.f32 %v981, %v984
  %vm986 = vweird.f32 %v980
  %vm987 = vweird.f32 %v981
  %vm988 = vmor %vm986, %vm987
  %v989 = vsel %vm988, %v981, %v985
  %v990 = vand.u32 2147483647, %v980
  %vm991 = vcmp.eq.f32.partialorder %v990, 8.507059e+37
  %v992 = vand.u32 %v980, 2147483648
  %v993 = vor.u32 1.1754944e-38, %v992
  %v994 = vsel %vm991, %v993, %v989
  %v995 = vmul.f32 1.0, %v994
  %v996 = vtanh.pop %v976
  %v997 = vmul.f32 %v995, %v938
  %999 = vrot.lane.b32.xlu0 %v996, 64
  %v1000 = vpop.permute.xlu0 %999
  %v1002 = vmul.f32 %v995, %v1000
  %1004 = vrot.lane.b32.xlu0 %v1002, 32
  %v1005 = vpop.permute.xlu0 %1004
  %v1007 = vadd.f32 %v997, %v1005
  %v1008 = vtanh.pop %v1007
  %1010 = vrot.lane.b32.xlu0 %v1008, 64
  %v1011 = vpop.permute.xlu0 %1010
  %v1013 = vmul.f32 %v995, %v1011
  %1015 = vrot.lane.b32.xlu0 %v1013, 32
  %v1016 = vpop.permute.xlu0 %1015
  %1018 = vst.msk [vmem:[#allocation3 + $0x20] sm:$0xff] %vm77, %v1016
  %v1019 = vld [vmem:[%s5] sm:$0xff]
  %v1020 = vld [vmem:[%s5 + $0x8] sm:$0xff]
  %v1021 = vld [vmem:[%s5 + $0x10] sm:$0xff]
  %v1022 = vld [vmem:[%s5 + $0x18] sm:$0xff]
  %v1023 = vsel %vm77, %v1016, 0
  %1025 = vmatpush.msra.mxu0 0.0
  %1026 = vmatpush.msra.mxu0 0.0
  %1027 = vmatpush.msra.mxu0 0.0
  %1028 = vmatpush.msra.mxu0 0.0
  %1029 = vmatpush.msra.mxu0 0.0
  %1030 = vmatpush.msra.mxu0 0.0
  %1031 = vmatpush.msra.mxu0 0.0
  %1032 = vmatpush.msra.mxu0 0.0
  %1033 = vmatpush.msra.mxu0 0.0
  %1034 = vmatpush.msra.mxu0 0.0
  %1035 = vmatpush.msra.mxu0 0.0
  %1036 = vmatpush.msra.mxu0 0.0
  %1037 = vmatpush.msra.mxu0 %v1022
  %1038 = vmatpush.msra.mxu0 %v1021
  %1039 = vmatpush.msra.mxu0 %v1020
  %1040 = vmatpush.msra.mxu0 %v1019
  %1041 = vmatmul.f32.gmra.mxu0 %v1023
  %v1042 = vpop.f32.mrf.mxu0
  %v1043 = vadd.f32 0.0, %v1042
  %1044 = vdwg.mxu0
  %v1045 = vadd.f32 %v178, %v1043
  %v1046 = vxor.u32 %v1045, 2147483648
  %v1047 = vmul.f32 %v1046, 1.442695
  %v1048 = vpow.pop %v1047
  %v1049 = vadd.f32 %v1048, 1.0
  %v1050 = vrcp.pop %v1049
  %v1051 = vmul.f32 %v1049, %v1050
  %v1052 = vsub.f32 1.0, %v1051
  %v1053 = vmul.f32 %v1050, %v1052
  %v1054 = vadd.f32 %v1050, %v1053
  %vm1055 = vweird.f32 %v1049
  %vm1056 = vweird.f32 %v1050
  %vm1057 = vmor %vm1055, %vm1056
  %v1058 = vsel %vm1057, %v1050, %v1054
  %v1059 = vand.u32 2147483647, %v1049
  %vm1060 = vcmp.eq.f32.partialorder %v1059, 8.507059e+37
  %v1061 = vand.u32 %v1049, 2147483648
  %v1062 = vor.u32 1.1754944e-38, %v1061
  %v1063 = vsel %vm1060, %v1062, %v1058
  %v1064 = vmul.f32 1.0, %v1063
  %v1065 = vtanh.pop %v1045
  %v1066 = vmul.f32 %v1064, %v1007
  %1068 = vrot.lane.b32.xlu0 %v1065, 64
  %v1069 = vpop.permute.xlu0 %1068
  %v1071 = vmul.f32 %v1064, %v1069
  %1073 = vrot.lane.b32.xlu0 %v1071, 32
  %v1074 = vpop.permute.xlu0 %1073
  %v1076 = vadd.f32 %v1066, %v1074
  %v1077 = vtanh.pop %v1076
  %1079 = vrot.lane.b32.xlu0 %v1077, 64
  %v1080 = vpop.permute.xlu0 %1079
  %v1082 = vmul.f32 %v1064, %v1080
  %1084 = vrot.lane.b32.xlu0 %v1082, 32
  %v1085 = vpop.permute.xlu0 %1084
  %1087 = vst.msk [vmem:[#allocation3 + $0x18] sm:$0xff] %vm77, %v1085
  %v1088 = vld [vmem:[%s5] sm:$0xff]
  %v1089 = vld [vmem:[%s5 + $0x8] sm:$0xff]
  %v1090 = vld [vmem:[%s5 + $0x10] sm:$0xff]
  %v1091 = vld [vmem:[%s5 + $0x18] sm:$0xff]
  %v1092 = vsel %vm77, %v1085, 0
  %1094 = vmatpush.msra.mxu0 0.0
  %1095 = vmatpush.msra.mxu0 0.0
  %1096 = vmatpush.msra.mxu0 0.0
  %1097 = vmatpush.msra.mxu0 0.0
  %1098 = vmatpush.msra.mxu0 0.0
  %1099 = vmatpush.msra.mxu0 0.0
  %1100 = vmatpush.msra.mxu0 0.0
  %1101 = vmatpush.msra.mxu0 0.0
  %1102 = vmatpush.msra.mxu0 0.0
  %1103 = vmatpush.msra.mxu0 0.0
  %1104 = vmatpush.msra.mxu0 0.0
  %1105 = vmatpush.msra.mxu0 0.0
  %1106 = vmatpush.msra.mxu0 %v1091
  %1107 = vmatpush.msra.mxu0 %v1090
  %1108 = vmatpush.msra.mxu0 %v1089
  %1109 = vmatpush.msra.mxu0 %v1088
  %1110 = vmatmul.f32.gmra.mxu0 %v1092
  %v1111 = vpop.f32.mrf.mxu0
  %v1112 = vadd.f32 0.0, %v1111
  %1113 = vdwg.mxu0
  %v1114 = vadd.f32 %v175, %v1112
  %v1115 = vxor.u32 %v1114, 2147483648
  %v1116 = vmul.f32 %v1115, 1.442695
  %v1117 = vpow.pop %v1116
  %v1118 = vadd.f32 %v1117, 1.0
  %v1119 = vrcp.pop %v1118
  %v1120 = vmul.f32 %v1118, %v1119
  %v1121 = vsub.f32 1.0, %v1120
  %v1122 = vmul.f32 %v1119, %v1121
  %v1123 = vadd.f32 %v1119, %v1122
  %vm1124 = vweird.f32 %v1118
  %vm1125 = vweird.f32 %v1119
  %vm1126 = vmor %vm1124, %vm1125
  %v1127 = vsel %vm1126, %v1119, %v1123
  %v1128 = vand.u32 2147483647, %v1118
  %vm1129 = vcmp.eq.f32.partialorder %v1128, 8.507059e+37
  %v1130 = vand.u32 %v1118, 2147483648
  %v1131 = vor.u32 1.1754944e-38, %v1130
  %v1132 = vsel %vm1129, %v1131, %v1127
  %v1133 = vmul.f32 1.0, %v1132
  %v1134 = vtanh.pop %v1114
  %v1135 = vmul.f32 %v1133, %v1076
  %1137 = vrot.lane.b32.xlu0 %v1134, 64
  %v1138 = vpop.permute.xlu0 %1137
  %v1140 = vmul.f32 %v1133, %v1138
  %1142 = vrot.lane.b32.xlu0 %v1140, 32
  %v1143 = vpop.permute.xlu0 %1142
  %v1145 = vadd.f32 %v1135, %v1143
  %v1146 = vtanh.pop %v1145
  %1148 = vrot.lane.b32.xlu0 %v1146, 64
  %v1149 = vpop.permute.xlu0 %1148
  %v1151 = vmul.f32 %v1133, %v1149
  %1153 = vrot.lane.b32.xlu0 %v1151, 32
  %v1154 = vpop.permute.xlu0 %1153
  %1156 = vst.msk [vmem:[#allocation3 + $0x10] sm:$0xff] %vm77, %v1154
  %v1157 = vld [vmem:[%s5] sm:$0xff]
  %v1158 = vld [vmem:[%s5 + $0x8] sm:$0xff]
  %v1159 = vld [vmem:[%s5 + $0x10] sm:$0xff]
  %v1160 = vld [vmem:[%s5 + $0x18] sm:$0xff]
  %v1161 = vsel %vm77, %v1154, 0
  %1163 = vmatpush.msra.mxu0 0.0
  %1164 = vmatpush.msra.mxu0 0.0
  %1165 = vmatpush.msra.mxu0 0.0
  %1166 = vmatpush.msra.mxu0 0.0
  %1167 = vmatpush.msra.mxu0 0.0
  %1168 = vmatpush.msra.mxu0 0.0
  %1169 = vmatpush.msra.mxu0 0.0
  %1170 = vmatpush.msra.mxu0 0.0
  %1171 = vmatpush.msra.mxu0 0.0
  %1172 = vmatpush.msra.mxu0 0.0
  %1173 = vmatpush.msra.mxu0 0.0
  %1174 = vmatpush.msra.mxu0 0.0
  %1175 = vmatpush.msra.mxu0 %v1160
  %1176 = vmatpush.msra.mxu0 %v1159
  %1177 = vmatpush.msra.mxu0 %v1158
  %1178 = vmatpush.msra.mxu0 %v1157
  %1179 = vmatmul.f32.gmra.mxu0 %v1161
  %v1180 = vpop.f32.mrf.mxu0
  %v1181 = vadd.f32 0.0, %v1180
  %1182 = vdwg.mxu0
  %v1183 = vadd.f32 %v172, %v1181
  %v1184 = vxor.u32 %v1183, 2147483648
  %v1185 = vmul.f32 %v1184, 1.442695
  %v1186 = vpow.pop %v1185
  %v1187 = vadd.f32 %v1186, 1.0
  %v1188 = vrcp.pop %v1187
  %v1189 = vmul.f32 %v1187, %v1188
  %v1190 = vsub.f32 1.0, %v1189
  %v1191 = vmul.f32 %v1188, %v1190
  %v1192 = vadd.f32 %v1188, %v1191
  %vm1193 = vweird.f32 %v1187
  %vm1194 = vweird.f32 %v1188
  %vm1195 = vmor %vm1193, %vm1194
  %v1196 = vsel %vm1195, %v1188, %v1192
  %v1197 = vand.u32 2147483647, %v1187
  %vm1198 = vcmp.eq.f32.partialorder %v1197, 8.507059e+37
  %v1199 = vand.u32 %v1187, 2147483648
  %v1200 = vor.u32 1.1754944e-38, %v1199
  %v1201 = vsel %vm1198, %v1200, %v1196
  %v1202 = vmul.f32 1.0, %v1201
  %v1203 = vtanh.pop %v1183
  %v1204 = vmul.f32 %v1202, %v1145
  %1206 = vrot.lane.b32.xlu0 %v1203, 64
  %v1207 = vpop.permute.xlu0 %1206
  %v1209 = vmul.f32 %v1202, %v1207
  %1211 = vrot.lane.b32.xlu0 %v1209, 32
  %v1212 = vpop.permute.xlu0 %1211
  %v1214 = vadd.f32 %v1204, %v1212
  %v1215 = vtanh.pop %v1214
  %1217 = vrot.lane.b32.xlu0 %v1215, 64
  %v1218 = vpop.permute.xlu0 %1217
  %v1220 = vmul.f32 %v1202, %v1218
  %1222 = vrot.lane.b32.xlu0 %v1220, 32
  %v1223 = vpop.permute.xlu0 %1222
  %1225 = vst.msk [vmem:[#allocation3 + $0x8] sm:$0xff] %vm77, %v1223
  %v1226 = vld [vmem:[%s5] sm:$0xff]
  %v1227 = vld [vmem:[%s5 + $0x8] sm:$0xff]
  %v1228 = vld [vmem:[%s5 + $0x10] sm:$0xff]
  %v1229 = vld [vmem:[%s5 + $0x18] sm:$0xff]
  %v1230 = vsel %vm77, %v1223, 0
  %1232 = vmatpush.msra.mxu0 0.0
  %1233 = vmatpush.msra.mxu0 0.0
  %1234 = vmatpush.msra.mxu0 0.0
  %1235 = vmatpush.msra.mxu0 0.0
  %1236 = vmatpush.msra.mxu0 0.0
  %1237 = vmatpush.msra.mxu0 0.0
  %1238 = vmatpush.msra.mxu0 0.0
  %1239 = vmatpush.msra.mxu0 0.0
  %1240 = vmatpush.msra.mxu0 0.0
  %1241 = vmatpush.msra.mxu0 0.0
  %1242 = vmatpush.msra.mxu0 0.0
  %1243 = vmatpush.msra.mxu0 0.0
  %1244 = vmatpush.msra.mxu0 %v1229
  %1245 = vmatpush.msra.mxu0 %v1228
  %1246 = vmatpush.msra.mxu0 %v1227
  %1247 = vmatpush.msra.mxu0 %v1226
  %1248 = vmatmul.f32.gmra.mxu0 %v1230
  %v1249 = vpop.f32.mrf.mxu0
  %v1250 = vadd.f32 0.0, %v1249
  %1251 = vdwg.mxu0
  %v1252 = vadd.f32 %v169, %v1250
  %v1253 = vxor.u32 %v1252, 2147483648
  %v1254 = vmul.f32 %v1253, 1.442695
  %v1255 = vpow.pop %v1254
  %v1256 = vadd.f32 %v1255, 1.0
  %v1257 = vrcp.pop %v1256
  %v1258 = vmul.f32 %v1256, %v1257
  %v1259 = vsub.f32 1.0, %v1258
  %v1260 = vmul.f32 %v1257, %v1259
  %v1261 = vadd.f32 %v1257, %v1260
  %vm1262 = vweird.f32 %v1256
  %vm1263 = vweird.f32 %v1257
  %vm1264 = vmor %vm1262, %vm1263
  %v1265 = vsel %vm1264, %v1257, %v1261
  %v1266 = vand.u32 2147483647, %v1256
  %vm1267 = vcmp.eq.f32.partialorder %v1266, 8.507059e+37
  %v1268 = vand.u32 %v1256, 2147483648
  %v1269 = vor.u32 1.1754944e-38, %v1268
  %v1270 = vsel %vm1267, %v1269, %v1265
  %v1271 = vmul.f32 1.0, %v1270
  %v1272 = vtanh.pop %v1252
  %v1273 = vmul.f32 %v1271, %v1214
  %1275 = vrot.lane.b32.xlu0 %v1272, 64
  %v1276 = vpop.permute.xlu0 %1275
  %v1278 = vmul.f32 %v1271, %v1276
  %1280 = vrot.lane.b32.xlu0 %v1278, 32
  %v1281 = vpop.permute.xlu0 %1280
  %v1283 = vadd.f32 %v1273, %v1281
  %v1284 = vtanh.pop %v1283
  %1286 = vrot.lane.b32.xlu0 %v1284, 64
  %v1287 = vpop.permute.xlu0 %1286
  %v1289 = vmul.f32 %v1271, %v1287
  %1291 = vrot.lane.b32.xlu0 %v1289, 32
  %v1292 = vpop.permute.xlu0 %1291
  %1294 = vst.msk [vmem:[#allocation3] sm:$0xff] %vm77, %v1292
  %v1295 = vld [vmem:[#allocation2] sm:$0xff]
  %v1296 = vld [vmem:[#allocation2 + $0x8] sm:$0xff]
  %v1297 = vld [vmem:[#allocation2 + $0x10] sm:$0xff]
  %v1298 = vld [vmem:[#allocation2 + $0x18] sm:$0xff]
  %v1299 = vld [vmem:[#allocation2 + $0x20] sm:$0xff]
  %v1300 = vld [vmem:[#allocation2 + $0x28] sm:$0xff]
  %v1301 = vld [vmem:[#allocation2 + $0x30] sm:$0xff]
  %v1302 = vld [vmem:[#allocation2 + $0x38] sm:$0xff]
  %v1303 = vld [vmem:[#allocation3] sm:$0xff]
  %v1304 = vld [vmem:[#allocation3 + $0x8] sm:$0xff]
  %v1305 = vld [vmem:[#allocation3 + $0x10] sm:$0xff]
  %v1306 = vld [vmem:[#allocation3 + $0x18] sm:$0xff]
  %v1307 = vld [vmem:[#allocation3 + $0x20] sm:$0xff]
  %v1308 = vld [vmem:[#allocation3 + $0x28] sm:$0xff]
  %v1309 = vld [vmem:[#allocation3 + $0x30] sm:$0xff]
  %v1310 = vld [vmem:[#allocation3 + $0x38] sm:$0xff]
  %v1311 = vld [vmem:[%s7] sm:$0xff]
  %v1312 = vld [vmem:[%s7 + $0x8] sm:$0xff]
  %v1313 = vld [vmem:[%s7 + $0x10] sm:$0xff]
  %v1314 = vld [vmem:[%s7 + $0x18] sm:$0xff]
  %v1315 = vld [vmem:[%s7 + $0x20] sm:$0xff]
  %v1316 = vld [vmem:[%s7 + $0x28] sm:$0xff]
  %v1317 = vld [vmem:[%s7 + $0x30] sm:$0xff]
  %v1318 = vld [vmem:[%s7 + $0x38] sm:$0xff]
  %v1320 = vsel %vm77, %v1303, 0
  %v1323 = vsel %vm77, %v1304, 0
  %v1326 = vsel %vm77, %v1305, 0
  %v1329 = vsel %vm77, %v1306, 0
  %v1332 = vsel %vm77, %v1307, 0
  %v1335 = vsel %vm77, %v1308, 0
  %v1338 = vsel %vm77, %v1309, 0
  %v1341 = vsel %vm77, %v1310, 0
  %1343 = vmatpush.msra.mxu0 0.0
  %1344 = vmatpush.msra.mxu0 0.0
  %1345 = vmatpush.msra.mxu0 0.0
  %1346 = vmatpush.msra.mxu0 0.0
  %1347 = vmatpush.msra.mxu0 0.0
  %1348 = vmatpush.msra.mxu0 0.0
  %1349 = vmatpush.msra.mxu0 0.0
  %1350 = vmatpush.msra.mxu0 0.0
  %1351 = vmatpush.msra.mxu0 0.0
  %1352 = vmatpush.msra.mxu0 0.0
  %1353 = vmatpush.msra.mxu0 0.0
  %1354 = vmatpush.msra.mxu0 0.0
  %1355 = vmatpush.msra.mxu0 %v1318
  %1356 = vmatpush.msra.mxu0 %v1317
  %1357 = vmatpush.msra.mxu0 %v1316
  %1358 = vmatpush.msra.mxu0 %v1315
  %1359 = vmatmul.f32.gmra.mxu0 %v1320
  %v1360 = vpop.f32.mrf.mxu0
  %v1361 = vadd.f32 0.0, %v1360
  %1362 = vmatmul.f32.gmra.mxu0 %v1323
  %v1363 = vpop.f32.mrf.mxu0
  %v1364 = vadd.f32 0.0, %v1363
  %1365 = vmatmul.f32.gmra.mxu0 %v1326
  %v1366 = vpop.f32.mrf.mxu0
  %v1367 = vadd.f32 0.0, %v1366
  %1368 = vmatmul.f32.gmra.mxu0 %v1329
  %v1369 = vpop.f32.mrf.mxu0
  %v1370 = vadd.f32 0.0, %v1369
  %1371 = vmatmul.f32.gmra.mxu0 %v1332
  %v1372 = vpop.f32.mrf.mxu0
  %v1373 = vadd.f32 0.0, %v1372
  %1374 = vmatmul.f32.gmra.mxu0 %v1335
  %v1375 = vpop.f32.mrf.mxu0
  %v1376 = vadd.f32 0.0, %v1375
  %1377 = vmatmul.f32.gmra.mxu0 %v1338
  %v1378 = vpop.f32.mrf.mxu0
  %v1379 = vadd.f32 0.0, %v1378
  %1380 = vmatmul.f32.gmra.mxu0 %v1341
  %v1381 = vpop.f32.mrf.mxu0
  %v1382 = vadd.f32 0.0, %v1381
  %1383 = vdwg.mxu0
  %v1385 = vsel %vm77, %v1295, 0
  %v1388 = vsel %vm77, %v1296, 0
  %v1391 = vsel %vm77, %v1297, 0
  %v1394 = vsel %vm77, %v1298, 0
  %v1397 = vsel %vm77, %v1299, 0
  %v1400 = vsel %vm77, %v1300, 0
  %v1403 = vsel %vm77, %v1301, 0
  %v1406 = vsel %vm77, %v1302, 0
  %1408 = vmatpush.msra.mxu0 0.0
  %1409 = vmatpush.msra.mxu0 0.0
  %1410 = vmatpush.msra.mxu0 0.0
  %1411 = vmatpush.msra.mxu0 0.0
  %1412 = vmatpush.msra.mxu0 0.0
  %1413 = vmatpush.msra.mxu0 0.0
  %1414 = vmatpush.msra.mxu0 0.0
  %1415 = vmatpush.msra.mxu0 0.0
  %1416 = vmatpush.msra.mxu0 0.0
  %1417 = vmatpush.msra.mxu0 0.0
  %1418 = vmatpush.msra.mxu0 0.0
  %1419 = vmatpush.msra.mxu0 0.0
  %1420 = vmatpush.msra.mxu0 %v1314
  %1421 = vmatpush.msra.mxu0 %v1313
  %1422 = vmatpush.msra.mxu0 %v1312
  %1423 = vmatpush.msra.mxu0 %v1311
  %1424 = vmatmul.f32.gmra.mxu0 %v1385
  %v1425 = vpop.f32.mrf.mxu0
  %v1426 = vadd.f32 %v1361, %v1425
  %1427 = vmatmul.f32.gmra.mxu0 %v1388
  %v1428 = vpop.f32.mrf.mxu0
  %v1429 = vadd.f32 %v1364, %v1428
  %1430 = vmatmul.f32.gmra.mxu0 %v1391
  %v1431 = vpop.f32.mrf.mxu0
  %v1432 = vadd.f32 %v1367, %v1431
  %1433 = vmatmul.f32.gmra.mxu0 %v1394
  %v1434 = vpop.f32.mrf.mxu0
  %v1435 = vadd.f32 %v1370, %v1434
  %1436 = vmatmul.f32.gmra.mxu0 %v1397
  %v1437 = vpop.f32.mrf.mxu0
  %v1438 = vadd.f32 %v1373, %v1437
  %1439 = vmatmul.f32.gmra.mxu0 %v1400
  %v1440 = vpop.f32.mrf.mxu0
  %v1441 = vadd.f32 %v1376, %v1440
  %1442 = vmatmul.f32.gmra.mxu0 %v1403
  %v1443 = vpop.f32.mrf.mxu0
  %v1444 = vadd.f32 %v1379, %v1443
  %1445 = vmatmul.f32.gmra.mxu0 %v1406
  %v1446 = vpop.f32.mrf.mxu0
  %v1447 = vadd.f32 %v1382, %v1446
  %1448 = vdwg.mxu0
  %v1449 = vld [vmem:[%s9] sm:$0x1]
  %v1451 = vperm.slane %v1449, 0
  %v1453 = vadd.f32 %v1426, %v1451
  %v1454 = vadd.f32 %v1429, %v1451
  %v1455 = vadd.f32 %v1432, %v1451
  %v1456 = vadd.f32 %v1435, %v1451
  %v1457 = vadd.f32 %v1438, %v1451
  %v1458 = vadd.f32 %v1441, %v1451
  %v1459 = vadd.f32 %v1444, %v1451
  %v1460 = vadd.f32 %v1447, %v1451
  %v1461 = vld [vmem:[%s10] sm:$0xff]
  %v1462 = vld [vmem:[%s10 + $0x8] sm:$0xff]
  %v1463 = vld [vmem:[%s10 + $0x10] sm:$0xff]
  %v1464 = vld [vmem:[%s10 + $0x18] sm:$0xff]
  %v1465 = vld [vmem:[%s10 + $0x20] sm:$0xff]
  %v1466 = vld [vmem:[%s10 + $0x28] sm:$0xff]
  %v1467 = vld [vmem:[%s10 + $0x30] sm:$0xff]
  %v1468 = vld [vmem:[%s10 + $0x38] sm:$0xff]
  %1469 = vmatpush.msra.mxu0 0.0
  %1470 = vmatpush.msra.mxu0 0.0
  %1471 = vmatpush.msra.mxu0 0.0
  %1472 = vmatpush.msra.mxu0 0.0
  %1473 = vmatpush.msra.mxu0 0.0
  %1474 = vmatpush.msra.mxu0 0.0
  %1475 = vmatpush.msra.mxu0 0.0
  %1476 = vmatpush.msra.mxu0 0.0
  %1477 = vmatpush.msra.mxu0 0.0
  %1478 = vmatpush.msra.mxu0 0.0
  %1479 = vmatpush.msra.mxu0 0.0
  %1480 = vmatpush.msra.mxu0 0.0
  %1481 = vmatpush.msra.mxu0 %v1468
  %1482 = vmatpush.msra.mxu0 %v1467
  %1483 = vmatpush.msra.mxu0 %v1466
  %1484 = vmatpush.msra.mxu0 %v1465
  %1485 = vmatmul.f32.gmra.mxu0 %v1320
  %v1486 = vpop.f32.mrf.mxu0
  %v1487 = vadd.f32 0.0, %v1486
  %1488 = vmatmul.f32.gmra.mxu0 %v1323
  %v1489 = vpop.f32.mrf.mxu0
  %v1490 = vadd.f32 0.0, %v1489
  %1491 = vmatmul.f32.gmra.mxu0 %v1326
  %v1492 = vpop.f32.mrf.mxu0
  %v1493 = vadd.f32 0.0, %v1492
  %1494 = vmatmul.f32.gmra.mxu0 %v1329
  %v1495 = vpop.f32.mrf.mxu0
  %v1496 = vadd.f32 0.0, %v1495
  %1497 = vmatmul.f32.gmra.mxu0 %v1332
  %v1498 = vpop.f32.mrf.mxu0
  %v1499 = vadd.f32 0.0, %v1498
  %1500 = vmatmul.f32.gmra.mxu0 %v1335
  %v1501 = vpop.f32.mrf.mxu0
  %v1502 = vadd.f32 0.0, %v1501
  %1503 = vmatmul.f32.gmra.mxu0 %v1338
  %v1504 = vpop.f32.mrf.mxu0
  %v1505 = vadd.f32 0.0, %v1504
  %1506 = vmatmul.f32.gmra.mxu0 %v1341
  %v1507 = vpop.f32.mrf.mxu0
  %v1508 = vadd.f32 0.0, %v1507
  %1509 = vdwg.mxu0
  %1510 = vmatpush.msra.mxu0 0.0
  %1511 = vmatpush.msra.mxu0 0.0
  %1512 = vmatpush.msra.mxu0 0.0
  %1513 = vmatpush.msra.mxu0 0.0
  %1514 = vmatpush.msra.mxu0 0.0
  %1515 = vmatpush.msra.mxu0 0.0
  %1516 = vmatpush.msra.mxu0 0.0
  %1517 = vmatpush.msra.mxu0 0.0
  %1518 = vmatpush.msra.mxu0 0.0
  %1519 = vmatpush.msra.mxu0 0.0
  %1520 = vmatpush.msra.mxu0 0.0
  %1521 = vmatpush.msra.mxu0 0.0
  %1522 = vmatpush.msra.mxu0 %v1464
  %1523 = vmatpush.msra.mxu0 %v1463
  %1524 = vmatpush.msra.mxu0 %v1462
  %1525 = vmatpush.msra.mxu0 %v1461
  %1526 = vmatmul.f32.gmra.mxu0 %v1385
  %v1527 = vpop.f32.mrf.mxu0
  %v1528 = vadd.f32 %v1487, %v1527
  %1529 = vmatmul.f32.gmra.mxu0 %v1388
  %v1530 = vpop.f32.mrf.mxu0
  %v1531 = vadd.f32 %v1490, %v1530
  %1532 = vmatmul.f32.gmra.mxu0 %v1391
  %v1533 = vpop.f32.mrf.mxu0
  %v1534 = vadd.f32 %v1493, %v1533
  %1535 = vmatmul.f32.gmra.mxu0 %v1394
  %v1536 = vpop.f32.mrf.mxu0
  %v1537 = vadd.f32 %v1496, %v1536
  %1538 = vmatmul.f32.gmra.mxu0 %v1397
  %v1539 = vpop.f32.mrf.mxu0
  %v1540 = vadd.f32 %v1499, %v1539
  %1541 = vmatmul.f32.gmra.mxu0 %v1400
  %v1542 = vpop.f32.mrf.mxu0
  %v1543 = vadd.f32 %v1502, %v1542
  %1544 = vmatmul.f32.gmra.mxu0 %v1403
  %v1545 = vpop.f32.mrf.mxu0
  %v1546 = vadd.f32 %v1505, %v1545
  %1547 = vmatmul.f32.gmra.mxu0 %v1406
  %v1548 = vpop.f32.mrf.mxu0
  %v1549 = vadd.f32 %v1508, %v1548
  %1550 = vdwg.mxu0
  %v1551 = vld [vmem:[%s12] sm:$0x1]
  %v1553 = vperm.slane %v1551, 0
  %v1555 = vadd.f32 %v1528, %v1553
  %v1556 = vadd.f32 %v1531, %v1553
  %v1557 = vadd.f32 %v1534, %v1553
  %v1558 = vadd.f32 %v1537, %v1553
  %v1559 = vadd.f32 %v1540, %v1553
  %v1560 = vadd.f32 %v1543, %v1553
  %v1561 = vadd.f32 %v1546, %v1553
  %v1562 = vadd.f32 %v1549, %v1553
  %v1563 = vld [vmem:[%s8] sm:$0xff]
  %v1564 = vld [vmem:[%s8 + $0x8] sm:$0xff]
  %v1565 = vld [vmem:[%s8 + $0x10] sm:$0xff]
  %v1566 = vld [vmem:[%s8 + $0x18] sm:$0xff]
  %1567 = vmatpush.msra.mxu0 0.0
  %1568 = vmatpush.msra.mxu0 0.0
  %1569 = vmatpush.msra.mxu0 0.0
  %1570 = vmatpush.msra.mxu0 0.0
  %1571 = vmatpush.msra.mxu0 0.0
  %1572 = vmatpush.msra.mxu0 0.0
  %1573 = vmatpush.msra.mxu0 0.0
  %1574 = vmatpush.msra.mxu0 0.0
  %1575 = vmatpush.msra.mxu0 0.0
  %1576 = vmatpush.msra.mxu0 0.0
  %1577 = vmatpush.msra.mxu0 0.0
  %1578 = vmatpush.msra.mxu0 0.0
  %1579 = vmatpush.msra.mxu0 %v1566
  %1580 = vmatpush.msra.mxu0 %v1565
  %1581 = vmatpush.msra.mxu0 %v1564
  %1582 = vmatpush.msra.mxu0 %v1563
  %1583 = vmatmul.f32.gmra.mxu0 %v197
  %v1584 = vpop.f32.mrf.mxu0
  %v1585 = vadd.f32 0.0, %v1584
  %1586 = vdwg.mxu0
  %v1587 = vadd.f32 %v1453, %v1585
  %v1588 = vxor.u32 %v1587, 2147483648
  %v1589 = vmul.f32 %v1588, 1.442695
  %v1590 = vpow.pop %v1589
  %v1591 = vadd.f32 %v1590, 1.0
  %v1592 = vrcp.pop %v1591
  %v1593 = vmul.f32 %v1591, %v1592
  %v1594 = vsub.f32 1.0, %v1593
  %v1595 = vmul.f32 %v1592, %v1594
  %v1596 = vadd.f32 %v1592, %v1595
  %vm1597 = vweird.f32 %v1591
  %vm1598 = vweird.f32 %v1592
  %vm1599 = vmor %vm1597, %vm1598
  %v1600 = vsel %vm1599, %v1592, %v1596
  %v1601 = vand.u32 2147483647, %v1591
  %vm1602 = vcmp.eq.f32.partialorder %v1601, 8.507059e+37
  %v1603 = vand.u32 %v1591, 2147483648
  %v1604 = vor.u32 1.1754944e-38, %v1603
  %v1605 = vsel %vm1602, %v1604, %v1600
  %v1606 = vmul.f32 1.0, %v1605
  %v1607 = vtanh.pop %v1587
  %v1608 = vmul.f32 %v1606, 0.0
  %1610 = vrot.lane.b32.xlu0 %v1607, 64
  %v1611 = vpop.permute.xlu0 %1610
  %v1613 = vmul.f32 %v1606, %v1611
  %1615 = vrot.lane.b32.xlu0 %v1613, 32
  %v1616 = vpop.permute.xlu0 %1615
  %v1618 = vadd.f32 %v1608, %v1616
  %v1619 = vtanh.pop %v1618
  %1621 = vrot.lane.b32.xlu0 %v1619, 64
  %v1622 = vpop.permute.xlu0 %1621
  %v1624 = vmul.f32 %v1606, %v1622
  %v1625 = vmax.f32 %v1624, 0.0
  %1627 = vrot.lane.b32.xlu0 %v1624, 32
  %v1628 = vpop.permute.xlu0 %1627
  %v1629 = vsel %vm77, %v1628, 0
  %1631 = vmatpush.msra.mxu0 0.0
  %1632 = vmatpush.msra.mxu0 0.0
  %1633 = vmatpush.msra.mxu0 0.0
  %1634 = vmatpush.msra.mxu0 0.0
  %1635 = vmatpush.msra.mxu0 0.0
  %1636 = vmatpush.msra.mxu0 0.0
  %1637 = vmatpush.msra.mxu0 0.0
  %1638 = vmatpush.msra.mxu0 0.0
  %1639 = vmatpush.msra.mxu0 0.0
  %1640 = vmatpush.msra.mxu0 0.0
  %1641 = vmatpush.msra.mxu0 0.0
  %1642 = vmatpush.msra.mxu0 0.0
  %1643 = vmatpush.msra.mxu0 %v1566
  %1644 = vmatpush.msra.mxu0 %v1565
  %1645 = vmatpush.msra.mxu0 %v1564
  %1646 = vmatpush.msra.mxu0 %v1563
  %1647 = vmatmul.f32.gmra.mxu0 %v1629
  %v1648 = vpop.f32.mrf.mxu0
  %v1649 = vadd.f32 0.0, %v1648
  %1650 = vdwg.mxu0
  %v1651 = vadd.f32 %v1454, %v1649
  %v1652 = vxor.u32 %v1651, 2147483648
  %v1653 = vmul.f32 %v1652, 1.442695
  %v1654 = vpow.pop %v1653
  %v1655 = vadd.f32 %v1654, 1.0
  %v1656 = vrcp.pop %v1655
  %v1657 = vmul.f32 %v1655, %v1656
  %v1658 = vsub.f32 1.0, %v1657
  %v1659 = vmul.f32 %v1656, %v1658
  %v1660 = vadd.f32 %v1656, %v1659
  %vm1661 = vweird.f32 %v1655
  %vm1662 = vweird.f32 %v1656
  %vm1663 = vmor %vm1661, %vm1662
  %v1664 = vsel %vm1663, %v1656, %v1660
  %v1665 = vand.u32 2147483647, %v1655
  %vm1666 = vcmp.eq.f32.partialorder %v1665, 8.507059e+37
  %v1667 = vand.u32 %v1655, 2147483648
  %v1668 = vor.u32 1.1754944e-38, %v1667
  %v1669 = vsel %vm1666, %v1668, %v1664
  %v1670 = vmul.f32 1.0, %v1669
  %v1671 = vtanh.pop %v1651
  %v1672 = vmul.f32 %v1670, %v1618
  %1674 = vrot.lane.b32.xlu0 %v1671, 64
  %v1675 = vpop.permute.xlu0 %1674
  %v1677 = vmul.f32 %v1670, %v1675
  %1679 = vrot.lane.b32.xlu0 %v1677, 32
  %v1680 = vpop.permute.xlu0 %1679
  %v1682 = vadd.f32 %v1672, %v1680
  %v1683 = vtanh.pop %v1682
  %1685 = vrot.lane.b32.xlu0 %v1683, 64
  %v1686 = vpop.permute.xlu0 %1685
  %v1688 = vmul.f32 %v1670, %v1686
  %v1689 = vmax.f32 %v1625, %v1688
  %1691 = vrot.lane.b32.xlu0 %v1688, 32
  %v1692 = vpop.permute.xlu0 %1691
  %v1693 = vsel %vm77, %v1692, 0
  %1695 = vmatpush.msra.mxu0 0.0
  %1696 = vmatpush.msra.mxu0 0.0
  %1697 = vmatpush.msra.mxu0 0.0
  %1698 = vmatpush.msra.mxu0 0.0
  %1699 = vmatpush.msra.mxu0 0.0
  %1700 = vmatpush.msra.mxu0 0.0
  %1701 = vmatpush.msra.mxu0 0.0
  %1702 = vmatpush.msra.mxu0 0.0
  %1703 = vmatpush.msra.mxu0 0.0
  %1704 = vmatpush.msra.mxu0 0.0
  %1705 = vmatpush.msra.mxu0 0.0
  %1706 = vmatpush.msra.mxu0 0.0
  %1707 = vmatpush.msra.mxu0 %v1566
  %1708 = vmatpush.msra.mxu0 %v1565
  %1709 = vmatpush.msra.mxu0 %v1564
  %1710 = vmatpush.msra.mxu0 %v1563
  %1711 = vmatmul.f32.gmra.mxu0 %v1693
  %v1712 = vpop.f32.mrf.mxu0
  %v1713 = vadd.f32 0.0, %v1712
  %1714 = vdwg.mxu0
  %v1715 = vadd.f32 %v1455, %v1713
  %v1716 = vxor.u32 %v1715, 2147483648
  %v1717 = vmul.f32 %v1716, 1.442695
  %v1718 = vpow.pop %v1717
  %v1719 = vadd.f32 %v1718, 1.0
  %v1720 = vrcp.pop %v1719
  %v1721 = vmul.f32 %v1719, %v1720
  %v1722 = vsub.f32 1.0, %v1721
  %v1723 = vmul.f32 %v1720, %v1722
  %v1724 = vadd.f32 %v1720, %v1723
  %vm1725 = vweird.f32 %v1719
  %vm1726 = vweird.f32 %v1720
  %vm1727 = vmor %vm1725, %vm1726
  %v1728 = vsel %vm1727, %v1720, %v1724
  %v1729 = vand.u32 2147483647, %v1719
  %vm1730 = vcmp.eq.f32.partialorder %v1729, 8.507059e+37
  %v1731 = vand.u32 %v1719, 2147483648
  %v1732 = vor.u32 1.1754944e-38, %v1731
  %v1733 = vsel %vm1730, %v1732, %v1728
  %v1734 = vmul.f32 1.0, %v1733
  %v1735 = vtanh.pop %v1715
  %v1736 = vmul.f32 %v1734, %v1682
  %1738 = vrot.lane.b32.xlu0 %v1735, 64
  %v1739 = vpop.permute.xlu0 %1738
  %v1741 = vmul.f32 %v1734, %v1739
  %1743 = vrot.lane.b32.xlu0 %v1741, 32
  %v1744 = vpop.permute.xlu0 %1743
  %v1746 = vadd.f32 %v1736, %v1744
  %v1747 = vtanh.pop %v1746
  %1749 = vrot.lane.b32.xlu0 %v1747, 64
  %v1750 = vpop.permute.xlu0 %1749
  %v1752 = vmul.f32 %v1734, %v1750
  %v1753 = vmax.f32 %v1689, %v1752
  %1755 = vrot.lane.b32.xlu0 %v1752, 32
  %v1756 = vpop.permute.xlu0 %1755
  %v1757 = vsel %vm77, %v1756, 0
  %1759 = vmatpush.msra.mxu0 0.0
  %1760 = vmatpush.msra.mxu0 0.0
  %1761 = vmatpush.msra.mxu0 0.0
  %1762 = vmatpush.msra.mxu0 0.0
  %1763 = vmatpush.msra.mxu0 0.0
  %1764 = vmatpush.msra.mxu0 0.0
  %1765 = vmatpush.msra.mxu0 0.0
  %1766 = vmatpush.msra.mxu0 0.0
  %1767 = vmatpush.msra.mxu0 0.0
  %1768 = vmatpush.msra.mxu0 0.0
  %1769 = vmatpush.msra.mxu0 0.0
  %1770 = vmatpush.msra.mxu0 0.0
  %1771 = vmatpush.msra.mxu0 %v1566
  %1772 = vmatpush.msra.mxu0 %v1565
  %1773 = vmatpush.msra.mxu0 %v1564
  %1774 = vmatpush.msra.mxu0 %v1563
  %1775 = vmatmul.f32.gmra.mxu0 %v1757
  %v1776 = vpop.f32.mrf.mxu0
  %v1777 = vadd.f32 0.0, %v1776
  %1778 = vdwg.mxu0
  %v1779 = vadd.f32 %v1456, %v1777
  %v1780 = vxor.u32 %v1779, 2147483648
  %v1781 = vmul.f32 %v1780, 1.442695
  %v1782 = vpow.pop %v1781
  %v1783 = vadd.f32 %v1782, 1.0
  %v1784 = vrcp.pop %v1783
  %v1785 = vmul.f32 %v1783, %v1784
  %v1786 = vsub.f32 1.0, %v1785
  %v1787 = vmul.f32 %v1784, %v1786
  %v1788 = vadd.f32 %v1784, %v1787
  %vm1789 = vweird.f32 %v1783
  %vm1790 = vweird.f32 %v1784
  %vm1791 = vmor %vm1789, %vm1790
  %v1792 = vsel %vm1791, %v1784, %v1788
  %v1793 = vand.u32 2147483647, %v1783
  %vm1794 = vcmp.eq.f32.partialorder %v1793, 8.507059e+37
  %v1795 = vand.u32 %v1783, 2147483648
  %v1796 = vor.u32 1.1754944e-38, %v1795
  %v1797 = vsel %vm1794, %v1796, %v1792
  %v1798 = vmul.f32 1.0, %v1797
  %v1799 = vtanh.pop %v1779
  %v1800 = vmul.f32 %v1798, %v1746
  %1802 = vrot.lane.b32.xlu0 %v1799, 64
  %v1803 = vpop.permute.xlu0 %1802
  %v1805 = vmul.f32 %v1798, %v1803
  %1807 = vrot.lane.b32.xlu0 %v1805, 32
  %v1808 = vpop.permute.xlu0 %1807
  %v1810 = vadd.f32 %v1800, %v1808
  %v1811 = vtanh.pop %v1810
  %1813 = vrot.lane.b32.xlu0 %v1811, 64
  %v1814 = vpop.permute.xlu0 %1813
  %v1816 = vmul.f32 %v1798, %v1814
  %v1817 = vmax.f32 %v1753, %v1816
  %1819 = vrot.lane.b32.xlu0 %v1816, 32
  %v1820 = vpop.permute.xlu0 %1819
  %v1821 = vsel %vm77, %v1820, 0
  %1823 = vmatpush.msra.mxu0 0.0
  %1824 = vmatpush.msra.mxu0 0.0
  %1825 = vmatpush.msra.mxu0 0.0
  %1826 = vmatpush.msra.mxu0 0.0
  %1827 = vmatpush.msra.mxu0 0.0
  %1828 = vmatpush.msra.mxu0 0.0
  %1829 = vmatpush.msra.mxu0 0.0
  %1830 = vmatpush.msra.mxu0 0.0
  %1831 = vmatpush.msra.mxu0 0.0
  %1832 = vmatpush.msra.mxu0 0.0
  %1833 = vmatpush.msra.mxu0 0.0
  %1834 = vmatpush.msra.mxu0 0.0
  %1835 = vmatpush.msra.mxu0 %v1566
  %1836 = vmatpush.msra.mxu0 %v1565
  %1837 = vmatpush.msra.mxu0 %v1564
  %1838 = vmatpush.msra.mxu0 %v1563
  %1839 = vmatmul.f32.gmra.mxu0 %v1821
  %v1840 = vpop.f32.mrf.mxu0
  %v1841 = vadd.f32 0.0, %v1840
  %1842 = vdwg.mxu0
  %v1843 = vadd.f32 %v1457, %v1841
  %v1844 = vxor.u32 %v1843, 2147483648
  %v1845 = vmul.f32 %v1844, 1.442695
  %v1846 = vpow.pop %v1845
  %v1847 = vadd.f32 %v1846, 1.0
  %v1848 = vrcp.pop %v1847
  %v1849 = vmul.f32 %v1847, %v1848
  %v1850 = vsub.f32 1.0, %v1849
  %v1851 = vmul.f32 %v1848, %v1850
  %v1852 = vadd.f32 %v1848, %v1851
  %vm1853 = vweird.f32 %v1847
  %vm1854 = vweird.f32 %v1848
  %vm1855 = vmor %vm1853, %vm1854
  %v1856 = vsel %vm1855, %v1848, %v1852
  %v1857 = vand.u32 2147483647, %v1847
  %vm1858 = vcmp.eq.f32.partialorder %v1857, 8.507059e+37
  %v1859 = vand.u32 %v1847, 2147483648
  %v1860 = vor.u32 1.1754944e-38, %v1859
  %v1861 = vsel %vm1858, %v1860, %v1856
  %v1862 = vmul.f32 1.0, %v1861
  %v1863 = vtanh.pop %v1843
  %v1864 = vmul.f32 %v1862, %v1810
  %1866 = vrot.lane.b32.xlu0 %v1863, 64
  %v1867 = vpop.permute.xlu0 %1866
  %v1869 = vmul.f32 %v1862, %v1867
  %1871 = vrot.lane.b32.xlu0 %v1869, 32
  %v1872 = vpop.permute.xlu0 %1871
  %v1874 = vadd.f32 %v1864, %v1872
  %v1875 = vtanh.pop %v1874
  %1877 = vrot.lane.b32.xlu0 %v1875, 64
  %v1878 = vpop.permute.xlu0 %1877
  %v1880 = vmul.f32 %v1862, %v1878
  %v1881 = vmax.f32 %v1817, %v1880
  %1883 = vrot.lane.b32.xlu0 %v1880, 32
  %v1884 = vpop.permute.xlu0 %1883
  %v1885 = vsel %vm77, %v1884, 0
  %1887 = vmatpush.msra.mxu0 0.0
  %1888 = vmatpush.msra.mxu0 0.0
  %1889 = vmatpush.msra.mxu0 0.0
  %1890 = vmatpush.msra.mxu0 0.0
  %1891 = vmatpush.msra.mxu0 0.0
  %1892 = vmatpush.msra.mxu0 0.0
  %1893 = vmatpush.msra.mxu0 0.0
  %1894 = vmatpush.msra.mxu0 0.0
  %1895 = vmatpush.msra.mxu0 0.0
  %1896 = vmatpush.msra.mxu0 0.0
  %1897 = vmatpush.msra.mxu0 0.0
  %1898 = vmatpush.msra.mxu0 0.0
  %1899 = vmatpush.msra.mxu0 %v1566
  %1900 = vmatpush.msra.mxu0 %v1565
  %1901 = vmatpush.msra.mxu0 %v1564
  %1902 = vmatpush.msra.mxu0 %v1563
  %1903 = vmatmul.f32.gmra.mxu0 %v1885
  %v1904 = vpop.f32.mrf.mxu0
  %v1905 = vadd.f32 0.0, %v1904
  %1906 = vdwg.mxu0
  %v1907 = vadd.f32 %v1458, %v1905
  %v1908 = vxor.u32 %v1907, 2147483648
  %v1909 = vmul.f32 %v1908, 1.442695
  %v1910 = vpow.pop %v1909
  %v1911 = vadd.f32 %v1910, 1.0
  %v1912 = vrcp.pop %v1911
  %v1913 = vmul.f32 %v1911, %v1912
  %v1914 = vsub.f32 1.0, %v1913
  %v1915 = vmul.f32 %v1912, %v1914
  %v1916 = vadd.f32 %v1912, %v1915
  %vm1917 = vweird.f32 %v1911
  %vm1918 = vweird.f32 %v1912
  %vm1919 = vmor %vm1917, %vm1918
  %v1920 = vsel %vm1919, %v1912, %v1916
  %v1921 = vand.u32 2147483647, %v1911
  %vm1922 = vcmp.eq.f32.partialorder %v1921, 8.507059e+37
  %v1923 = vand.u32 %v1911, 2147483648
  %v1924 = vor.u32 1.1754944e-38, %v1923
  %v1925 = vsel %vm1922, %v1924, %v1920
  %v1926 = vmul.f32 1.0, %v1925
  %v1927 = vtanh.pop %v1907
  %v1928 = vmul.f32 %v1926, %v1874
  %1930 = vrot.lane.b32.xlu0 %v1927, 64
  %v1931 = vpop.permute.xlu0 %1930
  %v1933 = vmul.f32 %v1926, %v1931
  %1935 = vrot.lane.b32.xlu0 %v1933, 32
  %v1936 = vpop.permute.xlu0 %1935
  %v1938 = vadd.f32 %v1928, %v1936
  %v1939 = vtanh.pop %v1938
  %1941 = vrot.lane.b32.xlu0 %v1939, 64
  %v1942 = vpop.permute.xlu0 %1941
  %v1944 = vmul.f32 %v1926, %v1942
  %v1945 = vmax.f32 %v1881, %v1944
  %1947 = vrot.lane.b32.xlu0 %v1944, 32
  %v1948 = vpop.permute.xlu0 %1947
  %v1949 = vsel %vm77, %v1948, 0
  %1951 = vmatpush.msra.mxu0 0.0
  %1952 = vmatpush.msra.mxu0 0.0
  %1953 = vmatpush.msra.mxu0 0.0
  %1954 = vmatpush.msra.mxu0 0.0
  %1955 = vmatpush.msra.mxu0 0.0
  %1956 = vmatpush.msra.mxu0 0.0
  %1957 = vmatpush.msra.mxu0 0.0
  %1958 = vmatpush.msra.mxu0 0.0
  %1959 = vmatpush.msra.mxu0 0.0
  %1960 = vmatpush.msra.mxu0 0.0
  %1961 = vmatpush.msra.mxu0 0.0
  %1962 = vmatpush.msra.mxu0 0.0
  %1963 = vmatpush.msra.mxu0 %v1566
  %1964 = vmatpush.msra.mxu0 %v1565
  %1965 = vmatpush.msra.mxu0 %v1564
  %1966 = vmatpush.msra.mxu0 %v1563
  %1967 = vmatmul.f32.gmra.mxu0 %v1949
  %v1968 = vpop.f32.mrf.mxu0
  %v1969 = vadd.f32 0.0, %v1968
  %1970 = vdwg.mxu0
  %v1971 = vadd.f32 %v1459, %v1969
  %v1972 = vxor.u32 %v1971, 2147483648
  %v1973 = vmul.f32 %v1972, 1.442695
  %v1974 = vpow.pop %v1973
  %v1975 = vadd.f32 %v1974, 1.0
  %v1976 = vrcp.pop %v1975
  %v1977 = vmul.f32 %v1975, %v1976
  %v1978 = vsub.f32 1.0, %v1977
  %v1979 = vmul.f32 %v1976, %v1978
  %v1980 = vadd.f32 %v1976, %v1979
  %vm1981 = vweird.f32 %v1975
  %vm1982 = vweird.f32 %v1976
  %vm1983 = vmor %vm1981, %vm1982
  %v1984 = vsel %vm1983, %v1976, %v1980
  %v1985 = vand.u32 2147483647, %v1975
  %vm1986 = vcmp.eq.f32.partialorder %v1985, 8.507059e+37
  %v1987 = vand.u32 %v1975, 2147483648
  %v1988 = vor.u32 1.1754944e-38, %v1987
  %v1989 = vsel %vm1986, %v1988, %v1984
  %v1990 = vmul.f32 1.0, %v1989
  %v1991 = vtanh.pop %v1971
  %v1992 = vmul.f32 %v1990, %v1938
  %1994 = vrot.lane.b32.xlu0 %v1991, 64
  %v1995 = vpop.permute.xlu0 %1994
  %v1997 = vmul.f32 %v1990, %v1995
  %1999 = vrot.lane.b32.xlu0 %v1997, 32
  %v2000 = vpop.permute.xlu0 %1999
  %v2002 = vadd.f32 %v1992, %v2000
  %v2003 = vtanh.pop %v2002
  %2005 = vrot.lane.b32.xlu0 %v2003, 64
  %v2006 = vpop.permute.xlu0 %2005
  %v2008 = vmul.f32 %v1990, %v2006
  %v2009 = vmax.f32 %v1945, %v2008
  %2011 = vrot.lane.b32.xlu0 %v2008, 32
  %v2012 = vpop.permute.xlu0 %2011
  %v2013 = vsel %vm77, %v2012, 0
  %2015 = vmatpush.msra.mxu0 0.0
  %2016 = vmatpush.msra.mxu0 0.0
  %2017 = vmatpush.msra.mxu0 0.0
  %2018 = vmatpush.msra.mxu0 0.0
  %2019 = vmatpush.msra.mxu0 0.0
  %2020 = vmatpush.msra.mxu0 0.0
  %2021 = vmatpush.msra.mxu0 0.0
  %2022 = vmatpush.msra.mxu0 0.0
  %2023 = vmatpush.msra.mxu0 0.0
  %2024 = vmatpush.msra.mxu0 0.0
  %2025 = vmatpush.msra.mxu0 0.0
  %2026 = vmatpush.msra.mxu0 0.0
  %2027 = vmatpush.msra.mxu0 %v1566
  %2028 = vmatpush.msra.mxu0 %v1565
  %2029 = vmatpush.msra.mxu0 %v1564
  %2030 = vmatpush.msra.mxu0 %v1563
  %2031 = vmatmul.f32.gmra.mxu0 %v2013
  %v2032 = vpop.f32.mrf.mxu0
  %v2033 = vadd.f32 0.0, %v2032
  %2034 = vdwg.mxu0
  %v2035 = vadd.f32 %v1460, %v2033
  %v2036 = vxor.u32 %v2035, 2147483648
  %v2037 = vmul.f32 %v2036, 1.442695
  %v2038 = vpow.pop %v2037
  %v2039 = vadd.f32 %v2038, 1.0
  %v2040 = vrcp.pop %v2039
  %v2041 = vmul.f32 %v2039, %v2040
  %v2042 = vsub.f32 1.0, %v2041
  %v2043 = vmul.f32 %v2040, %v2042
  %v2044 = vadd.f32 %v2040, %v2043
  %vm2045 = vweird.f32 %v2039
  %vm2046 = vweird.f32 %v2040
  %vm2047 = vmor %vm2045, %vm2046
  %v2048 = vsel %vm2047, %v2040, %v2044
  %v2049 = vand.u32 2147483647, %v2039
  %vm2050 = vcmp.eq.f32.partialorder %v2049, 8.507059e+37
  %v2051 = vand.u32 %v2039, 2147483648
  %v2052 = vor.u32 1.1754944e-38, %v2051
  %v2053 = vsel %vm2050, %v2052, %v2048
  %v2054 = vmul.f32 1.0, %v2053
  %v2055 = vtanh.pop %v2035
  %v2056 = vmul.f32 %v2054, %v2002
  %2058 = vrot.lane.b32.xlu0 %v2055, 64
  %v2059 = vpop.permute.xlu0 %2058
  %v2061 = vmul.f32 %v2054, %v2059
  %2063 = vrot.lane.b32.xlu0 %v2061, 32
  %v2064 = vpop.permute.xlu0 %2063
  %v2066 = vadd.f32 %v2056, %v2064
  %v2067 = vtanh.pop %v2066
  %2069 = vrot.lane.b32.xlu0 %v2067, 64
  %v2070 = vpop.permute.xlu0 %2069
  %v2072 = vmul.f32 %v2054, %v2070
  %v2073 = vmax.f32 %v2009, %v2072
  %v2074 = vld [vmem:[%s11] sm:$0xff]
  %v2075 = vld [vmem:[%s11 + $0x8] sm:$0xff]
  %v2076 = vld [vmem:[%s11 + $0x10] sm:$0xff]
  %v2077 = vld [vmem:[%s11 + $0x18] sm:$0xff]
  %2078 = vmatpush.msra.mxu0 0.0
  %2079 = vmatpush.msra.mxu0 0.0
  %2080 = vmatpush.msra.mxu0 0.0
  %2081 = vmatpush.msra.mxu0 0.0
  %2082 = vmatpush.msra.mxu0 0.0
  %2083 = vmatpush.msra.mxu0 0.0
  %2084 = vmatpush.msra.mxu0 0.0
  %2085 = vmatpush.msra.mxu0 0.0
  %2086 = vmatpush.msra.mxu0 0.0
  %2087 = vmatpush.msra.mxu0 0.0
  %2088 = vmatpush.msra.mxu0 0.0
  %2089 = vmatpush.msra.mxu0 0.0
  %2090 = vmatpush.msra.mxu0 %v2077
  %2091 = vmatpush.msra.mxu0 %v2076
  %2092 = vmatpush.msra.mxu0 %v2075
  %2093 = vmatpush.msra.mxu0 %v2074
  %2094 = vmatmul.f32.gmra.mxu0 %v197
  %v2095 = vpop.f32.mrf.mxu0
  %v2096 = vadd.f32 0.0, %v2095
  %2097 = vdwg.mxu0
  %v2098 = vadd.f32 %v1562, %v2096
  %v2099 = vxor.u32 %v2098, 2147483648
  %v2100 = vmul.f32 %v2099, 1.442695
  %v2101 = vpow.pop %v2100
  %v2102 = vadd.f32 %v2101, 1.0
  %v2103 = vrcp.pop %v2102
  %v2104 = vmul.f32 %v2102, %v2103
  %v2105 = vsub.f32 1.0, %v2104
  %v2106 = vmul.f32 %v2103, %v2105
  %v2107 = vadd.f32 %v2103, %v2106
  %vm2108 = vweird.f32 %v2102
  %vm2109 = vweird.f32 %v2103
  %vm2110 = vmor %vm2108, %vm2109
  %v2111 = vsel %vm2110, %v2103, %v2107
  %v2112 = vand.u32 2147483647, %v2102
  %vm2113 = vcmp.eq.f32.partialorder %v2112, 8.507059e+37
  %v2114 = vand.u32 %v2102, 2147483648
  %v2115 = vor.u32 1.1754944e-38, %v2114
  %v2116 = vsel %vm2113, %v2115, %v2111
  %v2117 = vmul.f32 1.0, %v2116
  %v2118 = vtanh.pop %v2098
  %v2119 = vmul.f32 %v2117, 0.0
  %2121 = vrot.lane.b32.xlu0 %v2118, 64
  %v2122 = vpop.permute.xlu0 %2121
  %v2124 = vmul.f32 %v2117, %v2122
  %2126 = vrot.lane.b32.xlu0 %v2124, 32
  %v2127 = vpop.permute.xlu0 %2126
  %v2129 = vadd.f32 %v2119, %v2127
  %v2130 = vtanh.pop %v2129
  %2132 = vrot.lane.b32.xlu0 %v2130, 64
  %v2133 = vpop.permute.xlu0 %2132
  %v2135 = vmul.f32 %v2117, %v2133
  %v2136 = vmax.f32 %v2135, 0.0
  %2138 = vrot.lane.b32.xlu0 %v2135, 32
  %v2139 = vpop.permute.xlu0 %2138
  %v2140 = vsel %vm77, %v2139, 0
  %2142 = vmatpush.msra.mxu0 0.0
  %2143 = vmatpush.msra.mxu0 0.0
  %2144 = vmatpush.msra.mxu0 0.0
  %2145 = vmatpush.msra.mxu0 0.0
  %2146 = vmatpush.msra.mxu0 0.0
  %2147 = vmatpush.msra.mxu0 0.0
  %2148 = vmatpush.msra.mxu0 0.0
  %2149 = vmatpush.msra.mxu0 0.0
  %2150 = vmatpush.msra.mxu0 0.0
  %2151 = vmatpush.msra.mxu0 0.0
  %2152 = vmatpush.msra.mxu0 0.0
  %2153 = vmatpush.msra.mxu0 0.0
  %2154 = vmatpush.msra.mxu0 %v2077
  %2155 = vmatpush.msra.mxu0 %v2076
  %2156 = vmatpush.msra.mxu0 %v2075
  %2157 = vmatpush.msra.mxu0 %v2074
  %2158 = vmatmul.f32.gmra.mxu0 %v2140
  %v2159 = vpop.f32.mrf.mxu0
  %v2160 = vadd.f32 0.0, %v2159
  %2161 = vdwg.mxu0
  %v2162 = vadd.f32 %v1561, %v2160
  %v2163 = vxor.u32 %v2162, 2147483648
  %v2164 = vmul.f32 %v2163, 1.442695
  %v2165 = vpow.pop %v2164
  %v2166 = vadd.f32 %v2165, 1.0
  %v2167 = vrcp.pop %v2166
  %v2168 = vmul.f32 %v2166, %v2167
  %v2169 = vsub.f32 1.0, %v2168
  %v2170 = vmul.f32 %v2167, %v2169
  %v2171 = vadd.f32 %v2167, %v2170
  %vm2172 = vweird.f32 %v2166
  %vm2173 = vweird.f32 %v2167
  %vm2174 = vmor %vm2172, %vm2173
  %v2175 = vsel %vm2174, %v2167, %v2171
  %v2176 = vand.u32 2147483647, %v2166
  %vm2177 = vcmp.eq.f32.partialorder %v2176, 8.507059e+37
  %v2178 = vand.u32 %v2166, 2147483648
  %v2179 = vor.u32 1.1754944e-38, %v2178
  %v2180 = vsel %vm2177, %v2179, %v2175
  %v2181 = vmul.f32 1.0, %v2180
  %v2182 = vtanh.pop %v2162
  %v2183 = vmul.f32 %v2181, %v2129
  %2185 = vrot.lane.b32.xlu0 %v2182, 64
  %v2186 = vpop.permute.xlu0 %2185
  %v2188 = vmul.f32 %v2181, %v2186
  %2190 = vrot.lane.b32.xlu0 %v2188, 32
  %v2191 = vpop.permute.xlu0 %2190
  %v2193 = vadd.f32 %v2183, %v2191
  %v2194 = vtanh.pop %v2193
  %2196 = vrot.lane.b32.xlu0 %v2194, 64
  %v2197 = vpop.permute.xlu0 %2196
  %v2199 = vmul.f32 %v2181, %v2197
  %v2200 = vmax.f32 %v2136, %v2199
  %2202 = vrot.lane.b32.xlu0 %v2199, 32
  %v2203 = vpop.permute.xlu0 %2202
  %v2204 = vsel %vm77, %v2203, 0
  %2206 = vmatpush.msra.mxu0 0.0
  %2207 = vmatpush.msra.mxu0 0.0
  %2208 = vmatpush.msra.mxu0 0.0
  %2209 = vmatpush.msra.mxu0 0.0
  %2210 = vmatpush.msra.mxu0 0.0
  %2211 = vmatpush.msra.mxu0 0.0
  %2212 = vmatpush.msra.mxu0 0.0
  %2213 = vmatpush.msra.mxu0 0.0
  %2214 = vmatpush.msra.mxu0 0.0
  %2215 = vmatpush.msra.mxu0 0.0
  %2216 = vmatpush.msra.mxu0 0.0
  %2217 = vmatpush.msra.mxu0 0.0
  %2218 = vmatpush.msra.mxu0 %v2077
  %2219 = vmatpush.msra.mxu0 %v2076
  %2220 = vmatpush.msra.mxu0 %v2075
  %2221 = vmatpush.msra.mxu0 %v2074
  %2222 = vmatmul.f32.gmra.mxu0 %v2204
  %v2223 = vpop.f32.mrf.mxu0
  %v2224 = vadd.f32 0.0, %v2223
  %2225 = vdwg.mxu0
  %v2226 = vadd.f32 %v1560, %v2224
  %v2227 = vxor.u32 %v2226, 2147483648
  %v2228 = vmul.f32 %v2227, 1.442695
  %v2229 = vpow.pop %v2228
  %v2230 = vadd.f32 %v2229, 1.0
  %v2231 = vrcp.pop %v2230
  %v2232 = vmul.f32 %v2230, %v2231
  %v2233 = vsub.f32 1.0, %v2232
  %v2234 = vmul.f32 %v2231, %v2233
  %v2235 = vadd.f32 %v2231, %v2234
  %vm2236 = vweird.f32 %v2230
  %vm2237 = vweird.f32 %v2231
  %vm2238 = vmor %vm2236, %vm2237
  %v2239 = vsel %vm2238, %v2231, %v2235
  %v2240 = vand.u32 2147483647, %v2230
  %vm2241 = vcmp.eq.f32.partialorder %v2240, 8.507059e+37
  %v2242 = vand.u32 %v2230, 2147483648
  %v2243 = vor.u32 1.1754944e-38, %v2242
  %v2244 = vsel %vm2241, %v2243, %v2239
  %v2245 = vmul.f32 1.0, %v2244
  %v2246 = vtanh.pop %v2226
  %v2247 = vmul.f32 %v2245, %v2193
  %2249 = vrot.lane.b32.xlu0 %v2246, 64
  %v2250 = vpop.permute.xlu0 %2249
  %v2252 = vmul.f32 %v2245, %v2250
  %2254 = vrot.lane.b32.xlu0 %v2252, 32
  %v2255 = vpop.permute.xlu0 %2254
  %v2257 = vadd.f32 %v2247, %v2255
  %v2258 = vtanh.pop %v2257
  %2260 = vrot.lane.b32.xlu0 %v2258, 64
  %v2261 = vpop.permute.xlu0 %2260
  %v2263 = vmul.f32 %v2245, %v2261
  %v2264 = vmax.f32 %v2200, %v2263
  %2266 = vrot.lane.b32.xlu0 %v2263, 32
  %v2267 = vpop.permute.xlu0 %2266
  %v2268 = vsel %vm77, %v2267, 0
  %2270 = vmatpush.msra.mxu0 0.0
  %2271 = vmatpush.msra.mxu0 0.0
  %2272 = vmatpush.msra.mxu0 0.0
  %2273 = vmatpush.msra.mxu0 0.0
  %2274 = vmatpush.msra.mxu0 0.0
  %2275 = vmatpush.msra.mxu0 0.0
  %2276 = vmatpush.msra.mxu0 0.0
  %2277 = vmatpush.msra.mxu0 0.0
  %2278 = vmatpush.msra.mxu0 0.0
  %2279 = vmatpush.msra.mxu0 0.0
  %2280 = vmatpush.msra.mxu0 0.0
  %2281 = vmatpush.msra.mxu0 0.0
  %2282 = vmatpush.msra.mxu0 %v2077
  %2283 = vmatpush.msra.mxu0 %v2076
  %2284 = vmatpush.msra.mxu0 %v2075
  %2285 = vmatpush.msra.mxu0 %v2074
  %2286 = vmatmul.f32.gmra.mxu0 %v2268
  %v2287 = vpop.f32.mrf.mxu0
  %v2288 = vadd.f32 0.0, %v2287
  %2289 = vdwg.mxu0
  %v2290 = vadd.f32 %v1559, %v2288
  %v2291 = vxor.u32 %v2290, 2147483648
  %v2292 = vmul.f32 %v2291, 1.442695
  %v2293 = vpow.pop %v2292
  %v2294 = vadd.f32 %v2293, 1.0
  %v2295 = vrcp.pop %v2294
  %v2296 = vmul.f32 %v2294, %v2295
  %v2297 = vsub.f32 1.0, %v2296
  %v2298 = vmul.f32 %v2295, %v2297
  %v2299 = vadd.f32 %v2295, %v2298
  %vm2300 = vweird.f32 %v2294
  %vm2301 = vweird.f32 %v2295
  %vm2302 = vmor %vm2300, %vm2301
  %v2303 = vsel %vm2302, %v2295, %v2299
  %v2304 = vand.u32 2147483647, %v2294
  %vm2305 = vcmp.eq.f32.partialorder %v2304, 8.507059e+37
  %v2306 = vand.u32 %v2294, 2147483648
  %v2307 = vor.u32 1.1754944e-38, %v2306
  %v2308 = vsel %vm2305, %v2307, %v2303
  %v2309 = vmul.f32 1.0, %v2308
  %v2310 = vtanh.pop %v2290
  %v2311 = vmul.f32 %v2309, %v2257
  %2313 = vrot.lane.b32.xlu0 %v2310, 64
  %v2314 = vpop.permute.xlu0 %2313
  %v2316 = vmul.f32 %v2309, %v2314
  %2318 = vrot.lane.b32.xlu0 %v2316, 32
  %v2319 = vpop.permute.xlu0 %2318
  %v2321 = vadd.f32 %v2311, %v2319
  %v2322 = vtanh.pop %v2321
  %2324 = vrot.lane.b32.xlu0 %v2322, 64
  %v2325 = vpop.permute.xlu0 %2324
  %v2327 = vmul.f32 %v2309, %v2325
  %v2328 = vmax.f32 %v2264, %v2327
  %2330 = vrot.lane.b32.xlu0 %v2327, 32
  %v2331 = vpop.permute.xlu0 %2330
  %v2332 = vsel %vm77, %v2331, 0
  %2334 = vmatpush.msra.mxu0 0.0
  %2335 = vmatpush.msra.mxu0 0.0
  %2336 = vmatpush.msra.mxu0 0.0
  %2337 = vmatpush.msra.mxu0 0.0
  %2338 = vmatpush.msra.mxu0 0.0
  %2339 = vmatpush.msra.mxu0 0.0
  %2340 = vmatpush.msra.mxu0 0.0
  %2341 = vmatpush.msra.mxu0 0.0
  %2342 = vmatpush.msra.mxu0 0.0
  %2343 = vmatpush.msra.mxu0 0.0
  %2344 = vmatpush.msra.mxu0 0.0
  %2345 = vmatpush.msra.mxu0 0.0
  %2346 = vmatpush.msra.mxu0 %v2077
  %2347 = vmatpush.msra.mxu0 %v2076
  %2348 = vmatpush.msra.mxu0 %v2075
  %2349 = vmatpush.msra.mxu0 %v2074
  %2350 = vmatmul.f32.gmra.mxu0 %v2332
  %v2351 = vpop.f32.mrf.mxu0
  %v2352 = vadd.f32 0.0, %v2351
  %2353 = vdwg.mxu0
  %v2354 = vadd.f32 %v1558, %v2352
  %v2355 = vxor.u32 %v2354, 2147483648
  %v2356 = vmul.f32 %v2355, 1.442695
  %v2357 = vpow.pop %v2356
  %v2358 = vadd.f32 %v2357, 1.0
  %v2359 = vrcp.pop %v2358
  %v2360 = vmul.f32 %v2358, %v2359
  %v2361 = vsub.f32 1.0, %v2360
  %v2362 = vmul.f32 %v2359, %v2361
  %v2363 = vadd.f32 %v2359, %v2362
  %vm2364 = vweird.f32 %v2358
  %vm2365 = vweird.f32 %v2359
  %vm2366 = vmor %vm2364, %vm2365
  %v2367 = vsel %vm2366, %v2359, %v2363
  %v2368 = vand.u32 2147483647, %v2358
  %vm2369 = vcmp.eq.f32.partialorder %v2368, 8.507059e+37
  %v2370 = vand.u32 %v2358, 2147483648
  %v2371 = vor.u32 1.1754944e-38, %v2370
  %v2372 = vsel %vm2369, %v2371, %v2367
  %v2373 = vmul.f32 1.0, %v2372
  %v2374 = vtanh.pop %v2354
  %v2375 = vmul.f32 %v2373, %v2321
  %2377 = vrot.lane.b32.xlu0 %v2374, 64
  %v2378 = vpop.permute.xlu0 %2377
  %v2380 = vmul.f32 %v2373, %v2378
  %2382 = vrot.lane.b32.xlu0 %v2380, 32
  %v2383 = vpop.permute.xlu0 %2382
  %v2385 = vadd.f32 %v2375, %v2383
  %v2386 = vtanh.pop %v2385
  %2388 = vrot.lane.b32.xlu0 %v2386, 64
  %v2389 = vpop.permute.xlu0 %2388
  %v2391 = vmul.f32 %v2373, %v2389
  %v2392 = vmax.f32 %v2328, %v2391
  %2394 = vrot.lane.b32.xlu0 %v2391, 32
  %v2395 = vpop.permute.xlu0 %2394
  %v2396 = vsel %vm77, %v2395, 0
  %2398 = vmatpush.msra.mxu0 0.0
  %2399 = vmatpush.msra.mxu0 0.0
  %2400 = vmatpush.msra.mxu0 0.0
  %2401 = vmatpush.msra.mxu0 0.0
  %2402 = vmatpush.msra.mxu0 0.0
  %2403 = vmatpush.msra.mxu0 0.0
  %2404 = vmatpush.msra.mxu0 0.0
  %2405 = vmatpush.msra.mxu0 0.0
  %2406 = vmatpush.msra.mxu0 0.0
  %2407 = vmatpush.msra.mxu0 0.0
  %2408 = vmatpush.msra.mxu0 0.0
  %2409 = vmatpush.msra.mxu0 0.0
  %2410 = vmatpush.msra.mxu0 %v2077
  %2411 = vmatpush.msra.mxu0 %v2076
  %2412 = vmatpush.msra.mxu0 %v2075
  %2413 = vmatpush.msra.mxu0 %v2074
  %2414 = vmatmul.f32.gmra.mxu0 %v2396
  %v2415 = vpop.f32.mrf.mxu0
  %v2416 = vadd.f32 0.0, %v2415
  %2417 = vdwg.mxu0
  %v2418 = vadd.f32 %v1557, %v2416
  %v2419 = vxor.u32 %v2418, 2147483648
  %v2420 = vmul.f32 %v2419, 1.442695
  %v2421 = vpow.pop %v2420
  %v2422 = vadd.f32 %v2421, 1.0
  %v2423 = vrcp.pop %v2422
  %v2424 = vmul.f32 %v2422, %v2423
  %v2425 = vsub.f32 1.0, %v2424
  %v2426 = vmul.f32 %v2423, %v2425
  %v2427 = vadd.f32 %v2423, %v2426
  %vm2428 = vweird.f32 %v2422
  %vm2429 = vweird.f32 %v2423
  %vm2430 = vmor %vm2428, %vm2429
  %v2431 = vsel %vm2430, %v2423, %v2427
  %v2432 = vand.u32 2147483647, %v2422
  %vm2433 = vcmp.eq.f32.partialorder %v2432, 8.507059e+37
  %v2434 = vand.u32 %v2422, 2147483648
  %v2435 = vor.u32 1.1754944e-38, %v2434
  %v2436 = vsel %vm2433, %v2435, %v2431
  %v2437 = vmul.f32 1.0, %v2436
  %v2438 = vtanh.pop %v2418
  %v2439 = vmul.f32 %v2437, %v2385
  %2441 = vrot.lane.b32.xlu0 %v2438, 64
  %v2442 = vpop.permute.xlu0 %2441
  %v2444 = vmul.f32 %v2437, %v2442
  %2446 = vrot.lane.b32.xlu0 %v2444, 32
  %v2447 = vpop.permute.xlu0 %2446
  %v2449 = vadd.f32 %v2439, %v2447
  %v2450 = vtanh.pop %v2449
  %2452 = vrot.lane.b32.xlu0 %v2450, 64
  %v2453 = vpop.permute.xlu0 %2452
  %v2455 = vmul.f32 %v2437, %v2453
  %v2456 = vmax.f32 %v2392, %v2455
  %2458 = vrot.lane.b32.xlu0 %v2455, 32
  %v2459 = vpop.permute.xlu0 %2458
  %v2460 = vsel %vm77, %v2459, 0
  %2462 = vmatpush.msra.mxu0 0.0
  %2463 = vmatpush.msra.mxu0 0.0
  %2464 = vmatpush.msra.mxu0 0.0
  %2465 = vmatpush.msra.mxu0 0.0
  %2466 = vmatpush.msra.mxu0 0.0
  %2467 = vmatpush.msra.mxu0 0.0
  %2468 = vmatpush.msra.mxu0 0.0
  %2469 = vmatpush.msra.mxu0 0.0
  %2470 = vmatpush.msra.mxu0 0.0
  %2471 = vmatpush.msra.mxu0 0.0
  %2472 = vmatpush.msra.mxu0 0.0
  %2473 = vmatpush.msra.mxu0 0.0
  %2474 = vmatpush.msra.mxu0 %v2077
  %2475 = vmatpush.msra.mxu0 %v2076
  %2476 = vmatpush.msra.mxu0 %v2075
  %2477 = vmatpush.msra.mxu0 %v2074
  %2478 = vmatmul.f32.gmra.mxu0 %v2460
  %v2479 = vpop.f32.mrf.mxu0
  %v2480 = vadd.f32 0.0, %v2479
  %2481 = vdwg.mxu0
  %v2482 = vadd.f32 %v1556, %v2480
  %v2483 = vxor.u32 %v2482, 2147483648
  %v2484 = vmul.f32 %v2483, 1.442695
  %v2485 = vpow.pop %v2484
  %v2486 = vadd.f32 %v2485, 1.0
  %v2487 = vrcp.pop %v2486
  %v2488 = vmul.f32 %v2486, %v2487
  %v2489 = vsub.f32 1.0, %v2488
  %v2490 = vmul.f32 %v2487, %v2489
  %v2491 = vadd.f32 %v2487, %v2490
  %vm2492 = vweird.f32 %v2486
  %vm2493 = vweird.f32 %v2487
  %vm2494 = vmor %vm2492, %vm2493
  %v2495 = vsel %vm2494, %v2487, %v2491
  %v2496 = vand.u32 2147483647, %v2486
  %vm2497 = vcmp.eq.f32.partialorder %v2496, 8.507059e+37
  %v2498 = vand.u32 %v2486, 2147483648
  %v2499 = vor.u32 1.1754944e-38, %v2498
  %v2500 = vsel %vm2497, %v2499, %v2495
  %v2501 = vmul.f32 1.0, %v2500
  %v2502 = vtanh.pop %v2482
  %v2503 = vmul.f32 %v2501, %v2449
  %2505 = vrot.lane.b32.xlu0 %v2502, 64
  %v2506 = vpop.permute.xlu0 %2505
  %v2508 = vmul.f32 %v2501, %v2506
  %2510 = vrot.lane.b32.xlu0 %v2508, 32
  %v2511 = vpop.permute.xlu0 %2510
  %v2513 = vadd.f32 %v2503, %v2511
  %v2514 = vtanh.pop %v2513
  %2516 = vrot.lane.b32.xlu0 %v2514, 64
  %v2517 = vpop.permute.xlu0 %2516
  %v2519 = vmul.f32 %v2501, %v2517
  %v2520 = vmax.f32 %v2456, %v2519
  %2522 = vrot.lane.b32.xlu0 %v2519, 32
  %v2523 = vpop.permute.xlu0 %2522
  %v2524 = vsel %vm77, %v2523, 0
  %2526 = vmatpush.msra.mxu0 0.0
  %2527 = vmatpush.msra.mxu0 0.0
  %2528 = vmatpush.msra.mxu0 0.0
  %2529 = vmatpush.msra.mxu0 0.0
  %2530 = vmatpush.msra.mxu0 0.0
  %2531 = vmatpush.msra.mxu0 0.0
  %2532 = vmatpush.msra.mxu0 0.0
  %2533 = vmatpush.msra.mxu0 0.0
  %2534 = vmatpush.msra.mxu0 0.0
  %2535 = vmatpush.msra.mxu0 0.0
  %2536 = vmatpush.msra.mxu0 0.0
  %2537 = vmatpush.msra.mxu0 0.0
  %2538 = vmatpush.msra.mxu0 %v2077
  %2539 = vmatpush.msra.mxu0 %v2076
  %2540 = vmatpush.msra.mxu0 %v2075
  %2541 = vmatpush.msra.mxu0 %v2074
  %2542 = vmatmul.f32.gmra.mxu0 %v2524
  %v2543 = vpop.f32.mrf.mxu0
  %v2544 = vadd.f32 0.0, %v2543
  %2545 = vdwg.mxu0
  %v2546 = vadd.f32 %v1555, %v2544
  %v2547 = vxor.u32 %v2546, 2147483648
  %v2548 = vmul.f32 %v2547, 1.442695
  %v2549 = vpow.pop %v2548
  %v2550 = vadd.f32 %v2549, 1.0
  %v2551 = vrcp.pop %v2550
  %v2552 = vmul.f32 %v2550, %v2551
  %v2553 = vsub.f32 1.0, %v2552
  %v2554 = vmul.f32 %v2551, %v2553
  %v2555 = vadd.f32 %v2551, %v2554
  %vm2556 = vweird.f32 %v2550
  %vm2557 = vweird.f32 %v2551
  %vm2558 = vmor %vm2556, %vm2557
  %v2559 = vsel %vm2558, %v2551, %v2555
  %v2560 = vand.u32 2147483647, %v2550
  %vm2561 = vcmp.eq.f32.partialorder %v2560, 8.507059e+37
  %v2562 = vand.u32 %v2550, 2147483648
  %v2563 = vor.u32 1.1754944e-38, %v2562
  %v2564 = vsel %vm2561, %v2563, %v2559
  %v2565 = vmul.f32 1.0, %v2564
  %v2566 = vtanh.pop %v2546
  %v2567 = vmul.f32 %v2565, %v2513
  %2569 = vrot.lane.b32.xlu0 %v2566, 64
  %v2570 = vpop.permute.xlu0 %2569
  %v2572 = vmul.f32 %v2565, %v2570
  %2574 = vrot.lane.b32.xlu0 %v2572, 32
  %v2575 = vpop.permute.xlu0 %2574
  %v2577 = vadd.f32 %v2567, %v2575
  %v2578 = vtanh.pop %v2577
  %2580 = vrot.lane.b32.xlu0 %v2578, 64
  %v2581 = vpop.permute.xlu0 %2580
  %v2583 = vmul.f32 %v2565, %v2581
  %v2584 = vmax.f32 %v2520, %v2583
  %v2585 = vld [vmem:[%s13] sm:$0xff]
  %v2586 = vld [vmem:[%s13 + $0x8] sm:$0xff]
  %v2587 = vld [vmem:[%s13 + $0x10] sm:$0xff]
  %v2588 = vld [vmem:[%s13 + $0x18] sm:$0xff]
  %v2589 = vld [vmem:[%s14] sm:$0xff]
  %v2590 = vld [vmem:[%s14 + $0x8] sm:$0xff]
  %v2591 = vld [vmem:[%s14 + $0x10] sm:$0xff]
  %v2592 = vld [vmem:[%s14 + $0x18] sm:$0xff]
  %2594 = vrot.lane.b32.xlu0 %v2073, 32
  %v2595 = vpop.permute.xlu0 %2594
  %v2596 = vsel %vm77, %v2595, 0
  %2598 = vmatpush.msra.mxu0 0.0
  %2599 = vmatpush.msra.mxu0 0.0
  %2600 = vmatpush.msra.mxu0 0.0
  %2601 = vmatpush.msra.mxu0 0.0
  %2602 = vmatpush.msra.mxu0 0.0
  %2603 = vmatpush.msra.mxu0 0.0
  %2604 = vmatpush.msra.mxu0 0.0
  %2605 = vmatpush.msra.mxu0 0.0
  %2606 = vmatpush.msra.mxu0 0.0
  %2607 = vmatpush.msra.mxu0 0.0
  %2608 = vmatpush.msra.mxu0 0.0
  %2609 = vmatpush.msra.mxu0 0.0
  %2610 = vmatpush.msra.mxu0 %v2592
  %2611 = vmatpush.msra.mxu0 %v2591
  %2612 = vmatpush.msra.mxu0 %v2590
  %2613 = vmatpush.msra.mxu0 %v2589
  %2614 = vmatmul.f32.gmra.mxu0 %v2596
  %v2615 = vpop.f32.mrf.mxu0
  %v2616 = vadd.f32 0.0, %v2615
  %2617 = vdwg.mxu0
  %v2619 = vsel %vm77, %v68, 0
  %2621 = vmatpush.msra.mxu0 0.0
  %2622 = vmatpush.msra.mxu0 0.0
  %2623 = vmatpush.msra.mxu0 0.0
  %2624 = vmatpush.msra.mxu0 0.0
  %2625 = vmatpush.msra.mxu0 0.0
  %2626 = vmatpush.msra.mxu0 0.0
  %2627 = vmatpush.msra.mxu0 0.0
  %2628 = vmatpush.msra.mxu0 0.0
  %2629 = vmatpush.msra.mxu0 0.0
  %2630 = vmatpush.msra.mxu0 0.0
  %2631 = vmatpush.msra.mxu0 0.0
  %2632 = vmatpush.msra.mxu0 0.0
  %2633 = vmatpush.msra.mxu0 %v2588
  %2634 = vmatpush.msra.mxu0 %v2587
  %2635 = vmatpush.msra.mxu0 %v2586
  %2636 = vmatpush.msra.mxu0 %v2585
  %2637 = vmatmul.f32.gmra.mxu0 %v2619
  %v2638 = vpop.f32.mrf.mxu0
  %v2639 = vadd.f32 %v2616, %v2638
  %2640 = vdwg.mxu0
  %v2641 = vld [vmem:[%s14 + $0x20] sm:$0xff]
  %v2642 = vld [vmem:[%s14 + $0x28] sm:$0xff]
  %v2643 = vld [vmem:[%s14 + $0x30] sm:$0xff]
  %v2644 = vld [vmem:[%s14 + $0x38] sm:$0xff]
  %2646 = vrot.lane.b32.xlu0 %v2584, 32
  %v2647 = vpop.permute.xlu0 %2646
  %v2648 = vsel %vm77, %v2647, 0
  %2650 = vmatpush.msra.mxu0 0.0
  %2651 = vmatpush.msra.mxu0 0.0
  %2652 = vmatpush.msra.mxu0 0.0
  %2653 = vmatpush.msra.mxu0 0.0
  %2654 = vmatpush.msra.mxu0 0.0
  %2655 = vmatpush.msra.mxu0 0.0
  %2656 = vmatpush.msra.mxu0 0.0
  %2657 = vmatpush.msra.mxu0 0.0
  %2658 = vmatpush.msra.mxu0 0.0
  %2659 = vmatpush.msra.mxu0 0.0
  %2660 = vmatpush.msra.mxu0 0.0
  %2661 = vmatpush.msra.mxu0 0.0
  %2662 = vmatpush.msra.mxu0 %v2644
  %2663 = vmatpush.msra.mxu0 %v2643
  %2664 = vmatpush.msra.mxu0 %v2642
  %2665 = vmatpush.msra.mxu0 %v2641
  %2666 = vmatmul.f32.gmra.mxu0 %v2648
  %v2667 = vpop.f32.mrf.mxu0
  %v2668 = vadd.f32 0.0, %v2667
  %2669 = vdwg.mxu0
  %v2670 = vadd.f32 %v2639, %v2668
  %v2671 = vld [vmem:[%s15] sm:$0x1]
  %v2673 = vperm.slane %v2671, 0
  %v2675 = vadd.f32 %v2670, %v2673
  %vm2676 = vcmask 31744
  %2677 = vst.msk [vmem:[%s16] sm:$0xff] %vm2676, %v2675
  // Predicated region
  $region66: #{textrcnn_forward.1} parent=0 // pred_check
    _
  $region67: #{textrcnn_forward.1} parent=0 // pred_check_branch
    %2679 = sbr.rel (0) target = $region69
  $region68: #{textrcnn_forward.1} parent=0 // pred_region
    _
  $region69: #{textrcnn_forward.1} parent=0 // pred_fallthru
    _
  // Predicated region
  $region70: #{textrcnn_forward.1} parent=0 // pred_check
    _
  $region71: #{textrcnn_forward.1} parent=0 // pred_check_branch
    %2681 = sbr.rel (0) target = $region73
  $region72: #{textrcnn_forward.1} parent=0 // pred_region
    _
  $region73: #{textrcnn_forward.1} parent=0 // pred_fallthru
    _

</llo_original>
